<compile_context>
chip_gen: v6e
topology: v6e:2x2x1
jax: 0.10.0
libtpu: 0.0.40
codegen_flags: <defaults>
</compile_context>

<pallas_src>
import functools
import math

import numpy as np
import jax
import jax.numpy as jnp
from jax.experimental import pallas as pl
from jax.experimental.pallas import tpu as pltpu


# ----------------------------------------------------------------------------
# In-kernel helper: 3x3 depthwise conv (zero padding = 1) on a flattened
# (C, H*W) image, as 9 lane-rotated multiply-adds with boundary masks.
# ----------------------------------------------------------------------------
def _dw3x3_flat(x32, w9, pos, pcol, H, W):
    """x32: (C, H*W) f32, w9: (C, 9) f32 taps (row-major 3x3),
    pos / pcol: (1, H*W) int32 flattened position / column index."""
    C, HW = x32.shape
    acc = x32 * w9[:, 4:5]                               # center tap (dy=dx=0)
    for dy in (-1, 0, 1):
        for dx in (-1, 0, 1):
            if dy == 0 and dx == 0:
                continue
            t = (dy + 1) * 3 + (dx + 1)
            d = (dy * W + dx) % HW
            if d == 0:
                shifted = x32
            else:
                # roll-left by d via two static lane slices (no 2x doubled copy)
                shifted = jnp.concatenate([x32[:, d:], x32[:, :d]], axis=1)
            mask = None
            if dy == -1:                                  # needs row >= 1
                mask = pos >= W
            elif dy == 1:                                 # needs row <= H-2
                mask = pos < (H - 1) * W
            if dx == -1:                                  # needs col >= 1
                cm = pcol >= 1
                mask = cm if mask is None else jnp.logical_and(mask, cm)
            elif dx == 1:                                 # needs col <= W-2
                cm = pcol <= W - 2
                mask = cm if mask is None else jnp.logical_and(mask, cm)
            shifted = jnp.where(mask, shifted, 0.0)
            acc = acc + shifted * w9[:, t:t + 1]
    return acc


# ----------------------------------------------------------------------------
# Fused kernel
# ----------------------------------------------------------------------------
def _mutifreq_kernel(hin_ref, lin_ref,
                     wq9_ref, wv9_ref, woh9_ref,
                     wkl_ref, bkl_ref, wvl_ref, bvl_ref,
                     wol_ref, bol_ref,
                     pcol_ref,
                     hout_ref, lout_ref,
                     qh_s, vh_s, kl_s, vlT_s, lacc_s,
                     *, H, W, TQ):
    q = pl.program_id(1)
    n_q = pl.num_programs(1)
    C = wq9_ref.shape[0]
    HW = H * W
    scale = float(C) ** -0.5

    # ---- per-image prep on the first query tile -----------------------------
    @pl.when(q == 0)
    def _prep():
        pos = jax.lax.broadcasted_iota(jnp.int32, (1, HW), 1)
        pcol = pcol_ref[...]
        hin = hin_ref[0].astype(jnp.float32)                      # (C, HW)

        # Grouped-conv channel duplication (output channel o reads input
        # channel o//2) done in-kernel via two tiny one-hot matmuls — the high
        # image is only DMA'd once from HBM.
        oc = jax.lax.broadcasted_iota(jnp.int32, (C, C), 0)
        ic = jax.lax.broadcasted_iota(jnp.int32, (C, C), 1)
        dq = oc - 2 * ic                                          # i == o//2
        q_sel = jnp.logical_or(dq == 0, dq == 1).astype(jnp.float32)
        dv = dq + C                                               # i == (o+C)//2
        v_sel = jnp.logical_or(dv == 0, dv == 1).astype(jnp.float32)
        q_src = jnp.dot(q_sel, hin, preferred_element_type=jnp.float32)
        v_src = jnp.dot(v_sel, hin, preferred_element_type=jnp.float32)

        # fused to_qkv_h: depthwise 3x3 over the full image -> f32 scratch
        qh_s[...] = _dw3x3_flat(q_src, wq9_ref[...], pos, pcol, H, W)
        vh_s[...] = _dw3x3_flat(v_src, wv9_ref[...], pos, pcol, H, W)

        # fused to_qkv_l: split K / V 1x1 convs -> f32 scratch
        low = lin_ref[0].astype(jnp.float32)                      # (C, hw)
        kl_s[...] = (jnp.dot(wkl_ref[...], low,
                             preferred_element_type=jnp.float32) + bkl_ref[...])
        vl = (jnp.dot(wvl_ref[...], low,
                      preferred_element_type=jnp.float32) + bvl_ref[...])
        vlT_s[...] = vl.T                                         # (hw, C)

        # zero the low-frequency f32 accumulator
        lacc_s[...] = jnp.zeros_like(lacc_s)

    # ---- attention for this query tile --------------------------------------
    off = pl.multiple_of(q * TQ, TQ)
    qh_t = qh_s[:, pl.ds(off, TQ)]                                # (C, TQ) f32

    # scores[p, k] = sum_c qh[c, p] * kl[c, k]  — dim-0 contraction, no .T
    scores = jax.lax.dot_general(
        qh_t, kl_s[...], (((0,), (0,)), ((), ())),
        preferred_element_type=jnp.float32)                       # (TQ, hw) f32

    m = jnp.max(scores, axis=-1, keepdims=True)
    e = jnp.exp(scores - m)                                       # unnormalized
    denom = jnp.sum(e, axis=-1, keepdims=True)
    inv = pl.reciprocal(denom, approx=True) * scale               # (TQ, 1)

    # low branch: fold inv*scale into the SMALL (C, TQ) operand (not the
    # (TQ, hw) probs), then accumulate v_h @ attn into the f32 accumulator.
    vh_t = vh_s[:, pl.ds(off, TQ)] * inv.T                        # (C, TQ)
    lacc_s[...] += jnp.dot(vh_t, e, preferred_element_type=jnp.float32)

    # high branch: e @ v_l^T -> (TQ, C), scale its rows by inv, store as
    # (C, TQ) (transposing the small result is far cheaper than attn).
    ht = jnp.dot(e, vlT_s[...], preferred_element_type=jnp.float32) * inv
    hout_ref[0, :, pl.ds(off, TQ)] = ht.T.astype(hout_ref.dtype)

    # ---- per-image finalize on the last query tile ---------------------------
    @pl.when(q == n_q - 1)
    def _finalize():
        pos = jax.lax.broadcasted_iota(jnp.int32, (1, HW), 1)
        pcol = pcol_ref[...]
        # out_l: fused 1x1 conv on the accumulated low output -> bf16 out block
        lout = (jnp.dot(wol_ref[...], lacc_s[...],
                        preferred_element_type=jnp.float32) + bol_ref[...])
        lout_ref[0] = lout.astype(lout_ref.dtype)
        # out_h: fused depthwise 3x3 on the assembled high output
        hi = hout_ref[0].astype(jnp.float32)
        hout_ref[0] = _dw3x3_flat(hi, woh9_ref[...], pos, pcol, H, W
                                  ).astype(hout_ref.dtype)


# ----------------------------------------------------------------------------
# Tile / VMEM heuristics
# ----------------------------------------------------------------------------
def _pick_tile(HW, hw):
    """hw-aware query tile: keep per-tile softmax transients to a few MiB,
    prefer >= 2 tiles, tile must divide HW and be a multiple of 128."""
    budget = 4 * 2**20
    cap = max(128, min(512, (budget // max(hw * 12, 1)) // 128 * 128))
    candidates = [t for t in (512, 384, 256, 128) if t <= cap]
    for require_multi in (True, False):
        for t in candidates:
            if HW % t == 0 and (not require_multi or HW // t >= 2):
                return t
    return HW


def _vmem_limit_bytes(C, HW, hw, TQ):
    """Shape-derived scoped-VMEM request (f32 scratch + double-buffered bf16
    blocks + per-tile transients, 25% headroom), clamped to [32, 100] MiB.
    Note: on v7x (64 MiB physical VMEM) the clamp keeps small problems safe;
    very large C*HW configs should additionally shrink TQ."""
    scratch = 4 * (2 * C * HW + 3 * C * hw)
    blocks = 2 * 2 * 2 * (C * HW + C * hw)
    transients = 4 * (2 * TQ * hw + 2 * C * HW)
    est = int((scratch + blocks + transients) * 1.25)
    return int(min(max(est, 32 * 2**20), 100 * 2**20))


def _attention_call(high_flat, low_flat, wq9, wv9, woh9,
                    w_kl, b_kl, w_vl, b_vl, w_ol, b_ol, pcol, H, W):
    B, C, HW = high_flat.shape
    hw = low_flat.shape[-1]
    TQ = _pick_tile(HW, hw)
    n_q = HW // TQ

    kernel = functools.partial(_mutifreq_kernel, H=H, W=W, TQ=TQ)

    grid_spec = pltpu.PrefetchScalarGridSpec(
        num_scalar_prefetch=0,
        grid=(B, n_q),
        in_specs=[
            pl.BlockSpec((1, C, HW), lambda b, q: (b, 0, 0)),   # high_f (bf16)
            pl.BlockSpec((1, C, hw), lambda b, q: (b, 0, 0)),   # low_f  (bf16)
            pl.BlockSpec((C, 9), lambda b, q: (0, 0)),          # wq9  (f32)
            pl.BlockSpec((C, 9), lambda b, q: (0, 0)),          # wv9  (f32)
            pl.BlockSpec((C, 9), lambda b, q: (0, 0)),          # woh9 (f32)
            pl.BlockSpec((C, C), lambda b, q: (0, 0)),          # w_kl (f32)
            pl.BlockSpec((C, 1), lambda b, q: (0, 0)),          # b_kl (f32)
            pl.BlockSpec((C, C), lambda b, q: (0, 0)),          # w_vl (f32)
            pl.BlockSpec((C, 1), lambda b, q: (0, 0)),          # b_vl (f32)
            pl.BlockSpec((C, C), lambda b, q: (0, 0)),          # w_ol (f32)
            pl.BlockSpec((C, 1), lambda b, q: (0, 0)),          # b_ol (f32)
            pl.BlockSpec((1, HW), lambda b, q: (0, 0)),         # pcol (i32)
        ],
        out_specs=[
            pl.BlockSpec((1, C, HW), lambda b, q: (b, 0, 0)),   # high out (bf16)
            pl.BlockSpec((1, C, hw), lambda b, q: (b, 0, 0)),   # low out  (bf16)
        ],
        scratch_shapes=[
            pltpu.VMEM((C, HW), jnp.float32),   # q_h
            pltpu.VMEM((C, HW), jnp.float32),   # v_h
            pltpu.VMEM((C, hw), jnp.float32),   # k_l
            pltpu.VMEM((hw, C), jnp.float32),   # v_l^T
            pltpu.VMEM((C, hw), jnp.float32),   # low accumulator (f32)
        ],
    )

    return pl.pallas_call(
        kernel,
        out_shape=(jax.ShapeDtypeStruct((B, C, HW), jnp.bfloat16),
                   jax.ShapeDtypeStruct((B, C, hw), jnp.bfloat16)),
        grid_spec=grid_spec,
        compiler_params=pltpu.CompilerParams(
            dimension_semantics=("parallel", "arbitrary"),
            vmem_limit_bytes=_vmem_limit_bytes(C, HW, hw, TQ)),
    )(high_flat, low_flat, wq9, wv9, woh9,
      w_kl, b_kl, w_vl, b_vl, w_ol, b_ol, pcol)


# ----------------------------------------------------------------------------
# Parameters (mirror the PyTorch module init: normal(0, sqrt(2/n)), zero bias)
# ----------------------------------------------------------------------------
def init_params(key, C):
    k1, k2, k3, k4 = jax.random.split(key, 4)
    p = {}
    p["w_qkv_h"] = (jax.random.normal(k1, (2 * C, 1, 3, 3), jnp.float32)
                    * math.sqrt(2.0 / (3 * 3 * 2 * C)))
    p["w_qkv_l"] = (jax.random.normal(k2, (2 * C, C, 1, 1), jnp.float32)
                    * math.sqrt(2.0 / (1 * 1 * 2 * C)))
    p["b_qkv_l"] = jnp.zeros((2 * C,), jnp.float32)
    p["w_out_h"] = (jax.random.normal(k3, (C, 1, 3, 3), jnp.float32)
                    * math.sqrt(2.0 / (3 * 3 * C)))
    p["w_out_l"] = (jax.random.normal(k4, (C, C, 1, 1), jnp.float32)
                    * math.sqrt(2.0 / (1 * 1 * C)))
    p["b_out_l"] = jnp.zeros((C,), jnp.float32)
    return p


# ----------------------------------------------------------------------------
# Pallas-backed forward
# ----------------------------------------------------------------------------
def muti_freq_forward(high_f, low_f, params):
    b, c, h, w = high_f.shape
    HW = h * w
    hw = (h // 2) * (w // 2)

    # bf16 HBM-facing activations (halved input DMA); all kernel math is f32.
    high_flat = high_f.reshape(b, c, HW).astype(jnp.bfloat16)
    low_flat = low_f.reshape(b, c, hw).astype(jnp.bfloat16)

    # Depthwise 3x3 taps, row-major (C, 9), f32 (VPU stencil weights).
    wq9 = params["w_qkv_h"][:c].reshape(c, 9).astype(jnp.float32)
    wv9 = params["w_qkv_h"][c:].reshape(c, 9).astype(jnp.float32)
    woh9 = params["w_out_h"].reshape(c, 9).astype(jnp.float32)

    # 1x1 conv weights split into K / V; kept f32 (no bf16 dots — see header).
    w_kl = params["w_qkv_l"][:c, :, 0, 0].astype(jnp.float32)
    w_vl = params["w_qkv_l"][c:, :, 0, 0].astype(jnp.float32)
    b_kl = params["b_qkv_l"][:c].reshape(c, 1).astype(jnp.float32)
    b_vl = params["b_qkv_l"][c:].reshape(c, 1).astype(jnp.float32)
    w_ol = params["w_out_l"][:, :, 0, 0].astype(jnp.float32)
    b_ol = params["b_out_l"].reshape(c, 1).astype(jnp.float32)

    # Column index of each flattened position (row masks come from an
    # in-kernel lane iota; passing pcol avoids in-kernel integer div/mod).
    pos = np.arange(HW, dtype=np.int32)
    pcol = jnp.asarray((pos % w).reshape(1, HW))

    high_flat_out, low_flat_out = _attention_call(
        high_flat, low_flat, wq9, wv9, woh9,
        w_kl, b_kl, w_vl, b_vl, w_ol, b_ol, pcol, h, w)

    return (high_flat_out.astype(jnp.float32).reshape(b, c, h, w),
            low_flat_out.astype(jnp.float32).reshape(b, c, h // 2, w // 2))


# ----------------------------------------------------------------------------
# Pure-JAX f32 reference replicating the PyTorch forward exactly
# ----------------------------------------------------------------------------
def _conv2d(x, w, b=None, groups=1, padding=0):
    out = jax.lax.conv_general_dilated(
        x, w, window_strides=(1, 1),
        padding=((padding, padding), (padding, padding)),
        feature_group_count=groups,
        dimension_numbers=("NCHW", "OIHW", "NCHW"))
    if b is not None:
        out = out + b[None, :, None, None]
    return out


def reference_forward(high_f, low_f, params):
    b, c, h, w = high_f.shape
    qkv_h = _conv2d(high_f, params["w_qkv_h"], groups=c, padding=1)
    q_h, v_h = qkv_h[:, :c], qkv_h[:, c:]
    qkv_l = _conv2d(low_f, params["w_qkv_l"], b=params["b_qkv_l"])
    k_l, v_l = qkv_l[:, :c], qkv_l[:, c:]

    q_h = q_h.reshape(b, c, h * w)
    v_h = v_h.reshape(b, c, h * w)
    k_l = k_l.reshape(b, c, (h // 2) * (w // 2))
    v_l = v_l.reshape(b, c, (h // 2) * (w // 2))

    attn = jnp.einsum("bcq,bck->bqk", q_h, k_l)
    attn = jax.nn.softmax(attn, axis=-1)
    attn = attn * (c ** (-0.5))

    low_out = jnp.einsum("bHh,bcH->bch", attn, v_h).reshape(b, c, h // 2, w // 2)
    low_out = _conv2d(low_out, params["w_out_l"], b=params["b_out_l"])

    high_out = jnp.einsum("bHh,bch->bcH", attn, v_l).reshape(b, c, h, w)
    high_out = _conv2d(high_out, params["w_out_h"], groups=c, padding=1)
    return high_out, low_out


if __name__ == "__main__":
    B, C, H, W = 2, 8, 16, 16
    key = jax.random.PRNGKey(0)
    kp, kh, kl = jax.random.split(key, 3)

    params = init_params(kp, C)
    high_f = jax.random.normal(kh, (B, C, H, W), jnp.float32)
    low_f = jax.random.normal(kl, (B, C, H // 2, W // 2), jnp.float32)

    high_out, low_out = jax.block_until_ready(
        jax.jit(muti_freq_forward)(high_f, low_f, params))
    ref_high, ref_low = jax.block_until_ready(
        jax.jit(reference_forward)(high_f, low_f, params))

    assert high_out.shape == (B, C, H, W)
    assert low_out.shape == (B, C, H // 2, W // 2)
    # bf16 input/output quantization + approx reciprocal vs. the f32 reference.
    assert jnp.allclose(high_out, ref_high, atol=3e-2, rtol=3e-2), (
        float(jnp.max(jnp.abs(high_out - ref_high))))
    assert jnp.allclose(low_out, ref_low, atol=3e-2, rtol=3e-2), (
        float(jnp.max(jnp.abs(low_out - ref_low))))

    print("KERNEL_OK")
</pallas_src>

<mosaic_0001>
module attributes {stable_mosaic.version = 11 : i64} {
  func.func @_mutifreq_kernel(%arg0: i32, %arg1: i32, %arg2: memref<1x8x256xbf16, #tpu.memory_space<vmem>>, %arg3: memref<1x8x64xbf16, #tpu.memory_space<vmem>>, %arg4: memref<8x9xf32, #tpu.memory_space<vmem>>, %arg5: memref<8x9xf32, #tpu.memory_space<vmem>>, %arg6: memref<8x9xf32, #tpu.memory_space<vmem>>, %arg7: memref<8x8xf32, #tpu.memory_space<vmem>>, %arg8: memref<8x1xf32, #tpu.memory_space<vmem>>, %arg9: memref<8x8xf32, #tpu.memory_space<vmem>>, %arg10: memref<8x1xf32, #tpu.memory_space<vmem>>, %arg11: memref<8x8xf32, #tpu.memory_space<vmem>>, %arg12: memref<8x1xf32, #tpu.memory_space<vmem>>, %arg13: memref<1x256xi32, #tpu.memory_space<vmem>>, %arg14: memref<1x8x256xbf16, #tpu.memory_space<vmem>>, %arg15: memref<1x8x64xbf16, #tpu.memory_space<vmem>>, %arg16: memref<8x256xf32, #tpu.memory_space<vmem>>, %arg17: memref<8x256xf32, #tpu.memory_space<vmem>>, %arg18: memref<8x64xf32, #tpu.memory_space<vmem>>, %arg19: memref<64x8xf32, #tpu.memory_space<vmem>>, %arg20: memref<8x64xf32, #tpu.memory_space<vmem>>) attributes {dimension_semantics = [#tpu.dimension_semantics<parallel>, #tpu.dimension_semantics<arbitrary>], iteration_bounds = array<i64: 2, 2>, scalar_prefetch = 0 : i64, scratch_operands = 5 : i64, tpu.core_type = #tpu.core_type<tc>, window_params = [{transform_indices = @transform_0, window_bounds = array<i64: 1, 8, 256>}, {transform_indices = @transform_1, window_bounds = array<i64: 1, 8, 64>}, {pipeline_mode = #tpu.pipeline_mode<synchronous>, transform_indices = @transform_2, window_bounds = array<i64: 8, 9>}, {pipeline_mode = #tpu.pipeline_mode<synchronous>, transform_indices = @transform_3, window_bounds = array<i64: 8, 9>}, {pipeline_mode = #tpu.pipeline_mode<synchronous>, transform_indices = @transform_4, window_bounds = array<i64: 8, 9>}, {pipeline_mode = #tpu.pipeline_mode<synchronous>, transform_indices = @transform_5, window_bounds = array<i64: 8, 8>}, {pipeline_mode = #tpu.pipeline_mode<synchronous>, transform_indices = @transform_6, window_bounds = array<i64: 8, 1>}, {pipeline_mode = #tpu.pipeline_mode<synchronous>, transform_indices = @transform_7, window_bounds = array<i64: 8, 8>}, {pipeline_mode = #tpu.pipeline_mode<synchronous>, transform_indices = @transform_8, window_bounds = array<i64: 8, 1>}, {pipeline_mode = #tpu.pipeline_mode<synchronous>, transform_indices = @transform_9, window_bounds = array<i64: 8, 8>}, {pipeline_mode = #tpu.pipeline_mode<synchronous>, transform_indices = @transform_10, window_bounds = array<i64: 8, 1>}, {pipeline_mode = #tpu.pipeline_mode<synchronous>, transform_indices = @transform_11, window_bounds = array<i64: 1, 256>}, {transform_indices = @transform_12, window_bounds = array<i64: 1, 8, 256>}, {transform_indices = @transform_13, window_bounds = array<i64: 1, 8, 64>}]} {
    %c0_i32 = arith.constant 0 : i32
    %0 = arith.cmpi eq, %arg1, %c0_i32 : i32
    %1 = arith.extui %0 : i1 to i32
    %c0_i32_0 = arith.constant 0 : i32
    %2 = arith.cmpi ne, %1, %c0_i32_0 : i32
    scf.if %2 {
      %41 = tpu.iota {dimensions = array<i32: 1>} : vector<1x256xi32>
      %c0_18 = arith.constant 0 : index
      %c0_19 = arith.constant 0 : index
      %42 = vector.load %arg13[%c0_18, %c0_19] : memref<1x256xi32, #tpu.memory_space<vmem>>, vector<1x256xi32>
      %c0_20 = arith.constant 0 : index
      %c0_21 = arith.constant 0 : index
      %c0_22 = arith.constant 0 : index
      %43 = vector.load %arg2[%c0_20, %c0_21, %c0_22] : memref<1x8x256xbf16, #tpu.memory_space<vmem>>, vector<1x8x256xbf16>
      %44 = vector.shape_cast %43 : vector<1x8x256xbf16> to vector<8x256xbf16>
      %45 = arith.extf %44 : vector<8x256xbf16> to vector<8x256xf32>
      %46 = tpu.iota {dimensions = array<i32: 0>} : vector<8x8xi32>
      %47 = tpu.iota {dimensions = array<i32: 1>} : vector<8x8xi32>
      %c2_i32 = arith.constant 2 : i32
      %48 = vector.broadcast %c2_i32 : i32 to vector<8x8xi32>
      %49 = arith.muli %48, %47 : vector<8x8xi32>
      %50 = arith.subi %46, %49 : vector<8x8xi32>
      %c0_i32_23 = arith.constant 0 : i32
      %51 = vector.broadcast %c0_i32_23 : i32 to vector<8x8xi32>
      %52 = arith.cmpi eq, %50, %51 : vector<8x8xi32>
      %c1_i32_24 = arith.constant 1 : i32
      %53 = vector.broadcast %c1_i32_24 : i32 to vector<8x8xi32>
      %54 = arith.cmpi eq, %50, %53 : vector<8x8xi32>
      %55 = arith.ori %52, %54 : vector<8x8xi1>
      %56 = arith.extui %55 : vector<8x8xi1> to vector<8x8xi32>
      %57 = arith.sitofp %56 : vector<8x8xi32> to vector<8x8xf32>
      %c8_i32 = arith.constant 8 : i32
      %58 = vector.broadcast %c8_i32 : i32 to vector<8x8xi32>
      %59 = arith.addi %50, %58 : vector<8x8xi32>
      %c0_i32_25 = arith.constant 0 : i32
      %60 = vector.broadcast %c0_i32_25 : i32 to vector<8x8xi32>
      %61 = arith.cmpi eq, %59, %60 : vector<8x8xi32>
      %c1_i32_26 = arith.constant 1 : i32
      %62 = vector.broadcast %c1_i32_26 : i32 to vector<8x8xi32>
      %63 = arith.cmpi eq, %59, %62 : vector<8x8xi32>
      %64 = arith.ori %61, %63 : vector<8x8xi1>
      %65 = arith.extui %64 : vector<8x8xi1> to vector<8x8xi32>
      %66 = arith.sitofp %65 : vector<8x8xi32> to vector<8x8xf32>
      %cst_27 = arith.constant dense<0.000000e+00> : vector<8x256xf32>
      %67 = tpu.matmul %57, %45, %cst_27 {dimension_numbers = #tpu.dot_dimension_numbers<[1], [0], [0], [1], [0, 0, 1, 1], [], []>} : vector<8x8xf32>, vector<8x256xf32>, vector<8x256xf32> -> vector<8x256xf32>
      %cst_28 = arith.constant dense<0.000000e+00> : vector<8x256xf32>
      %68 = tpu.matmul %66, %45, %cst_28 {dimension_numbers = #tpu.dot_dimension_numbers<[1], [0], [0], [1], [0, 0, 1, 1], [], []>} : vector<8x8xf32>, vector<8x256xf32>, vector<8x256xf32> -> vector<8x256xf32>
      %c0_29 = arith.constant 0 : index
      %c0_30 = arith.constant 0 : index
      %69 = vector.load %arg4[%c0_29, %c0_30] : memref<8x9xf32, #tpu.memory_space<vmem>>, vector<8x9xf32>
      %70 = vector.extract_strided_slice %69 {offsets = [0, 4], sizes = [8, 1], strides = [1, 1]} : vector<8x9xf32> to vector<8x1xf32>
      %71 = vector.broadcast %70 : vector<8x1xf32> to vector<8x256xf32>
      %72 = arith.mulf %67, %71 : vector<8x256xf32>
      %73 = vector.extract_strided_slice %67 {offsets = [0, 239], sizes = [8, 17], strides = [1, 1]} : vector<8x256xf32> to vector<8x17xf32>
      %74 = vector.extract_strided_slice %67 {offsets = [0, 0], sizes = [8, 239], strides = [1, 1]} : vector<8x256xf32> to vector<8x239xf32>
      %75 = tpu.concatenate %73, %74 in 1 : vector<8x17xf32>, vector<8x239xf32> -> vector<8x256xf32>
      %c16_i32 = arith.constant 16 : i32
      %76 = vector.broadcast %c16_i32 : i32 to vector<1x256xi32>
      %77 = arith.cmpi sge, %41, %76 : vector<1x256xi32>
      %c1_i32_31 = arith.constant 1 : i32
      %78 = vector.broadcast %c1_i32_31 : i32 to vector<1x256xi32>
      %79 = arith.cmpi sge, %42, %78 : vector<1x256xi32>
      %80 = arith.andi %77, %79 : vector<1x256xi1>
      %cst_32 = arith.constant 0.000000e+00 : f32
      %81 = vector.shape_cast %80 : vector<1x256xi1> to vector<1x256xi1>
      %82 = vector.broadcast %81 : vector<1x256xi1> to vector<8x256xi1>
      %83 = vector.broadcast %cst_32 : f32 to vector<8x256xf32>
      %84 = arith.select %82, %75, %83 : vector<8x256xi1>, vector<8x256xf32>
      %85 = vector.extract_strided_slice %69 {offsets = [0, 0], sizes = [8, 1], strides = [1, 1]} : vector<8x9xf32> to vector<8x1xf32>
      %86 = vector.broadcast %85 : vector<8x1xf32> to vector<8x256xf32>
      %87 = arith.mulf %84, %86 : vector<8x256xf32>
      %88 = arith.addf %72, %87 : vector<8x256xf32>
      %89 = vector.extract_strided_slice %67 {offsets = [0, 240], sizes = [8, 16], strides = [1, 1]} : vector<8x256xf32> to vector<8x16xf32>
      %90 = vector.extract_strided_slice %67 {offsets = [0, 0], sizes = [8, 240], strides = [1, 1]} : vector<8x256xf32> to vector<8x240xf32>
      %91 = tpu.concatenate %89, %90 in 1 : vector<8x16xf32>, vector<8x240xf32> -> vector<8x256xf32>
      %c16_i32_33 = arith.constant 16 : i32
      %92 = vector.broadcast %c16_i32_33 : i32 to vector<1x256xi32>
      %93 = arith.cmpi sge, %41, %92 : vector<1x256xi32>
      %cst_34 = arith.constant 0.000000e+00 : f32
      %94 = vector.shape_cast %93 : vector<1x256xi1> to vector<1x256xi1>
      %95 = vector.broadcast %94 : vector<1x256xi1> to vector<8x256xi1>
      %96 = vector.broadcast %cst_34 : f32 to vector<8x256xf32>
      %97 = arith.select %95, %91, %96 : vector<8x256xi1>, vector<8x256xf32>
      %98 = vector.extract_strided_slice %69 {offsets = [0, 1], sizes = [8, 1], strides = [1, 1]} : vector<8x9xf32> to vector<8x1xf32>
      %99 = vector.broadcast %98 : vector<8x1xf32> to vector<8x256xf32>
      %100 = arith.mulf %97, %99 : vector<8x256xf32>
      %101 = arith.addf %88, %100 : vector<8x256xf32>
      %102 = vector.extract_strided_slice %67 {offsets = [0, 241], sizes = [8, 15], strides = [1, 1]} : vector<8x256xf32> to vector<8x15xf32>
      %103 = vector.extract_strided_slice %67 {offsets = [0, 0], sizes = [8, 241], strides = [1, 1]} : vector<8x256xf32> to vector<8x241xf32>
      %104 = tpu.concatenate %102, %103 in 1 : vector<8x15xf32>, vector<8x241xf32> -> vector<8x256xf32>
      %c16_i32_35 = arith.constant 16 : i32
      %105 = vector.broadcast %c16_i32_35 : i32 to vector<1x256xi32>
      %106 = arith.cmpi sge, %41, %105 : vector<1x256xi32>
      %c14_i32 = arith.constant 14 : i32
      %107 = vector.broadcast %c14_i32 : i32 to vector<1x256xi32>
      %108 = arith.cmpi sle, %42, %107 : vector<1x256xi32>
      %109 = arith.andi %106, %108 : vector<1x256xi1>
      %cst_36 = arith.constant 0.000000e+00 : f32
      %110 = vector.shape_cast %109 : vector<1x256xi1> to vector<1x256xi1>
      %111 = vector.broadcast %110 : vector<1x256xi1> to vector<8x256xi1>
      %112 = vector.broadcast %cst_36 : f32 to vector<8x256xf32>
      %113 = arith.select %111, %104, %112 : vector<8x256xi1>, vector<8x256xf32>
      %114 = vector.extract_strided_slice %69 {offsets = [0, 2], sizes = [8, 1], strides = [1, 1]} : vector<8x9xf32> to vector<8x1xf32>
      %115 = vector.broadcast %114 : vector<8x1xf32> to vector<8x256xf32>
      %116 = arith.mulf %113, %115 : vector<8x256xf32>
      %117 = arith.addf %101, %116 : vector<8x256xf32>
      %118 = vector.extract_strided_slice %67 {offsets = [0, 255], sizes = [8, 1], strides = [1, 1]} : vector<8x256xf32> to vector<8x1xf32>
      %119 = vector.extract_strided_slice %67 {offsets = [0, 0], sizes = [8, 255], strides = [1, 1]} : vector<8x256xf32> to vector<8x255xf32>
      %120 = tpu.concatenate %118, %119 in 1 : vector<8x1xf32>, vector<8x255xf32> -> vector<8x256xf32>
      %c1_i32_37 = arith.constant 1 : i32
      %121 = vector.broadcast %c1_i32_37 : i32 to vector<1x256xi32>
      %122 = arith.cmpi sge, %42, %121 : vector<1x256xi32>
      %cst_38 = arith.constant 0.000000e+00 : f32
      %123 = vector.shape_cast %122 : vector<1x256xi1> to vector<1x256xi1>
      %124 = vector.broadcast %123 : vector<1x256xi1> to vector<8x256xi1>
      %125 = vector.broadcast %cst_38 : f32 to vector<8x256xf32>
      %126 = arith.select %124, %120, %125 : vector<8x256xi1>, vector<8x256xf32>
      %127 = vector.extract_strided_slice %69 {offsets = [0, 3], sizes = [8, 1], strides = [1, 1]} : vector<8x9xf32> to vector<8x1xf32>
      %128 = vector.broadcast %127 : vector<8x1xf32> to vector<8x256xf32>
      %129 = arith.mulf %126, %128 : vector<8x256xf32>
      %130 = arith.addf %117, %129 : vector<8x256xf32>
      %131 = vector.extract_strided_slice %67 {offsets = [0, 1], sizes = [8, 255], strides = [1, 1]} : vector<8x256xf32> to vector<8x255xf32>
      %132 = vector.extract_strided_slice %67 {offsets = [0, 0], sizes = [8, 1], strides = [1, 1]} : vector<8x256xf32> to vector<8x1xf32>
      %133 = tpu.concatenate %131, %132 in 1 : vector<8x255xf32>, vector<8x1xf32> -> vector<8x256xf32>
      %c14_i32_39 = arith.constant 14 : i32
      %134 = vector.broadcast %c14_i32_39 : i32 to vector<1x256xi32>
      %135 = arith.cmpi sle, %42, %134 : vector<1x256xi32>
      %cst_40 = arith.constant 0.000000e+00 : f32
      %136 = vector.shape_cast %135 : vector<1x256xi1> to vector<1x256xi1>
      %137 = vector.broadcast %136 : vector<1x256xi1> to vector<8x256xi1>
      %138 = vector.broadcast %cst_40 : f32 to vector<8x256xf32>
      %139 = arith.select %137, %133, %138 : vector<8x256xi1>, vector<8x256xf32>
      %140 = vector.extract_strided_slice %69 {offsets = [0, 5], sizes = [8, 1], strides = [1, 1]} : vector<8x9xf32> to vector<8x1xf32>
      %141 = vector.broadcast %140 : vector<8x1xf32> to vector<8x256xf32>
      %142 = arith.mulf %139, %141 : vector<8x256xf32>
      %143 = arith.addf %130, %142 : vector<8x256xf32>
      %144 = vector.extract_strided_slice %67 {offsets = [0, 15], sizes = [8, 241], strides = [1, 1]} : vector<8x256xf32> to vector<8x241xf32>
      %145 = vector.extract_strided_slice %67 {offsets = [0, 0], sizes = [8, 15], strides = [1, 1]} : vector<8x256xf32> to vector<8x15xf32>
      %146 = tpu.concatenate %144, %145 in 1 : vector<8x241xf32>, vector<8x15xf32> -> vector<8x256xf32>
      %c240_i32 = arith.constant 240 : i32
      %147 = vector.broadcast %c240_i32 : i32 to vector<1x256xi32>
      %148 = arith.cmpi slt, %41, %147 : vector<1x256xi32>
      %c1_i32_41 = arith.constant 1 : i32
      %149 = vector.broadcast %c1_i32_41 : i32 to vector<1x256xi32>
      %150 = arith.cmpi sge, %42, %149 : vector<1x256xi32>
      %151 = arith.andi %148, %150 : vector<1x256xi1>
      %cst_42 = arith.constant 0.000000e+00 : f32
      %152 = vector.shape_cast %151 : vector<1x256xi1> to vector<1x256xi1>
      %153 = vector.broadcast %152 : vector<1x256xi1> to vector<8x256xi1>
      %154 = vector.broadcast %cst_42 : f32 to vector<8x256xf32>
      %155 = arith.select %153, %146, %154 : vector<8x256xi1>, vector<8x256xf32>
      %156 = vector.extract_strided_slice %69 {offsets = [0, 6], sizes = [8, 1], strides = [1, 1]} : vector<8x9xf32> to vector<8x1xf32>
      %157 = vector.broadcast %156 : vector<8x1xf32> to vector<8x256xf32>
      %158 = arith.mulf %155, %157 : vector<8x256xf32>
      %159 = arith.addf %143, %158 : vector<8x256xf32>
      %160 = vector.extract_strided_slice %67 {offsets = [0, 16], sizes = [8, 240], strides = [1, 1]} : vector<8x256xf32> to vector<8x240xf32>
      %161 = vector.extract_strided_slice %67 {offsets = [0, 0], sizes = [8, 16], strides = [1, 1]} : vector<8x256xf32> to vector<8x16xf32>
      %162 = tpu.concatenate %160, %161 in 1 : vector<8x240xf32>, vector<8x16xf32> -> vector<8x256xf32>
      %c240_i32_43 = arith.constant 240 : i32
      %163 = vector.broadcast %c240_i32_43 : i32 to vector<1x256xi32>
      %164 = arith.cmpi slt, %41, %163 : vector<1x256xi32>
      %cst_44 = arith.constant 0.000000e+00 : f32
      %165 = vector.shape_cast %164 : vector<1x256xi1> to vector<1x256xi1>
      %166 = vector.broadcast %165 : vector<1x256xi1> to vector<8x256xi1>
      %167 = vector.broadcast %cst_44 : f32 to vector<8x256xf32>
      %168 = arith.select %166, %162, %167 : vector<8x256xi1>, vector<8x256xf32>
      %169 = vector.extract_strided_slice %69 {offsets = [0, 7], sizes = [8, 1], strides = [1, 1]} : vector<8x9xf32> to vector<8x1xf32>
      %170 = vector.broadcast %169 : vector<8x1xf32> to vector<8x256xf32>
      %171 = arith.mulf %168, %170 : vector<8x256xf32>
      %172 = arith.addf %159, %171 : vector<8x256xf32>
      %173 = vector.extract_strided_slice %67 {offsets = [0, 17], sizes = [8, 239], strides = [1, 1]} : vector<8x256xf32> to vector<8x239xf32>
      %174 = vector.extract_strided_slice %67 {offsets = [0, 0], sizes = [8, 17], strides = [1, 1]} : vector<8x256xf32> to vector<8x17xf32>
      %175 = tpu.concatenate %173, %174 in 1 : vector<8x239xf32>, vector<8x17xf32> -> vector<8x256xf32>
      %c240_i32_45 = arith.constant 240 : i32
      %176 = vector.broadcast %c240_i32_45 : i32 to vector<1x256xi32>
      %177 = arith.cmpi slt, %41, %176 : vector<1x256xi32>
      %c14_i32_46 = arith.constant 14 : i32
      %178 = vector.broadcast %c14_i32_46 : i32 to vector<1x256xi32>
      %179 = arith.cmpi sle, %42, %178 : vector<1x256xi32>
      %180 = arith.andi %177, %179 : vector<1x256xi1>
      %cst_47 = arith.constant 0.000000e+00 : f32
      %181 = vector.shape_cast %180 : vector<1x256xi1> to vector<1x256xi1>
      %182 = vector.broadcast %181 : vector<1x256xi1> to vector<8x256xi1>
      %183 = vector.broadcast %cst_47 : f32 to vector<8x256xf32>
      %184 = arith.select %182, %175, %183 : vector<8x256xi1>, vector<8x256xf32>
      %185 = vector.extract_strided_slice %69 {offsets = [0, 8], sizes = [8, 1], strides = [1, 1]} : vector<8x9xf32> to vector<8x1xf32>
      %186 = vector.broadcast %185 : vector<8x1xf32> to vector<8x256xf32>
      %187 = arith.mulf %184, %186 : vector<8x256xf32>
      %188 = arith.addf %172, %187 : vector<8x256xf32>
      %c0_48 = arith.constant 0 : index
      %c0_49 = arith.constant 0 : index
      %189 = vector.load %arg16[%c0_48, %c0_49] : memref<8x256xf32, #tpu.memory_space<vmem>>, vector<8x256xf32>
      tpu.vector_store %arg16[%c0_48, %c0_49], %188 {strides = array<i32>} : memref<8x256xf32, #tpu.memory_space<vmem>>, vector<8x256xf32>,
      %c0_50 = arith.constant 0 : index
      %c0_51 = arith.constant 0 : index
      %190 = vector.load %arg5[%c0_50, %c0_51] : memref<8x9xf32, #tpu.memory_space<vmem>>, vector<8x9xf32>
      %191 = vector.extract_strided_slice %190 {offsets = [0, 4], sizes = [8, 1], strides = [1, 1]} : vector<8x9xf32> to vector<8x1xf32>
      %192 = vector.broadcast %191 : vector<8x1xf32> to vector<8x256xf32>
      %193 = arith.mulf %68, %192 : vector<8x256xf32>
      %194 = vector.extract_strided_slice %68 {offsets = [0, 239], sizes = [8, 17], strides = [1, 1]} : vector<8x256xf32> to vector<8x17xf32>
      %195 = vector.extract_strided_slice %68 {offsets = [0, 0], sizes = [8, 239], strides = [1, 1]} : vector<8x256xf32> to vector<8x239xf32>
      %196 = tpu.concatenate %194, %195 in 1 : vector<8x17xf32>, vector<8x239xf32> -> vector<8x256xf32>
      %c16_i32_52 = arith.constant 16 : i32
      %197 = vector.broadcast %c16_i32_52 : i32 to vector<1x256xi32>
      %198 = arith.cmpi sge, %41, %197 : vector<1x256xi32>
      %c1_i32_53 = arith.constant 1 : i32
      %199 = vector.broadcast %c1_i32_53 : i32 to vector<1x256xi32>
      %200 = arith.cmpi sge, %42, %199 : vector<1x256xi32>
      %201 = arith.andi %198, %200 : vector<1x256xi1>
      %cst_54 = arith.constant 0.000000e+00 : f32
      %202 = vector.shape_cast %201 : vector<1x256xi1> to vector<1x256xi1>
      %203 = vector.broadcast %202 : vector<1x256xi1> to vector<8x256xi1>
      %204 = vector.broadcast %cst_54 : f32 to vector<8x256xf32>
      %205 = arith.select %203, %196, %204 : vector<8x256xi1>, vector<8x256xf32>
      %206 = vector.extract_strided_slice %190 {offsets = [0, 0], sizes = [8, 1], strides = [1, 1]} : vector<8x9xf32> to vector<8x1xf32>
      %207 = vector.broadcast %206 : vector<8x1xf32> to vector<8x256xf32>
      %208 = arith.mulf %205, %207 : vector<8x256xf32>
      %209 = arith.addf %193, %208 : vector<8x256xf32>
      %210 = vector.extract_strided_slice %68 {offsets = [0, 240], sizes = [8, 16], strides = [1, 1]} : vector<8x256xf32> to vector<8x16xf32>
      %211 = vector.extract_strided_slice %68 {offsets = [0, 0], sizes = [8, 240], strides = [1, 1]} : vector<8x256xf32> to vector<8x240xf32>
      %212 = tpu.concatenate %210, %211 in 1 : vector<8x16xf32>, vector<8x240xf32> -> vector<8x256xf32>
      %c16_i32_55 = arith.constant 16 : i32
      %213 = vector.broadcast %c16_i32_55 : i32 to vector<1x256xi32>
      %214 = arith.cmpi sge, %41, %213 : vector<1x256xi32>
      %cst_56 = arith.constant 0.000000e+00 : f32
      %215 = vector.shape_cast %214 : vector<1x256xi1> to vector<1x256xi1>
      %216 = vector.broadcast %215 : vector<1x256xi1> to vector<8x256xi1>
      %217 = vector.broadcast %cst_56 : f32 to vector<8x256xf32>
      %218 = arith.select %216, %212, %217 : vector<8x256xi1>, vector<8x256xf32>
      %219 = vector.extract_strided_slice %190 {offsets = [0, 1], sizes = [8, 1], strides = [1, 1]} : vector<8x9xf32> to vector<8x1xf32>
      %220 = vector.broadcast %219 : vector<8x1xf32> to vector<8x256xf32>
      %221 = arith.mulf %218, %220 : vector<8x256xf32>
      %222 = arith.addf %209, %221 : vector<8x256xf32>
      %223 = vector.extract_strided_slice %68 {offsets = [0, 241], sizes = [8, 15], strides = [1, 1]} : vector<8x256xf32> to vector<8x15xf32>
      %224 = vector.extract_strided_slice %68 {offsets = [0, 0], sizes = [8, 241], strides = [1, 1]} : vector<8x256xf32> to vector<8x241xf32>
      %225 = tpu.concatenate %223, %224 in 1 : vector<8x15xf32>, vector<8x241xf32> -> vector<8x256xf32>
      %c16_i32_57 = arith.constant 16 : i32
      %226 = vector.broadcast %c16_i32_57 : i32 to vector<1x256xi32>
      %227 = arith.cmpi sge, %41, %226 : vector<1x256xi32>
      %c14_i32_58 = arith.constant 14 : i32
      %228 = vector.broadcast %c14_i32_58 : i32 to vector<1x256xi32>
      %229 = arith.cmpi sle, %42, %228 : vector<1x256xi32>
      %230 = arith.andi %227, %229 : vector<1x256xi1>
      %cst_59 = arith.constant 0.000000e+00 : f32
      %231 = vector.shape_cast %230 : vector<1x256xi1> to vector<1x256xi1>
      %232 = vector.broadcast %231 : vector<1x256xi1> to vector<8x256xi1>
      %233 = vector.broadcast %cst_59 : f32 to vector<8x256xf32>
      %234 = arith.select %232, %225, %233 : vector<8x256xi1>, vector<8x256xf32>
      %235 = vector.extract_strided_slice %190 {offsets = [0, 2], sizes = [8, 1], strides = [1, 1]} : vector<8x9xf32> to vector<8x1xf32>
      %236 = vector.broadcast %235 : vector<8x1xf32> to vector<8x256xf32>
      %237 = arith.mulf %234, %236 : vector<8x256xf32>
      %238 = arith.addf %222, %237 : vector<8x256xf32>
      %239 = vector.extract_strided_slice %68 {offsets = [0, 255], sizes = [8, 1], strides = [1, 1]} : vector<8x256xf32> to vector<8x1xf32>
      %240 = vector.extract_strided_slice %68 {offsets = [0, 0], sizes = [8, 255], strides = [1, 1]} : vector<8x256xf32> to vector<8x255xf32>
      %241 = tpu.concatenate %239, %240 in 1 : vector<8x1xf32>, vector<8x255xf32> -> vector<8x256xf32>
      %c1_i32_60 = arith.constant 1 : i32
      %242 = vector.broadcast %c1_i32_60 : i32 to vector<1x256xi32>
      %243 = arith.cmpi sge, %42, %242 : vector<1x256xi32>
      %cst_61 = arith.constant 0.000000e+00 : f32
      %244 = vector.shape_cast %243 : vector<1x256xi1> to vector<1x256xi1>
      %245 = vector.broadcast %244 : vector<1x256xi1> to vector<8x256xi1>
      %246 = vector.broadcast %cst_61 : f32 to vector<8x256xf32>
      %247 = arith.select %245, %241, %246 : vector<8x256xi1>, vector<8x256xf32>
      %248 = vector.extract_strided_slice %190 {offsets = [0, 3], sizes = [8, 1], strides = [1, 1]} : vector<8x9xf32> to vector<8x1xf32>
      %249 = vector.broadcast %248 : vector<8x1xf32> to vector<8x256xf32>
      %250 = arith.mulf %247, %249 : vector<8x256xf32>
      %251 = arith.addf %238, %250 : vector<8x256xf32>
      %252 = vector.extract_strided_slice %68 {offsets = [0, 1], sizes = [8, 255], strides = [1, 1]} : vector<8x256xf32> to vector<8x255xf32>
      %253 = vector.extract_strided_slice %68 {offsets = [0, 0], sizes = [8, 1], strides = [1, 1]} : vector<8x256xf32> to vector<8x1xf32>
      %254 = tpu.concatenate %252, %253 in 1 : vector<8x255xf32>, vector<8x1xf32> -> vector<8x256xf32>
      %c14_i32_62 = arith.constant 14 : i32
      %255 = vector.broadcast %c14_i32_62 : i32 to vector<1x256xi32>
      %256 = arith.cmpi sle, %42, %255 : vector<1x256xi32>
      %cst_63 = arith.constant 0.000000e+00 : f32
      %257 = vector.shape_cast %256 : vector<1x256xi1> to vector<1x256xi1>
      %258 = vector.broadcast %257 : vector<1x256xi1> to vector<8x256xi1>
      %259 = vector.broadcast %cst_63 : f32 to vector<8x256xf32>
      %260 = arith.select %258, %254, %259 : vector<8x256xi1>, vector<8x256xf32>
      %261 = vector.extract_strided_slice %190 {offsets = [0, 5], sizes = [8, 1], strides = [1, 1]} : vector<8x9xf32> to vector<8x1xf32>
      %262 = vector.broadcast %261 : vector<8x1xf32> to vector<8x256xf32>
      %263 = arith.mulf %260, %262 : vector<8x256xf32>
      %264 = arith.addf %251, %263 : vector<8x256xf32>
      %265 = vector.extract_strided_slice %68 {offsets = [0, 15], sizes = [8, 241], strides = [1, 1]} : vector<8x256xf32> to vector<8x241xf32>
      %266 = vector.extract_strided_slice %68 {offsets = [0, 0], sizes = [8, 15], strides = [1, 1]} : vector<8x256xf32> to vector<8x15xf32>
      %267 = tpu.concatenate %265, %266 in 1 : vector<8x241xf32>, vector<8x15xf32> -> vector<8x256xf32>
      %c240_i32_64 = arith.constant 240 : i32
      %268 = vector.broadcast %c240_i32_64 : i32 to vector<1x256xi32>
      %269 = arith.cmpi slt, %41, %268 : vector<1x256xi32>
      %c1_i32_65 = arith.constant 1 : i32
      %270 = vector.broadcast %c1_i32_65 : i32 to vector<1x256xi32>
      %271 = arith.cmpi sge, %42, %270 : vector<1x256xi32>
      %272 = arith.andi %269, %271 : vector<1x256xi1>
      %cst_66 = arith.constant 0.000000e+00 : f32
      %273 = vector.shape_cast %272 : vector<1x256xi1> to vector<1x256xi1>
      %274 = vector.broadcast %273 : vector<1x256xi1> to vector<8x256xi1>
      %275 = vector.broadcast %cst_66 : f32 to vector<8x256xf32>
      %276 = arith.select %274, %267, %275 : vector<8x256xi1>, vector<8x256xf32>
      %277 = vector.extract_strided_slice %190 {offsets = [0, 6], sizes = [8, 1], strides = [1, 1]} : vector<8x9xf32> to vector<8x1xf32>
      %278 = vector.broadcast %277 : vector<8x1xf32> to vector<8x256xf32>
      %279 = arith.mulf %276, %278 : vector<8x256xf32>
      %280 = arith.addf %264, %279 : vector<8x256xf32>
      %281 = vector.extract_strided_slice %68 {offsets = [0, 16], sizes = [8, 240], strides = [1, 1]} : vector<8x256xf32> to vector<8x240xf32>
      %282 = vector.extract_strided_slice %68 {offsets = [0, 0], sizes = [8, 16], strides = [1, 1]} : vector<8x256xf32> to vector<8x16xf32>
      %283 = tpu.concatenate %281, %282 in 1 : vector<8x240xf32>, vector<8x16xf32> -> vector<8x256xf32>
      %c240_i32_67 = arith.constant 240 : i32
      %284 = vector.broadcast %c240_i32_67 : i32 to vector<1x256xi32>
      %285 = arith.cmpi slt, %41, %284 : vector<1x256xi32>
      %cst_68 = arith.constant 0.000000e+00 : f32
      %286 = vector.shape_cast %285 : vector<1x256xi1> to vector<1x256xi1>
      %287 = vector.broadcast %286 : vector<1x256xi1> to vector<8x256xi1>
      %288 = vector.broadcast %cst_68 : f32 to vector<8x256xf32>
      %289 = arith.select %287, %283, %288 : vector<8x256xi1>, vector<8x256xf32>
      %290 = vector.extract_strided_slice %190 {offsets = [0, 7], sizes = [8, 1], strides = [1, 1]} : vector<8x9xf32> to vector<8x1xf32>
      %291 = vector.broadcast %290 : vector<8x1xf32> to vector<8x256xf32>
      %292 = arith.mulf %289, %291 : vector<8x256xf32>
      %293 = arith.addf %280, %292 : vector<8x256xf32>
      %294 = vector.extract_strided_slice %68 {offsets = [0, 17], sizes = [8, 239], strides = [1, 1]} : vector<8x256xf32> to vector<8x239xf32>
      %295 = vector.extract_strided_slice %68 {offsets = [0, 0], sizes = [8, 17], strides = [1, 1]} : vector<8x256xf32> to vector<8x17xf32>
      %296 = tpu.concatenate %294, %295 in 1 : vector<8x239xf32>, vector<8x17xf32> -> vector<8x256xf32>
      %c240_i32_69 = arith.constant 240 : i32
      %297 = vector.broadcast %c240_i32_69 : i32 to vector<1x256xi32>
      %298 = arith.cmpi slt, %41, %297 : vector<1x256xi32>
      %c14_i32_70 = arith.constant 14 : i32
      %299 = vector.broadcast %c14_i32_70 : i32 to vector<1x256xi32>
      %300 = arith.cmpi sle, %42, %299 : vector<1x256xi32>
      %301 = arith.andi %298, %300 : vector<1x256xi1>
      %cst_71 = arith.constant 0.000000e+00 : f32
      %302 = vector.shape_cast %301 : vector<1x256xi1> to vector<1x256xi1>
      %303 = vector.broadcast %302 : vector<1x256xi1> to vector<8x256xi1>
      %304 = vector.broadcast %cst_71 : f32 to vector<8x256xf32>
      %305 = arith.select %303, %296, %304 : vector<8x256xi1>, vector<8x256xf32>
      %306 = vector.extract_strided_slice %190 {offsets = [0, 8], sizes = [8, 1], strides = [1, 1]} : vector<8x9xf32> to vector<8x1xf32>
      %307 = vector.broadcast %306 : vector<8x1xf32> to vector<8x256xf32>
      %308 = arith.mulf %305, %307 : vector<8x256xf32>
      %309 = arith.addf %293, %308 : vector<8x256xf32>
      %c0_72 = arith.constant 0 : index
      %c0_73 = arith.constant 0 : index
      %310 = vector.load %arg17[%c0_72, %c0_73] : memref<8x256xf32, #tpu.memory_space<vmem>>, vector<8x256xf32>
      tpu.vector_store %arg17[%c0_72, %c0_73], %309 {strides = array<i32>} : memref<8x256xf32, #tpu.memory_space<vmem>>, vector<8x256xf32>,
      %c0_74 = arith.constant 0 : index
      %c0_75 = arith.constant 0 : index
      %c0_76 = arith.constant 0 : index
      %311 = vector.load %arg3[%c0_74, %c0_75, %c0_76] : memref<1x8x64xbf16, #tpu.memory_space<vmem>>, vector<1x8x64xbf16>
      %312 = vector.shape_cast %311 : vector<1x8x64xbf16> to vector<8x64xbf16>
      %313 = arith.extf %312 : vector<8x64xbf16> to vector<8x64xf32>
      %c0_77 = arith.constant 0 : index
      %c0_78 = arith.constant 0 : index
      %314 = vector.load %arg7[%c0_77, %c0_78] : memref<8x8xf32, #tpu.memory_space<vmem>>, vector<8x8xf32>
      %cst_79 = arith.constant dense<0.000000e+00> : vector<8x64xf32>
      %315 = tpu.matmul %314, %313, %cst_79 {dimension_numbers = #tpu.dot_dimension_numbers<[1], [0], [0], [1], [0, 0, 1, 1], [], []>} : vector<8x8xf32>, vector<8x64xf32>, vector<8x64xf32> -> vector<8x64xf32>
      %c0_80 = arith.constant 0 : index
      %c0_81 = arith.constant 0 : index
      %316 = vector.load %arg8[%c0_80, %c0_81] : memref<8x1xf32, #tpu.memory_space<vmem>>, vector<8x1xf32>
      %317 = vector.broadcast %316 : vector<8x1xf32> to vector<8x64xf32>
      %318 = arith.addf %315, %317 : vector<8x64xf32>
      %c0_82 = arith.constant 0 : index
      %c0_83 = arith.constant 0 : index
      %319 = vector.load %arg18[%c0_82, %c0_83] : memref<8x64xf32, #tpu.memory_space<vmem>>, vector<8x64xf32>
      tpu.vector_store %arg18[%c0_82, %c0_83], %318 {strides = array<i32>} : memref<8x64xf32, #tpu.memory_space<vmem>>, vector<8x64xf32>,
      %c0_84 = arith.constant 0 : index
      %c0_85 = arith.constant 0 : index
      %320 = vector.load %arg9[%c0_84, %c0_85] : memref<8x8xf32, #tpu.memory_space<vmem>>, vector<8x8xf32>
      %cst_86 = arith.constant dense<0.000000e+00> : vector<8x64xf32>
      %321 = tpu.matmul %320, %313, %cst_86 {dimension_numbers = #tpu.dot_dimension_numbers<[1], [0], [0], [1], [0, 0, 1, 1], [], []>} : vector<8x8xf32>, vector<8x64xf32>, vector<8x64xf32> -> vector<8x64xf32>
      %c0_87 = arith.constant 0 : index
      %c0_88 = arith.constant 0 : index
      %322 = vector.load %arg10[%c0_87, %c0_88] : memref<8x1xf32, #tpu.memory_space<vmem>>, vector<8x1xf32>
      %323 = vector.broadcast %322 : vector<8x1xf32> to vector<8x64xf32>
      %324 = arith.addf %321, %323 : vector<8x64xf32>
      %325 = tpu.transpose %324, [1, 0] : vector<8x64xf32> -> vector<64x8xf32>
      %c0_89 = arith.constant 0 : index
      %c0_90 = arith.constant 0 : index
      %326 = vector.load %arg19[%c0_89, %c0_90] : memref<64x8xf32, #tpu.memory_space<vmem>>, vector<64x8xf32>
      tpu.vector_store %arg19[%c0_89, %c0_90], %325 {strides = array<i32>} : memref<64x8xf32, #tpu.memory_space<vmem>>, vector<64x8xf32>,
      %cst_91 = arith.constant 0.000000e+00 : f32
      %327 = vector.broadcast %cst_91 : f32 to vector<8x64xf32>
      %c0_92 = arith.constant 0 : index
      %c0_93 = arith.constant 0 : index
      %328 = vector.load %arg20[%c0_92, %c0_93] : memref<8x64xf32, #tpu.memory_space<vmem>>, vector<8x64xf32>
      tpu.vector_store %arg20[%c0_92, %c0_93], %327 {strides = array<i32>} : memref<8x64xf32, #tpu.memory_space<vmem>>, vector<8x64xf32>,
    } else {
    }
    %c128_i32 = arith.constant 128 : i32
    %3 = arith.muli %arg1, %c128_i32 : i32
    %4 = tpu.assume_multiple %3, 128 : i32
    %c0 = arith.constant 0 : index
    %5 = arith.index_cast %4 : i32 to index
    %6 = vector.load %arg16[%c0, %5] : memref<8x256xf32, #tpu.memory_space<vmem>>, vector<8x128xf32>
    %c0_1 = arith.constant 0 : index
    %c0_2 = arith.constant 0 : index
    %7 = vector.load %arg18[%c0_1, %c0_2] : memref<8x64xf32, #tpu.memory_space<vmem>>, vector<8x64xf32>
    %cst = arith.constant dense<0.000000e+00> : vector<128x64xf32>
    %8 = tpu.matmul %6, %7, %cst {dimension_numbers = #tpu.dot_dimension_numbers<[0], [0], [1], [1], [0, 1, 1, 1], [], []>} : vector<8x128xf32>, vector<8x64xf32>, vector<128x64xf32> -> vector<128x64xf32>
    %cst_3 = arith.constant dense<0xFF800000> : vector<128xf32>
    %9 = vector.multi_reduction <maximumf>, %8, %cst_3 [1] : vector<128x64xf32> to vector<128xf32>
    %10 = vector.shape_cast %9 : vector<128xf32> to vector<128x1xf32>
    %11 = vector.broadcast %10 : vector<128x1xf32> to vector<128x64xf32>
    %12 = arith.subf %8, %11 : vector<128x64xf32>
    %13 = math.exp %12 : vector<128x64xf32>
    %cst_4 = arith.constant dense<0.000000e+00> : vector<128xf32>
    %14 = vector.multi_reduction <add>, %13, %cst_4 [1] : vector<128x64xf32> to vector<128xf32>
    %15 = vector.shape_cast %14 : vector<128xf32> to vector<128x1xf32>
    %16 = tpu.reciprocal %15 {approx = true} : vector<128x1xf32> -> vector<128x1xf32>
    %cst_5 = arith.constant 0.353553385 : f32
    %17 = vector.broadcast %cst_5 : f32 to vector<128x1xf32>
    %18 = arith.mulf %16, %17 : vector<128x1xf32>
    %c0_6 = arith.constant 0 : index
    %19 = arith.index_cast %4 : i32 to index
    %20 = vector.load %arg17[%c0_6, %19] : memref<8x256xf32, #tpu.memory_space<vmem>>, vector<8x128xf32>
    %21 = tpu.transpose %18, [1, 0] : vector<128x1xf32> -> vector<1x128xf32>
    %22 = vector.broadcast %21 : vector<1x128xf32> to vector<8x128xf32>
    %23 = arith.mulf %20, %22 : vector<8x128xf32>
    %c0_7 = arith.constant 0 : index
    %c0_8 = arith.constant 0 : index
    %24 = vector.load %arg20[%c0_7, %c0_8] : memref<8x64xf32, #tpu.memory_space<vmem>>, vector<8x64xf32>
    %cst_9 = arith.constant dense<0.000000e+00> : vector<8x64xf32>
    %25 = tpu.matmul %23, %13, %cst_9 {dimension_numbers = #tpu.dot_dimension_numbers<[1], [0], [0], [1], [0, 0, 1, 1], [], []>} : vector<8x128xf32>, vector<128x64xf32>, vector<8x64xf32> -> vector<8x64xf32>
    %26 = arith.addf %24, %25 : vector<8x64xf32>
    %c0_10 = arith.constant 0 : index
    %c0_11 = arith.constant 0 : index
    %27 = vector.load %arg20[%c0_10, %c0_11] : memref<8x64xf32, #tpu.memory_space<vmem>>, vector<8x64xf32>
    tpu.vector_store %arg20[%c0_10, %c0_11], %26 {strides = array<i32>} : memref<8x64xf32, #tpu.memory_space<vmem>>, vector<8x64xf32>,
    %c0_12 = arith.constant 0 : index
    %c0_13 = arith.constant 0 : index
    %28 = vector.load %arg19[%c0_12, %c0_13] : memref<64x8xf32, #tpu.memory_space<vmem>>, vector<64x8xf32>
    %cst_14 = arith.constant dense<0.000000e+00> : vector<128x8xf32>
    %29 = tpu.matmul %13, %28, %cst_14 {dimension_numbers = #tpu.dot_dimension_numbers<[1], [0], [0], [1], [0, 0, 1, 1], [], []>} : vector<128x64xf32>, vector<64x8xf32>, vector<128x8xf32> -> vector<128x8xf32>
    %30 = vector.broadcast %18 : vector<128x1xf32> to vector<128x8xf32>
    %31 = arith.mulf %29, %30 : vector<128x8xf32>
    %32 = tpu.transpose %31, [1, 0] : vector<128x8xf32> -> vector<8x128xf32>
    %33 = arith.truncf %32 : vector<8x128xf32> to vector<8x128xbf16>
    %c0_15 = arith.constant 0 : index
    %c0_16 = arith.constant 0 : index
    %34 = arith.index_cast %4 : i32 to index
    %35 = vector.load %arg14[%c0_15, %c0_16, %34] : memref<1x8x256xbf16, #tpu.memory_space<vmem>>, vector<1x8x128xbf16>
    %36 = vector.shape_cast %35 : vector<1x8x128xbf16> to vector<8x128xbf16>
    %37 = vector.shape_cast %33 : vector<8x128xbf16> to vector<1x8x128xbf16>
    tpu.vector_store %arg14[%c0_15, %c0_16, %34], %37 {strides = array<i32>} : memref<1x8x256xbf16, #tpu.memory_space<vmem>>, vector<1x8x128xbf16>,
    %c1_i32 = arith.constant 1 : i32
    %38 = arith.cmpi eq, %arg1, %c1_i32 : i32
    %39 = arith.extui %38 : i1 to i32
    %c0_i32_17 = arith.constant 0 : i32
    %40 = arith.cmpi ne, %39, %c0_i32_17 : i32
    scf.if %40 {
      %41 = tpu.iota {dimensions = array<i32: 1>} : vector<1x256xi32>
      %c0_18 = arith.constant 0 : index
      %c0_19 = arith.constant 0 : index
      %42 = vector.load %arg13[%c0_18, %c0_19] : memref<1x256xi32, #tpu.memory_space<vmem>>, vector<1x256xi32>
      %c0_20 = arith.constant 0 : index
      %c0_21 = arith.constant 0 : index
      %43 = vector.load %arg11[%c0_20, %c0_21] : memref<8x8xf32, #tpu.memory_space<vmem>>, vector<8x8xf32>
      %c0_22 = arith.constant 0 : index
      %c0_23 = arith.constant 0 : index
      %44 = vector.load %arg20[%c0_22, %c0_23] : memref<8x64xf32, #tpu.memory_space<vmem>>, vector<8x64xf32>
      %cst_24 = arith.constant dense<0.000000e+00> : vector<8x64xf32>
      %45 = tpu.matmul %43, %44, %cst_24 {dimension_numbers = #tpu.dot_dimension_numbers<[1], [0], [0], [1], [0, 0, 1, 1], [], []>} : vector<8x8xf32>, vector<8x64xf32>, vector<8x64xf32> -> vector<8x64xf32>
      %c0_25 = arith.constant 0 : index
      %c0_26 = arith.constant 0 : index
      %46 = vector.load %arg12[%c0_25, %c0_26] : memref<8x1xf32, #tpu.memory_space<vmem>>, vector<8x1xf32>
      %47 = vector.broadcast %46 : vector<8x1xf32> to vector<8x64xf32>
      %48 = arith.addf %45, %47 : vector<8x64xf32>
      %49 = arith.truncf %48 : vector<8x64xf32> to vector<8x64xbf16>
      %c0_27 = arith.constant 0 : index
      %c0_28 = arith.constant 0 : index
      %c0_29 = arith.constant 0 : index
      %50 = vector.load %arg15[%c0_27, %c0_28, %c0_29] : memref<1x8x64xbf16, #tpu.memory_space<vmem>>, vector<1x8x64xbf16>
      %51 = vector.shape_cast %50 : vector<1x8x64xbf16> to vector<8x64xbf16>
      %52 = vector.shape_cast %49 : vector<8x64xbf16> to vector<1x8x64xbf16>
      tpu.vector_store %arg15[%c0_27, %c0_28, %c0_29], %52 {strides = array<i32>} : memref<1x8x64xbf16, #tpu.memory_space<vmem>>, vector<1x8x64xbf16>,
      %c0_30 = arith.constant 0 : index
      %c0_31 = arith.constant 0 : index
      %c0_32 = arith.constant 0 : index
      %53 = vector.load %arg14[%c0_30, %c0_31, %c0_32] : memref<1x8x256xbf16, #tpu.memory_space<vmem>>, vector<1x8x256xbf16>
      %54 = vector.shape_cast %53 : vector<1x8x256xbf16> to vector<8x256xbf16>
      %55 = arith.extf %54 : vector<8x256xbf16> to vector<8x256xf32>
      %c0_33 = arith.constant 0 : index
      %c0_34 = arith.constant 0 : index
      %56 = vector.load %arg6[%c0_33, %c0_34] : memref<8x9xf32, #tpu.memory_space<vmem>>, vector<8x9xf32>
      %57 = vector.extract_strided_slice %56 {offsets = [0, 4], sizes = [8, 1], strides = [1, 1]} : vector<8x9xf32> to vector<8x1xf32>
      %58 = vector.broadcast %57 : vector<8x1xf32> to vector<8x256xf32>
      %59 = arith.mulf %55, %58 : vector<8x256xf32>
      %60 = vector.extract_strided_slice %55 {offsets = [0, 239], sizes = [8, 17], strides = [1, 1]} : vector<8x256xf32> to vector<8x17xf32>
      %61 = vector.extract_strided_slice %55 {offsets = [0, 0], sizes = [8, 239], strides = [1, 1]} : vector<8x256xf32> to vector<8x239xf32>
      %62 = tpu.concatenate %60, %61 in 1 : vector<8x17xf32>, vector<8x239xf32> -> vector<8x256xf32>
      %c16_i32 = arith.constant 16 : i32
      %63 = vector.broadcast %c16_i32 : i32 to vector<1x256xi32>
      %64 = arith.cmpi sge, %41, %63 : vector<1x256xi32>
      %c1_i32_35 = arith.constant 1 : i32
      %65 = vector.broadcast %c1_i32_35 : i32 to vector<1x256xi32>
      %66 = arith.cmpi sge, %42, %65 : vector<1x256xi32>
      %67 = arith.andi %64, %66 : vector<1x256xi1>
      %cst_36 = arith.constant 0.000000e+00 : f32
      %68 = vector.shape_cast %67 : vector<1x256xi1> to vector<1x256xi1>
      %69 = vector.broadcast %68 : vector<1x256xi1> to vector<8x256xi1>
      %70 = vector.broadcast %cst_36 : f32 to vector<8x256xf32>
      %71 = arith.select %69, %62, %70 : vector<8x256xi1>, vector<8x256xf32>
      %72 = vector.extract_strided_slice %56 {offsets = [0, 0], sizes = [8, 1], strides = [1, 1]} : vector<8x9xf32> to vector<8x1xf32>
      %73 = vector.broadcast %72 : vector<8x1xf32> to vector<8x256xf32>
      %74 = arith.mulf %71, %73 : vector<8x256xf32>
      %75 = arith.addf %59, %74 : vector<8x256xf32>
      %76 = vector.extract_strided_slice %55 {offsets = [0, 240], sizes = [8, 16], strides = [1, 1]} : vector<8x256xf32> to vector<8x16xf32>
      %77 = vector.extract_strided_slice %55 {offsets = [0, 0], sizes = [8, 240], strides = [1, 1]} : vector<8x256xf32> to vector<8x240xf32>
      %78 = tpu.concatenate %76, %77 in 1 : vector<8x16xf32>, vector<8x240xf32> -> vector<8x256xf32>
      %c16_i32_37 = arith.constant 16 : i32
      %79 = vector.broadcast %c16_i32_37 : i32 to vector<1x256xi32>
      %80 = arith.cmpi sge, %41, %79 : vector<1x256xi32>
      %cst_38 = arith.constant 0.000000e+00 : f32
      %81 = vector.shape_cast %80 : vector<1x256xi1> to vector<1x256xi1>
      %82 = vector.broadcast %81 : vector<1x256xi1> to vector<8x256xi1>
      %83 = vector.broadcast %cst_38 : f32 to vector<8x256xf32>
      %84 = arith.select %82, %78, %83 : vector<8x256xi1>, vector<8x256xf32>
      %85 = vector.extract_strided_slice %56 {offsets = [0, 1], sizes = [8, 1], strides = [1, 1]} : vector<8x9xf32> to vector<8x1xf32>
      %86 = vector.broadcast %85 : vector<8x1xf32> to vector<8x256xf32>
      %87 = arith.mulf %84, %86 : vector<8x256xf32>
      %88 = arith.addf %75, %87 : vector<8x256xf32>
      %89 = vector.extract_strided_slice %55 {offsets = [0, 241], sizes = [8, 15], strides = [1, 1]} : vector<8x256xf32> to vector<8x15xf32>
      %90 = vector.extract_strided_slice %55 {offsets = [0, 0], sizes = [8, 241], strides = [1, 1]} : vector<8x256xf32> to vector<8x241xf32>
      %91 = tpu.concatenate %89, %90 in 1 : vector<8x15xf32>, vector<8x241xf32> -> vector<8x256xf32>
      %c16_i32_39 = arith.constant 16 : i32
      %92 = vector.broadcast %c16_i32_39 : i32 to vector<1x256xi32>
      %93 = arith.cmpi sge, %41, %92 : vector<1x256xi32>
      %c14_i32 = arith.constant 14 : i32
      %94 = vector.broadcast %c14_i32 : i32 to vector<1x256xi32>
      %95 = arith.cmpi sle, %42, %94 : vector<1x256xi32>
      %96 = arith.andi %93, %95 : vector<1x256xi1>
      %cst_40 = arith.constant 0.000000e+00 : f32
      %97 = vector.shape_cast %96 : vector<1x256xi1> to vector<1x256xi1>
      %98 = vector.broadcast %97 : vector<1x256xi1> to vector<8x256xi1>
      %99 = vector.broadcast %cst_40 : f32 to vector<8x256xf32>
      %100 = arith.select %98, %91, %99 : vector<8x256xi1>, vector<8x256xf32>
      %101 = vector.extract_strided_slice %56 {offsets = [0, 2], sizes = [8, 1], strides = [1, 1]} : vector<8x9xf32> to vector<8x1xf32>
      %102 = vector.broadcast %101 : vector<8x1xf32> to vector<8x256xf32>
      %103 = arith.mulf %100, %102 : vector<8x256xf32>
      %104 = arith.addf %88, %103 : vector<8x256xf32>
      %105 = vector.extract_strided_slice %55 {offsets = [0, 255], sizes = [8, 1], strides = [1, 1]} : vector<8x256xf32> to vector<8x1xf32>
      %106 = vector.extract_strided_slice %55 {offsets = [0, 0], sizes = [8, 255], strides = [1, 1]} : vector<8x256xf32> to vector<8x255xf32>
      %107 = tpu.concatenate %105, %106 in 1 : vector<8x1xf32>, vector<8x255xf32> -> vector<8x256xf32>
      %c1_i32_41 = arith.constant 1 : i32
      %108 = vector.broadcast %c1_i32_41 : i32 to vector<1x256xi32>
      %109 = arith.cmpi sge, %42, %108 : vector<1x256xi32>
      %cst_42 = arith.constant 0.000000e+00 : f32
      %110 = vector.shape_cast %109 : vector<1x256xi1> to vector<1x256xi1>
      %111 = vector.broadcast %110 : vector<1x256xi1> to vector<8x256xi1>
      %112 = vector.broadcast %cst_42 : f32 to vector<8x256xf32>
      %113 = arith.select %111, %107, %112 : vector<8x256xi1>, vector<8x256xf32>
      %114 = vector.extract_strided_slice %56 {offsets = [0, 3], sizes = [8, 1], strides = [1, 1]} : vector<8x9xf32> to vector<8x1xf32>
      %115 = vector.broadcast %114 : vector<8x1xf32> to vector<8x256xf32>
      %116 = arith.mulf %113, %115 : vector<8x256xf32>
      %117 = arith.addf %104, %116 : vector<8x256xf32>
      %118 = vector.extract_strided_slice %55 {offsets = [0, 1], sizes = [8, 255], strides = [1, 1]} : vector<8x256xf32> to vector<8x255xf32>
      %119 = vector.extract_strided_slice %55 {offsets = [0, 0], sizes = [8, 1], strides = [1, 1]} : vector<8x256xf32> to vector<8x1xf32>
      %120 = tpu.concatenate %118, %119 in 1 : vector<8x255xf32>, vector<8x1xf32> -> vector<8x256xf32>
      %c14_i32_43 = arith.constant 14 : i32
      %121 = vector.broadcast %c14_i32_43 : i32 to vector<1x256xi32>
      %122 = arith.cmpi sle, %42, %121 : vector<1x256xi32>
      %cst_44 = arith.constant 0.000000e+00 : f32
      %123 = vector.shape_cast %122 : vector<1x256xi1> to vector<1x256xi1>
      %124 = vector.broadcast %123 : vector<1x256xi1> to vector<8x256xi1>
      %125 = vector.broadcast %cst_44 : f32 to vector<8x256xf32>
      %126 = arith.select %124, %120, %125 : vector<8x256xi1>, vector<8x256xf32>
      %127 = vector.extract_strided_slice %56 {offsets = [0, 5], sizes = [8, 1], strides = [1, 1]} : vector<8x9xf32> to vector<8x1xf32>
      %128 = vector.broadcast %127 : vector<8x1xf32> to vector<8x256xf32>
      %129 = arith.mulf %126, %128 : vector<8x256xf32>
      %130 = arith.addf %117, %129 : vector<8x256xf32>
      %131 = vector.extract_strided_slice %55 {offsets = [0, 15], sizes = [8, 241], strides = [1, 1]} : vector<8x256xf32> to vector<8x241xf32>
      %132 = vector.extract_strided_slice %55 {offsets = [0, 0], sizes = [8, 15], strides = [1, 1]} : vector<8x256xf32> to vector<8x15xf32>
      %133 = tpu.concatenate %131, %132 in 1 : vector<8x241xf32>, vector<8x15xf32> -> vector<8x256xf32>
      %c240_i32 = arith.constant 240 : i32
      %134 = vector.broadcast %c240_i32 : i32 to vector<1x256xi32>
      %135 = arith.cmpi slt, %41, %134 : vector<1x256xi32>
      %c1_i32_45 = arith.constant 1 : i32
      %136 = vector.broadcast %c1_i32_45 : i32 to vector<1x256xi32>
      %137 = arith.cmpi sge, %42, %136 : vector<1x256xi32>
      %138 = arith.andi %135, %137 : vector<1x256xi1>
      %cst_46 = arith.constant 0.000000e+00 : f32
      %139 = vector.shape_cast %138 : vector<1x256xi1> to vector<1x256xi1>
      %140 = vector.broadcast %139 : vector<1x256xi1> to vector<8x256xi1>
      %141 = vector.broadcast %cst_46 : f32 to vector<8x256xf32>
      %142 = arith.select %140, %133, %141 : vector<8x256xi1>, vector<8x256xf32>
      %143 = vector.extract_strided_slice %56 {offsets = [0, 6], sizes = [8, 1], strides = [1, 1]} : vector<8x9xf32> to vector<8x1xf32>
      %144 = vector.broadcast %143 : vector<8x1xf32> to vector<8x256xf32>
      %145 = arith.mulf %142, %144 : vector<8x256xf32>
      %146 = arith.addf %130, %145 : vector<8x256xf32>
      %147 = vector.extract_strided_slice %55 {offsets = [0, 16], sizes = [8, 240], strides = [1, 1]} : vector<8x256xf32> to vector<8x240xf32>
      %148 = vector.extract_strided_slice %55 {offsets = [0, 0], sizes = [8, 16], strides = [1, 1]} : vector<8x256xf32> to vector<8x16xf32>
      %149 = tpu.concatenate %147, %148 in 1 : vector<8x240xf32>, vector<8x16xf32> -> vector<8x256xf32>
      %c240_i32_47 = arith.constant 240 : i32
      %150 = vector.broadcast %c240_i32_47 : i32 to vector<1x256xi32>
      %151 = arith.cmpi slt, %41, %150 : vector<1x256xi32>
      %cst_48 = arith.constant 0.000000e+00 : f32
      %152 = vector.shape_cast %151 : vector<1x256xi1> to vector<1x256xi1>
      %153 = vector.broadcast %152 : vector<1x256xi1> to vector<8x256xi1>
      %154 = vector.broadcast %cst_48 : f32 to vector<8x256xf32>
      %155 = arith.select %153, %149, %154 : vector<8x256xi1>, vector<8x256xf32>
      %156 = vector.extract_strided_slice %56 {offsets = [0, 7], sizes = [8, 1], strides = [1, 1]} : vector<8x9xf32> to vector<8x1xf32>
      %157 = vector.broadcast %156 : vector<8x1xf32> to vector<8x256xf32>
      %158 = arith.mulf %155, %157 : vector<8x256xf32>
      %159 = arith.addf %146, %158 : vector<8x256xf32>
      %160 = vector.extract_strided_slice %55 {offsets = [0, 17], sizes = [8, 239], strides = [1, 1]} : vector<8x256xf32> to vector<8x239xf32>
      %161 = vector.extract_strided_slice %55 {offsets = [0, 0], sizes = [8, 17], strides = [1, 1]} : vector<8x256xf32> to vector<8x17xf32>
      %162 = tpu.concatenate %160, %161 in 1 : vector<8x239xf32>, vector<8x17xf32> -> vector<8x256xf32>
      %c240_i32_49 = arith.constant 240 : i32
      %163 = vector.broadcast %c240_i32_49 : i32 to vector<1x256xi32>
      %164 = arith.cmpi slt, %41, %163 : vector<1x256xi32>
      %c14_i32_50 = arith.constant 14 : i32
      %165 = vector.broadcast %c14_i32_50 : i32 to vector<1x256xi32>
      %166 = arith.cmpi sle, %42, %165 : vector<1x256xi32>
      %167 = arith.andi %164, %166 : vector<1x256xi1>
      %cst_51 = arith.constant 0.000000e+00 : f32
      %168 = vector.shape_cast %167 : vector<1x256xi1> to vector<1x256xi1>
      %169 = vector.broadcast %168 : vector<1x256xi1> to vector<8x256xi1>
      %170 = vector.broadcast %cst_51 : f32 to vector<8x256xf32>
      %171 = arith.select %169, %162, %170 : vector<8x256xi1>, vector<8x256xf32>
      %172 = vector.extract_strided_slice %56 {offsets = [0, 8], sizes = [8, 1], strides = [1, 1]} : vector<8x9xf32> to vector<8x1xf32>
      %173 = vector.broadcast %172 : vector<8x1xf32> to vector<8x256xf32>
      %174 = arith.mulf %171, %173 : vector<8x256xf32>
      %175 = arith.addf %159, %174 : vector<8x256xf32>
      %176 = arith.truncf %175 : vector<8x256xf32> to vector<8x256xbf16>
      %c0_52 = arith.constant 0 : index
      %c0_53 = arith.constant 0 : index
      %c0_54 = arith.constant 0 : index
      %177 = vector.load %arg14[%c0_52, %c0_53, %c0_54] : memref<1x8x256xbf16, #tpu.memory_space<vmem>>, vector<1x8x256xbf16>
      %178 = vector.shape_cast %177 : vector<1x8x256xbf16> to vector<8x256xbf16>
      %179 = vector.shape_cast %176 : vector<8x256xbf16> to vector<1x8x256xbf16>
      tpu.vector_store %arg14[%c0_52, %c0_53, %c0_54], %179 {strides = array<i32>} : memref<1x8x256xbf16, #tpu.memory_space<vmem>>, vector<1x8x256xbf16>,
    } else {
    }
    return
  }
  func.func @transform_0(%arg0: i32, %arg1: i32) -> (i32, i32, i32) {
    %c0_i32 = arith.constant 0 : i32
    %c0_i32_0 = arith.constant 0 : i32
    %c0_i32_1 = arith.constant 0 : i32
    return %arg0, %c0_i32, %c0_i32_0 : i32, i32, i32
  }
  func.func @transform_1(%arg0: i32, %arg1: i32) -> (i32, i32, i32) {
    %c0_i32 = arith.constant 0 : i32
    %c0_i32_0 = arith.constant 0 : i32
    %c0_i32_1 = arith.constant 0 : i32
    return %arg0, %c0_i32, %c0_i32_0 : i32, i32, i32
  }
  func.func @transform_2(%arg0: i32, %arg1: i32) -> (i32, i32) {
    %c0_i32 = arith.constant 0 : i32
    %c0_i32_0 = arith.constant 0 : i32
    %c0_i32_1 = arith.constant 0 : i32
    return %c0_i32, %c0_i32_0 : i32, i32
  }
  func.func @transform_3(%arg0: i32, %arg1: i32) -> (i32, i32) {
    %c0_i32 = arith.constant 0 : i32
    %c0_i32_0 = arith.constant 0 : i32
    %c0_i32_1 = arith.constant 0 : i32
    return %c0_i32, %c0_i32_0 : i32, i32
  }
  func.func @transform_4(%arg0: i32, %arg1: i32) -> (i32, i32) {
    %c0_i32 = arith.constant 0 : i32
    %c0_i32_0 = arith.constant 0 : i32
    %c0_i32_1 = arith.constant 0 : i32
    return %c0_i32, %c0_i32_0 : i32, i32
  }
  func.func @transform_5(%arg0: i32, %arg1: i32) -> (i32, i32) {
    %c0_i32 = arith.constant 0 : i32
    %c0_i32_0 = arith.constant 0 : i32
    %c0_i32_1 = arith.constant 0 : i32
    return %c0_i32, %c0_i32_0 : i32, i32
  }
  func.func @transform_6(%arg0: i32, %arg1: i32) -> (i32, i32) {
    %c0_i32 = arith.constant 0 : i32
    %c0_i32_0 = arith.constant 0 : i32
    %c0_i32_1 = arith.constant 0 : i32
    return %c0_i32, %c0_i32_0 : i32, i32
  }
  func.func @transform_7(%arg0: i32, %arg1: i32) -> (i32, i32) {
    %c0_i32 = arith.constant 0 : i32
    %c0_i32_0 = arith.constant 0 : i32
    %c0_i32_1 = arith.constant 0 : i32
    return %c0_i32, %c0_i32_0 : i32, i32
  }
  func.func @transform_8(%arg0: i32, %arg1: i32) -> (i32, i32) {
    %c0_i32 = arith.constant 0 : i32
    %c0_i32_0 = arith.constant 0 : i32
    %c0_i32_1 = arith.constant 0 : i32
    return %c0_i32, %c0_i32_0 : i32, i32
  }
  func.func @transform_9(%arg0: i32, %arg1: i32) -> (i32, i32) {
    %c0_i32 = arith.constant 0 : i32
    %c0_i32_0 = arith.constant 0 : i32
    %c0_i32_1 = arith.constant 0 : i32
    return %c0_i32, %c0_i32_0 : i32, i32
  }
  func.func @transform_10(%arg0: i32, %arg1: i32) -> (i32, i32) {
    %c0_i32 = arith.constant 0 : i32
    %c0_i32_0 = arith.constant 0 : i32
    %c0_i32_1 = arith.constant 0 : i32
    return %c0_i32, %c0_i32_0 : i32, i32
  }
  func.func @transform_11(%arg0: i32, %arg1: i32) -> (i32, i32) {
    %c0_i32 = arith.constant 0 : i32
    %c0_i32_0 = arith.constant 0 : i32
    %c0_i32_1 = arith.constant 0 : i32
    return %c0_i32, %c0_i32_0 : i32, i32
  }
  func.func @transform_12(%arg0: i32, %arg1: i32) -> (i32, i32, i32) {
    %c0_i32 = arith.constant 0 : i32
    %c0_i32_0 = arith.constant 0 : i32
    %c0_i32_1 = arith.constant 0 : i32
    return %arg0, %c0_i32, %c0_i32_0 : i32, i32, i32
  }
  func.func @transform_13(%arg0: i32, %arg1: i32) -> (i32, i32, i32) {
    %c0_i32 = arith.constant 0 : i32
    %c0_i32_0 = arith.constant 0 : i32
    %c0_i32_1 = arith.constant 0 : i32
    return %arg0, %c0_i32, %c0_i32_0 : i32, i32, i32
  }
}

</mosaic_0001>

<llo_original>
// kernel: muti_freq_forward.1
$region0: #{muti_freq_forward.1}
  #allocation0 [shape = 'u32[]', space=smem, size = 0x4, offset = 0x4, fixed_abs, tag = 'smem constant byte address 0x4 - core index']
  #allocation1 [shape = 'u32[144,128]{1,0:T(1,128)}', space=vmem, size = 0x12000, scoped, tag = 'internal scratch']
  #allocation2 [shape = 'f32[8,256]{1,0:T(8,128)}', space=vmem, size = 0x2000, scoped, tag = 'scratch operand']
  #allocation3 [shape = 'f32[8,256]{1,0:T(8,128)}', space=vmem, size = 0x2000, scoped, tag = 'scratch operand']
  #allocation4 [shape = 'f32[8,64]{1,0:T(8,128)}', space=vmem, size = 0x1000, scoped, tag = 'scratch operand']
  #allocation5 [shape = 'f32[64,8]{1,0:T(8,128)}', space=vmem, size = 0x8000, scoped, tag = 'scratch operand']
  #allocation6 [shape = 'f32[8,64]{1,0:T(8,128)}', space=vmem, size = 0x1000, scoped, tag = 'scratch operand']
  %s0 = inlined_call_operand.vmem [shape: bf16[2,8,256], index: 0, kind: input, shape index: {}]
  %s1 = inlined_call_operand.vmem [shape: bf16[2,8,64], index: 1, kind: input, shape index: {}]
  %s2 = inlined_call_operand.vmem [shape: f32[8,9], index: 2, kind: input, shape index: {}]
  %s3 = inlined_call_operand.vmem [shape: f32[8,9], index: 3, kind: input, shape index: {}]
  %s4 = inlined_call_operand.vmem [shape: f32[8,9], index: 4, kind: input, shape index: {}]
  %s5 = inlined_call_operand.vmem [shape: f32[8,8], index: 5, kind: input, shape index: {}]
  %s6 = inlined_call_operand.vmem [shape: f32[8,1], index: 6, kind: input, shape index: {}]
  %s7 = inlined_call_operand.vmem [shape: f32[8,8], index: 7, kind: input, shape index: {}]
  %s8 = inlined_call_operand.vmem [shape: f32[8,1], index: 8, kind: input, shape index: {}]
  %s9 = inlined_call_operand.vmem [shape: f32[8,8], index: 9, kind: input, shape index: {}]
  %s10 = inlined_call_operand.vmem [shape: f32[8,1], index: 10, kind: input, shape index: {}]
  %s11 = inlined_call_operand.vmem [shape: s32[1,256], index: 11, kind: input, shape index: {}]
  %s12 = inlined_call_operand.vmem [shape: bf16[2,8,256], index: 12, kind: output, shape index: {0}]
  %s13 = inlined_call_operand.vmem [shape: bf16[2,8,64], index: 13, kind: output, shape index: {1}]
  %14 = xla_tuple %s12, %s13
  %s15 = sld [smem:[#allocation0]]
  $region97: #{muti_freq_forward.1} parent=0
    _
  %s17 = ssub.s32 1, %s15
  %s18 = scalar_select 0, %s17, %s15
  loop: start=0, step=1, limit=6
  $region2: #{muti_freq_forward.1} parent=0 // loop_pre_header
    _
  $region3: #{muti_freq_forward.1} parent=0 // loop_header
    %s20 = sphi 0, %s24
    %p21 = scmp.ge.s32.totalorder %s20, 6
    %s27 = sphi 0, %s39
    %s28 = sphi 0, %s35
    %s29 = sphi 0, %s27
    %s30 = sphi 0, %s28
    %s31 = sphi 0, %s29
    %s32 = sphi 0, %s30
    %s42 = sphi 0, %s44
    %s45 = sphi 0, %s42
    %s46 = sphi 0, %s45
    %s62 = sphi 0, %s46
    %s68 = sphi 0, %s70
    %s71 = sphi 0, %s68
    %s72 = sphi 0, %s71
    %s88 = sphi 0, %s72
    %s92 = sphi 0, %s92
    %s94 = sphi 0, %s92
    %s95 = sphi 0, %s94
    %s109 = sphi 0, %s95
    %s113 = sphi 0, %s113
    %s115 = sphi 0, %s113
    %s116 = sphi 0, %s115
    %s130 = sphi 0, %s116
    %s134 = sphi 0, %s134
    %s136 = sphi 0, %s134
    %s137 = sphi 0, %s136
    %s151 = sphi 0, %s137
    %s155 = sphi 0, %s155
    %s157 = sphi 0, %s155
    %s158 = sphi 0, %s157
    %s172 = sphi 0, %s158
    %s176 = sphi 0, %s176
    %s178 = sphi 0, %s176
    %s179 = sphi 0, %s178
    %s193 = sphi 0, %s179
    %s197 = sphi 0, %s197
    %s199 = sphi 0, %s197
    %s200 = sphi 0, %s199
    %s214 = sphi 0, %s200
    %s218 = sphi 0, %s218
    %s220 = sphi 0, %s218
    %s221 = sphi 0, %s220
    %s235 = sphi 0, %s221
    %s239 = sphi 0, %s239
    %s241 = sphi 0, %s239
    %s242 = sphi 0, %s241
    %s256 = sphi 0, %s242
    %s260 = sphi 0, %s260
    %s262 = sphi 0, %s260
    %s263 = sphi 0, %s262
    %s277 = sphi 0, %s263
    %s281 = sphi 0, %s281
    %s283 = sphi 0, %s281
    %s284 = sphi 0, %s283
    %s298 = sphi 0, %s284
    %s304 = sphi 0, %s306
    %s307 = sphi 0, %s304
    %s308 = sphi 0, %s307
    %s324 = sphi 0, %s308
    %s330 = sphi 0, %s332
    %s333 = sphi 0, %s330
    %s334 = sphi 0, %s333
    %s350 = sphi 0, %s334
  $region4: #{muti_freq_forward.1} parent=0 // loop_header_branch
    %23 = sbr.rel (%p21) target = $region8
  $region5: #{muti_freq_forward.1} parent=0 // loop_body
    %s25 = ssub.s32 %s20, 1
    %s26 = ssub.s32 %s20, 2
    %s33 = sadd.s32 1, %s28
    %p34 = scmp.ge.s32.totalorder %s33, 2
    %s35 = scalar_select %p34, 0, %s33
    %s36 = sadd.s32 1, %s27
    %s37 = scalar_select %p34, %s36, %s27
    %p38 = scmp.ge.s32.totalorder %s37, 2
    %s39 = scalar_select %p38, 0, %s37
    %s40 = ssub.s32 %s27, %s39
    %p41 = scmp.eq.s32.totalorder %s40, 0
    %s43 = sadd.s32 %s42, 1
    %s44 = scalar_select %p41, %s42, %s43
    %p47 = pneg %p41
    %p48 = scmp.eq.s32.totalorder %s20, 3
    %p49 = por %p47, %p48
    %p50 = scmp.ne.s32.totalorder %s42, %s45
    %p51 = scmp.eq.s32.totalorder %s20, 0
    %p52 = por %p50, %p51
    %p53 = scmp.ne.s32.totalorder %s42, %s45
    %p54 = scmp.eq.s32.totalorder %s25, 3
    %p55 = por %p53, %p54
    %p56 = scmp.ne.s32.totalorder %s45, %s46
    %p57 = scmp.eq.s32.totalorder %s25, 0
    %p58 = por %p56, %p57
    %p59 = scmp.ne.s32.totalorder %s45, %s46
    %p60 = scmp.eq.s32.totalorder %s26, 3
    %p61 = por %p59, %p60
    %p63 = scmp.ne.s32.totalorder %s46, %s62
    %p64 = scmp.eq.s32.totalorder %s26, 0
    %p65 = por %p63, %p64
    %s66 = ssub.s32 %s27, %s39
    %p67 = scmp.eq.s32.totalorder %s66, 0
    %s69 = sadd.s32 %s68, 1
    %s70 = scalar_select %p67, %s68, %s69
    %p73 = pneg %p67
    %p74 = scmp.eq.s32.totalorder %s20, 3
    %p75 = por %p73, %p74
    %p76 = scmp.ne.s32.totalorder %s68, %s71
    %p77 = scmp.eq.s32.totalorder %s20, 0
    %p78 = por %p76, %p77
    %p79 = scmp.ne.s32.totalorder %s68, %s71
    %p80 = scmp.eq.s32.totalorder %s25, 3
    %p81 = por %p79, %p80
    %p82 = scmp.ne.s32.totalorder %s71, %s72
    %p83 = scmp.eq.s32.totalorder %s25, 0
    %p84 = por %p82, %p83
    %p85 = scmp.ne.s32.totalorder %s71, %s72
    %p86 = scmp.eq.s32.totalorder %s26, 3
    %p87 = por %p85, %p86
    %p89 = scmp.ne.s32.totalorder %s72, %s88
    %p90 = scmp.eq.s32.totalorder %s26, 0
    %p91 = por %p89, %p90
    %s93 = sadd.s32 %s92, 1
    %p96 = scmp.eq.s32.totalorder %s20, 3
    %p97 = scmp.ne.s32.totalorder %s92, %s94
    %p98 = scmp.eq.s32.totalorder %s20, 0
    %p99 = por %p97, %p98
    %p100 = scmp.ne.s32.totalorder %s92, %s94
    %p101 = scmp.eq.s32.totalorder %s25, 3
    %p102 = por %p100, %p101
    %p103 = scmp.ne.s32.totalorder %s94, %s95
    %p104 = scmp.eq.s32.totalorder %s25, 0
    %p105 = por %p103, %p104
    %p106 = scmp.ne.s32.totalorder %s94, %s95
    %p107 = scmp.eq.s32.totalorder %s26, 3
    %p108 = por %p106, %p107
    %p110 = scmp.ne.s32.totalorder %s95, %s109
    %p111 = scmp.eq.s32.totalorder %s26, 0
    %p112 = por %p110, %p111
    %s114 = sadd.s32 %s113, 1
    %p117 = scmp.eq.s32.totalorder %s20, 3
    %p118 = scmp.ne.s32.totalorder %s113, %s115
    %p119 = scmp.eq.s32.totalorder %s20, 0
    %p120 = por %p118, %p119
    %p121 = scmp.ne.s32.totalorder %s113, %s115
    %p122 = scmp.eq.s32.totalorder %s25, 3
    %p123 = por %p121, %p122
    %p124 = scmp.ne.s32.totalorder %s115, %s116
    %p125 = scmp.eq.s32.totalorder %s25, 0
    %p126 = por %p124, %p125
    %p127 = scmp.ne.s32.totalorder %s115, %s116
    %p128 = scmp.eq.s32.totalorder %s26, 3
    %p129 = por %p127, %p128
    %p131 = scmp.ne.s32.totalorder %s116, %s130
    %p132 = scmp.eq.s32.totalorder %s26, 0
    %p133 = por %p131, %p132
    %s135 = sadd.s32 %s134, 1
    %p138 = scmp.eq.s32.totalorder %s20, 3
    %p139 = scmp.ne.s32.totalorder %s134, %s136
    %p140 = scmp.eq.s32.totalorder %s20, 0
    %p141 = por %p139, %p140
    %p142 = scmp.ne.s32.totalorder %s134, %s136
    %p143 = scmp.eq.s32.totalorder %s25, 3
    %p144 = por %p142, %p143
    %p145 = scmp.ne.s32.totalorder %s136, %s137
    %p146 = scmp.eq.s32.totalorder %s25, 0
    %p147 = por %p145, %p146
    %p148 = scmp.ne.s32.totalorder %s136, %s137
    %p149 = scmp.eq.s32.totalorder %s26, 3
    %p150 = por %p148, %p149
    %p152 = scmp.ne.s32.totalorder %s137, %s151
    %p153 = scmp.eq.s32.totalorder %s26, 0
    %p154 = por %p152, %p153
    %s156 = sadd.s32 %s155, 1
    %p159 = scmp.eq.s32.totalorder %s20, 3
    %p160 = scmp.ne.s32.totalorder %s155, %s157
    %p161 = scmp.eq.s32.totalorder %s20, 0
    %p162 = por %p160, %p161
    %p163 = scmp.ne.s32.totalorder %s155, %s157
    %p164 = scmp.eq.s32.totalorder %s25, 3
    %p165 = por %p163, %p164
    %p166 = scmp.ne.s32.totalorder %s157, %s158
    %p167 = scmp.eq.s32.totalorder %s25, 0
    %p168 = por %p166, %p167
    %p169 = scmp.ne.s32.totalorder %s157, %s158
    %p170 = scmp.eq.s32.totalorder %s26, 3
    %p171 = por %p169, %p170
    %p173 = scmp.ne.s32.totalorder %s158, %s172
    %p174 = scmp.eq.s32.totalorder %s26, 0
    %p175 = por %p173, %p174
    %s177 = sadd.s32 %s176, 1
    %p180 = scmp.eq.s32.totalorder %s20, 3
    %p181 = scmp.ne.s32.totalorder %s176, %s178
    %p182 = scmp.eq.s32.totalorder %s20, 0
    %p183 = por %p181, %p182
    %p184 = scmp.ne.s32.totalorder %s176, %s178
    %p185 = scmp.eq.s32.totalorder %s25, 3
    %p186 = por %p184, %p185
    %p187 = scmp.ne.s32.totalorder %s178, %s179
    %p188 = scmp.eq.s32.totalorder %s25, 0
    %p189 = por %p187, %p188
    %p190 = scmp.ne.s32.totalorder %s178, %s179
    %p191 = scmp.eq.s32.totalorder %s26, 3
    %p192 = por %p190, %p191
    %p194 = scmp.ne.s32.totalorder %s179, %s193
    %p195 = scmp.eq.s32.totalorder %s26, 0
    %p196 = por %p194, %p195
    %s198 = sadd.s32 %s197, 1
    %p201 = scmp.eq.s32.totalorder %s20, 3
    %p202 = scmp.ne.s32.totalorder %s197, %s199
    %p203 = scmp.eq.s32.totalorder %s20, 0
    %p204 = por %p202, %p203
    %p205 = scmp.ne.s32.totalorder %s197, %s199
    %p206 = scmp.eq.s32.totalorder %s25, 3
    %p207 = por %p205, %p206
    %p208 = scmp.ne.s32.totalorder %s199, %s200
    %p209 = scmp.eq.s32.totalorder %s25, 0
    %p210 = por %p208, %p209
    %p211 = scmp.ne.s32.totalorder %s199, %s200
    %p212 = scmp.eq.s32.totalorder %s26, 3
    %p213 = por %p211, %p212
    %p215 = scmp.ne.s32.totalorder %s200, %s214
    %p216 = scmp.eq.s32.totalorder %s26, 0
    %p217 = por %p215, %p216
    %s219 = sadd.s32 %s218, 1
    %p222 = scmp.eq.s32.totalorder %s20, 3
    %p223 = scmp.ne.s32.totalorder %s218, %s220
    %p224 = scmp.eq.s32.totalorder %s20, 0
    %p225 = por %p223, %p224
    %p226 = scmp.ne.s32.totalorder %s218, %s220
    %p227 = scmp.eq.s32.totalorder %s25, 3
    %p228 = por %p226, %p227
    %p229 = scmp.ne.s32.totalorder %s220, %s221
    %p230 = scmp.eq.s32.totalorder %s25, 0
    %p231 = por %p229, %p230
    %p232 = scmp.ne.s32.totalorder %s220, %s221
    %p233 = scmp.eq.s32.totalorder %s26, 3
    %p234 = por %p232, %p233
    %p236 = scmp.ne.s32.totalorder %s221, %s235
    %p237 = scmp.eq.s32.totalorder %s26, 0
    %p238 = por %p236, %p237
    %s240 = sadd.s32 %s239, 1
    %p243 = scmp.eq.s32.totalorder %s20, 3
    %p244 = scmp.ne.s32.totalorder %s239, %s241
    %p245 = scmp.eq.s32.totalorder %s20, 0
    %p246 = por %p244, %p245
    %p247 = scmp.ne.s32.totalorder %s239, %s241
    %p248 = scmp.eq.s32.totalorder %s25, 3
    %p249 = por %p247, %p248
    %p250 = scmp.ne.s32.totalorder %s241, %s242
    %p251 = scmp.eq.s32.totalorder %s25, 0
    %p252 = por %p250, %p251
    %p253 = scmp.ne.s32.totalorder %s241, %s242
    %p254 = scmp.eq.s32.totalorder %s26, 3
    %p255 = por %p253, %p254
    %p257 = scmp.ne.s32.totalorder %s242, %s256
    %p258 = scmp.eq.s32.totalorder %s26, 0
    %p259 = por %p257, %p258
    %s261 = sadd.s32 %s260, 1
    %p264 = scmp.eq.s32.totalorder %s20, 3
    %p265 = scmp.ne.s32.totalorder %s260, %s262
    %p266 = scmp.eq.s32.totalorder %s20, 0
    %p267 = por %p265, %p266
    %p268 = scmp.ne.s32.totalorder %s260, %s262
    %p269 = scmp.eq.s32.totalorder %s25, 3
    %p270 = por %p268, %p269
    %p271 = scmp.ne.s32.totalorder %s262, %s263
    %p272 = scmp.eq.s32.totalorder %s25, 0
    %p273 = por %p271, %p272
    %p274 = scmp.ne.s32.totalorder %s262, %s263
    %p275 = scmp.eq.s32.totalorder %s26, 3
    %p276 = por %p274, %p275
    %p278 = scmp.ne.s32.totalorder %s263, %s277
    %p279 = scmp.eq.s32.totalorder %s26, 0
    %p280 = por %p278, %p279
    %s282 = sadd.s32 %s281, 1
    %p285 = scmp.eq.s32.totalorder %s20, 3
    %p286 = scmp.ne.s32.totalorder %s281, %s283
    %p287 = scmp.eq.s32.totalorder %s20, 0
    %p288 = por %p286, %p287
    %p289 = scmp.ne.s32.totalorder %s281, %s283
    %p290 = scmp.eq.s32.totalorder %s25, 3
    %p291 = por %p289, %p290
    %p292 = scmp.ne.s32.totalorder %s283, %s284
    %p293 = scmp.eq.s32.totalorder %s25, 0
    %p294 = por %p292, %p293
    %p295 = scmp.ne.s32.totalorder %s283, %s284
    %p296 = scmp.eq.s32.totalorder %s26, 3
    %p297 = por %p295, %p296
    %p299 = scmp.ne.s32.totalorder %s284, %s298
    %p300 = scmp.eq.s32.totalorder %s26, 0
    %p301 = por %p299, %p300
    %s302 = ssub.s32 %s27, %s39
    %p303 = scmp.eq.s32.totalorder %s302, 0
    %s305 = sadd.s32 %s304, 1
    %s306 = scalar_select %p303, %s304, %s305
    %p309 = pneg %p303
    %p310 = scmp.eq.s32.totalorder %s20, 3
    %p311 = por %p309, %p310
    %p312 = scmp.ne.s32.totalorder %s304, %s307
    %p313 = scmp.eq.s32.totalorder %s20, 0
    %p314 = por %p312, %p313
    %p315 = scmp.ne.s32.totalorder %s304, %s307
    %p316 = scmp.eq.s32.totalorder %s25, 3
    %p317 = por %p315, %p316
    %p318 = scmp.ne.s32.totalorder %s307, %s308
    %p319 = scmp.eq.s32.totalorder %s25, 0
    %p320 = por %p318, %p319
    %p321 = scmp.ne.s32.totalorder %s307, %s308
    %p322 = scmp.eq.s32.totalorder %s26, 3
    %p323 = por %p321, %p322
    %p325 = scmp.ne.s32.totalorder %s308, %s324
    %p326 = scmp.eq.s32.totalorder %s26, 0
    %p327 = por %p325, %p326
    %s328 = ssub.s32 %s27, %s39
    %p329 = scmp.eq.s32.totalorder %s328, 0
    %s331 = sadd.s32 %s330, 1
    %s332 = scalar_select %p329, %s330, %s331
    %p335 = pneg %p329
    %p336 = scmp.eq.s32.totalorder %s20, 3
    %p337 = por %p335, %p336
    %p338 = scmp.ne.s32.totalorder %s330, %s333
    %p339 = scmp.eq.s32.totalorder %s20, 0
    %p340 = por %p338, %p339
    %p341 = scmp.ne.s32.totalorder %s330, %s333
    %p342 = scmp.eq.s32.totalorder %s25, 3
    %p343 = por %p341, %p342
    %p344 = scmp.ne.s32.totalorder %s333, %s334
    %p345 = scmp.eq.s32.totalorder %s25, 0
    %p346 = por %p344, %p345
    %p347 = scmp.ne.s32.totalorder %s333, %s334
    %p348 = scmp.eq.s32.totalorder %s26, 3
    %p349 = por %p347, %p348
    %p351 = scmp.ne.s32.totalorder %s334, %s350
    %p352 = scmp.eq.s32.totalorder %s26, 0
    %p353 = por %p351, %p352
    %p354 = scmp.le.s32.totalorder 1, %s20
    %p355 = scmp.lt.s32.totalorder %s20, 5
    %p356 = pnand %p354, %p355
    %p357 = pneg %p356
    // Predicated region
    $region9: #{muti_freq_forward.1} parent=5 // pred_check
      _
    $region10: #{muti_freq_forward.1} parent=5 // pred_check_branch
      %359 = sbr.rel (%p356) target = $region12
    $region11: #{muti_freq_forward.1} parent=5 // pred_region
      %s360 = ssub.s32 %s20, 1
      // Predicated region
      $region13: #{muti_freq_forward.1} parent=11 // pred_check
        %p361 = pneg %p105
      $region14: #{muti_freq_forward.1} parent=11 // pred_check_branch
        %363 = sbr.rel (%p361) target = $region16
      $region15: #{muti_freq_forward.1} parent=11 // pred_region
        _
      $region16: #{muti_freq_forward.1} parent=11 // pred_fallthru
        _
      // Predicated region
      $region17: #{muti_freq_forward.1} parent=11 // pred_check
        %p364 = pneg %p126
      $region18: #{muti_freq_forward.1} parent=11 // pred_check_branch
        %366 = sbr.rel (%p364) target = $region20
      $region19: #{muti_freq_forward.1} parent=11 // pred_region
        _
      $region20: #{muti_freq_forward.1} parent=11 // pred_fallthru
        _
      // Predicated region
      $region21: #{muti_freq_forward.1} parent=11 // pred_check
        %p367 = pneg %p147
      $region22: #{muti_freq_forward.1} parent=11 // pred_check_branch
        %369 = sbr.rel (%p367) target = $region24
      $region23: #{muti_freq_forward.1} parent=11 // pred_region
        _
      $region24: #{muti_freq_forward.1} parent=11 // pred_fallthru
        _
      // Predicated region
      $region25: #{muti_freq_forward.1} parent=11 // pred_check
        %p370 = pneg %p168
      $region26: #{muti_freq_forward.1} parent=11 // pred_check_branch
        %372 = sbr.rel (%p370) target = $region28
      $region27: #{muti_freq_forward.1} parent=11 // pred_region
        _
      $region28: #{muti_freq_forward.1} parent=11 // pred_fallthru
        _
      // Predicated region
      $region29: #{muti_freq_forward.1} parent=11 // pred_check
        %p373 = pneg %p189
      $region30: #{muti_freq_forward.1} parent=11 // pred_check_branch
        %375 = sbr.rel (%p373) target = $region32
      $region31: #{muti_freq_forward.1} parent=11 // pred_region
        _
      $region32: #{muti_freq_forward.1} parent=11 // pred_fallthru
        _
      // Predicated region
      $region33: #{muti_freq_forward.1} parent=11 // pred_check
        %p376 = pneg %p210
      $region34: #{muti_freq_forward.1} parent=11 // pred_check_branch
        %378 = sbr.rel (%p376) target = $region36
      $region35: #{muti_freq_forward.1} parent=11 // pred_region
        _
      $region36: #{muti_freq_forward.1} parent=11 // pred_fallthru
        _
      // Predicated region
      $region37: #{muti_freq_forward.1} parent=11 // pred_check
        %p379 = pneg %p231
      $region38: #{muti_freq_forward.1} parent=11 // pred_check_branch
        %381 = sbr.rel (%p379) target = $region40
      $region39: #{muti_freq_forward.1} parent=11 // pred_region
        _
      $region40: #{muti_freq_forward.1} parent=11 // pred_fallthru
        _
      // Predicated region
      $region41: #{muti_freq_forward.1} parent=11 // pred_check
        %p382 = pneg %p252
      $region42: #{muti_freq_forward.1} parent=11 // pred_check_branch
        %384 = sbr.rel (%p382) target = $region44
      $region43: #{muti_freq_forward.1} parent=11 // pred_region
        _
      $region44: #{muti_freq_forward.1} parent=11 // pred_fallthru
        _
      // Predicated region
      $region45: #{muti_freq_forward.1} parent=11 // pred_check
        %p385 = pneg %p273
      $region46: #{muti_freq_forward.1} parent=11 // pred_check_branch
        %387 = sbr.rel (%p385) target = $region48
      $region47: #{muti_freq_forward.1} parent=11 // pred_region
        _
      $region48: #{muti_freq_forward.1} parent=11 // pred_fallthru
        _
      // Predicated region
      $region49: #{muti_freq_forward.1} parent=11 // pred_check
        %p388 = pneg %p294
      $region50: #{muti_freq_forward.1} parent=11 // pred_check_branch
        %390 = sbr.rel (%p388) target = $region52
      $region51: #{muti_freq_forward.1} parent=11 // pred_region
        _
      $region52: #{muti_freq_forward.1} parent=11 // pred_fallthru
        _
    $region12: #{muti_freq_forward.1} parent=5 // pred_fallthru
      _
    %p391 = scmp.lt.s32.totalorder %s20, 4
    // Predicated region
    $region53: #{muti_freq_forward.1} parent=5 // pred_check
      %p392 = pneg %p391
    $region54: #{muti_freq_forward.1} parent=5 // pred_check_branch
      %394 = sbr.rel (%p392) target = $region56
    $region55: #{muti_freq_forward.1} parent=5 // pred_region
      // Predicated region
      $region57: #{muti_freq_forward.1} parent=55 // pred_check
        %p395 = pneg %p52
      $region58: #{muti_freq_forward.1} parent=55 // pred_check_branch
        %397 = sbr.rel (%p395) target = $region60
      $region59: #{muti_freq_forward.1} parent=55 // pred_region
        %p398 = scmp.lt.s32.totalorder %s27, 1
        %s399 = scalar_select %p398, %s27, 1
        %s400 = smul.addr %s399, 2
        %s401 = smul.addr %s400, 4
        %s402 = scalar_lea.vmem %s0, %s401
      $region60: #{muti_freq_forward.1} parent=55 // pred_fallthru
        _
      // Predicated region
      $region61: #{muti_freq_forward.1} parent=55 // pred_check
        %p403 = pneg %p78
      $region62: #{muti_freq_forward.1} parent=55 // pred_check_branch
        %405 = sbr.rel (%p403) target = $region64
      $region63: #{muti_freq_forward.1} parent=55 // pred_region
        %p406 = scmp.lt.s32.totalorder %s27, 1
        %s407 = scalar_select %p406, %s27, 1
        %s408 = smul.addr %s407, 4
        %s409 = scalar_lea.vmem %s1, %s408
      $region64: #{muti_freq_forward.1} parent=55 // pred_fallthru
        _
    $region56: #{muti_freq_forward.1} parent=5 // pred_fallthru
      _
    %p410 = scmp.le.s32.totalorder 1, %s20
    %p411 = scmp.lt.s32.totalorder %s20, 5
    %p412 = pnand %p410, %p411
    %p413 = pneg %p412
    // Predicated region
    $region65: #{muti_freq_forward.1} parent=5 // pred_check
      _
    $region66: #{muti_freq_forward.1} parent=5 // pred_check_branch
      %415 = sbr.rel (%p412) target = $region68
    $region67: #{muti_freq_forward.1} parent=5 // pred_region
      %s416 = ssub.s32 %s20, 1
      %p417 = scmp.lt.s32.totalorder %s29, 1
      %s418 = scalar_select %p417, %s29, 1
      %s419 = smul.addr %s418, 2
      %s420 = smul.addr %s419, 4
      %s421 = scalar_lea.vmem %s0, %s420
      %p422 = pneg %p58
      %p423 = pneg %p55
      %p424 = scmp.lt.s32.totalorder %s29, 1
      %s425 = scalar_select %p424, %s29, 1
      %s426 = smul.addr %s425, 4
      %s427 = scalar_lea.vmem %s1, %s426
      %p428 = pneg %p84
      %p429 = pneg %p81
      %p430 = pneg %p105
      %p431 = pneg %p102
      %p432 = pneg %p126
      %p433 = pneg %p123
      %p434 = pneg %p147
      %p435 = pneg %p144
      %p436 = pneg %p168
      %p437 = pneg %p165
      %p438 = pneg %p189
      %p439 = pneg %p186
      %p440 = pneg %p210
      %p441 = pneg %p207
      %p442 = pneg %p231
      %p443 = pneg %p228
      %p444 = pneg %p252
      %p445 = pneg %p249
      %p446 = pneg %p273
      %p447 = pneg %p270
      %p448 = pneg %p294
      %p449 = pneg %p291
      %p450 = pneg %p320
      %p451 = pneg %p317
      %p452 = scmp.lt.s32.totalorder %s29, 1
      %s453 = scalar_select %p452, %s29, 1
      %s454 = smul.addr %s453, 2
      %s455 = smul.addr %s454, 4
      %s456 = scalar_lea.vmem %s12, %s455
      %p457 = pneg %p346
      %p458 = pneg %p343
      %p459 = scmp.lt.s32.totalorder %s29, 1
      %s460 = scalar_select %p459, %s29, 1
      %s461 = smul.addr %s460, 4
      %s462 = scalar_lea.vmem %s13, %s461
      %p463 = scmp.lt.s32.totalorder %s29, 1
      %s464 = scalar_select %p463, %s29, 1
      %s465 = smul.addr %s464, 2
      %s466 = smul.addr %s465, 4
      %s467 = scalar_lea.vmem %s0, %s466
      %p468 = scmp.lt.s32.totalorder %s29, 1
      %s469 = scalar_select %p468, %s29, 1
      %s470 = smul.addr %s469, 4
      %s471 = scalar_lea.vmem %s1, %s470
      %p472 = scmp.lt.s32.totalorder %s29, 1
      %s473 = scalar_select %p472, %s29, 1
      %s474 = smul.addr %s473, 2
      %s475 = smul.addr %s474, 4
      %s476 = scalar_lea.vmem %s12, %s475
      %p477 = scmp.lt.s32.totalorder %s29, 1
      %s478 = scalar_select %p477, %s29, 1
      %s479 = smul.addr %s478, 4
      %s480 = scalar_lea.vmem %s13, %s479
      %p481 = scmp.eq.s32.totalorder %s30, 0
      // Predicated region
      $region69: #{muti_freq_forward.1} parent=67 // pred_check
        %p482 = pneg %p481
      $region70: #{muti_freq_forward.1} parent=67 // pred_check_branch
        %484 = sbr.rel (%p482) target = $region72
      $region71: #{muti_freq_forward.1} parent=67 // pred_region
        %v485 = vlaneseq
        %v486 = vand.u32 %v485, 127
        %v487 = vadd.s32 %v486, 128
        %v488 = vld [vmem:[%s11] sm:$0x3]
        %v489 = vld [vmem:[%s467] sm:$0xff]
        %v490 = vunpack.c.l.bf16 %v489
        %v491 = vunpack.c.h.bf16 %v489
        %v492 = vlaneseq
        %v493 = vshrl.u32 %v492, 7
        %v494 = vmul.u32 %v486, 2
        %v495 = vsub.s32 %v493, %v494
        %vm496 = vcmp.eq.s32.totalorder %v495, 0
        %vm497 = vcmp.eq.s32.totalorder %v495, 1
        %vm498 = vmor %vm496, %vm497
        %v499 = vsel %vm498, 1, 0
        %v500 = vcvt.s32.f32 %v499
        %v501 = vadd.s32 %v495, 8
        %vm502 = vcmp.eq.s32.totalorder %v501, 0
        %vm503 = vcmp.eq.s32.totalorder %v501, 1
        %vm504 = vmor %vm502, %vm503
        %v505 = vsel %vm504, 1, 0
        %v506 = vcvt.s32.f32 %v505
        %vm507 = vcmask 64512
        %v509 = vsel %vm507, %v500, 0
        %511 = vmatprep.subr.mxu0 0.0
        %512 = vmatpush1.msra.mxu0 0.0
        %513 = vmatprep.subr.mxu0 0.0
        %514 = vmatpush1.msra.mxu0 0.0
        %515 = vmatprep.subr.mxu0 0.0
        %516 = vmatpush1.msra.mxu0 0.0
        %517 = vmatprep.subr.mxu0 0.0
        %518 = vmatpush1.msra.mxu0 0.0
        %519 = vmatprep.subr.mxu0 0.0
        %520 = vmatpush1.msra.mxu0 0.0
        %521 = vmatprep.subr.mxu0 0.0
        %522 = vmatpush1.msra.mxu0 0.0
        %523 = vmatprep.subr.mxu0 0.0
        %524 = vmatpush1.msra.mxu0 0.0
        %525 = vmatprep.subr.mxu0 0.0
        %526 = vmatpush1.msra.mxu0 0.0
        %527 = vmatprep.subr.mxu0 0.0
        %528 = vmatpush1.msra.mxu0 0.0
        %529 = vmatprep.subr.mxu0 0.0
        %530 = vmatpush1.msra.mxu0 0.0
        %531 = vmatprep.subr.mxu0 0.0
        %532 = vmatpush1.msra.mxu0 0.0
        %533 = vmatprep.subr.mxu0 0.0
        %534 = vmatpush1.msra.mxu0 0.0
        %535 = vmatprep.subr.mxu0 0.0
        %536 = vmatpush1.msra.mxu0 0.0
        %537 = vmatprep.subr.mxu0 0.0
        %538 = vmatpush1.msra.mxu0 0.0
        %539 = vmatprep.subr.mxu0 0.0
        %540 = vmatpush1.msra.mxu0 0.0
        %541 = vmatprep.subr.mxu0 %v491
        %542 = vmatpush1.msra.mxu0 %v490
        %543 = vmatprep.subr.mxu0 0.0
        %544 = vmatpush2.msra.mxu0 0.0
        %545 = vmatprep.subr.mxu0 0.0
        %546 = vmatpush2.msra.mxu0 0.0
        %547 = vmatprep.subr.mxu0 0.0
        %548 = vmatpush2.msra.mxu0 0.0
        %549 = vmatprep.subr.mxu0 0.0
        %550 = vmatpush2.msra.mxu0 0.0
        %551 = vmatprep.subr.mxu0 0.0
        %552 = vmatpush2.msra.mxu0 0.0
        %553 = vmatprep.subr.mxu0 0.0
        %554 = vmatpush2.msra.mxu0 0.0
        %555 = vmatprep.subr.mxu0 0.0
        %556 = vmatpush2.msra.mxu0 0.0
        %557 = vmatprep.subr.mxu0 0.0
        %558 = vmatpush2.msra.mxu0 0.0
        %559 = vmatprep.subr.mxu0 0.0
        %560 = vmatpush2.msra.mxu0 0.0
        %561 = vmatprep.subr.mxu0 0.0
        %562 = vmatpush2.msra.mxu0 0.0
        %563 = vmatprep.subr.mxu0 0.0
        %564 = vmatpush2.msra.mxu0 0.0
        %565 = vmatprep.subr.mxu0 0.0
        %566 = vmatpush2.msra.mxu0 0.0
        %567 = vmatprep.subr.mxu0 0.0
        %568 = vmatpush2.msra.mxu0 0.0
        %569 = vmatprep.subr.mxu0 0.0
        %570 = vmatpush2.msra.mxu0 0.0
        %571 = vmatprep.subr.mxu0 0.0
        %572 = vmatpush2.msra.mxu0 0.0
        %573 = vmatprep.subr.mxu0 0.0
        %574 = vmatpush2.msra.mxu0 0.0
        %575 = vmatprep.mubr.f32.mxu0 0.0
        %576 = vmatmul.mubr.f32.gmra.mxu0 %v509
        %v577 = vpop.f32.mrf.mxu0
        %v578 = vadd.f32 0.0, %v577
        %v579 = vpop.f32.mrf.mxu0
        %v580 = vadd.f32 0.0, %v579
        %581 = vdwg.mxu0
        %v583 = vsel %vm507, %v506, 0
        %585 = vmatprep.subr.mxu0 0.0
        %586 = vmatpush1.msra.mxu0 0.0
        %587 = vmatprep.subr.mxu0 0.0
        %588 = vmatpush1.msra.mxu0 0.0
        %589 = vmatprep.subr.mxu0 0.0
        %590 = vmatpush1.msra.mxu0 0.0
        %591 = vmatprep.subr.mxu0 0.0
        %592 = vmatpush1.msra.mxu0 0.0
        %593 = vmatprep.subr.mxu0 0.0
        %594 = vmatpush1.msra.mxu0 0.0
        %595 = vmatprep.subr.mxu0 0.0
        %596 = vmatpush1.msra.mxu0 0.0
        %597 = vmatprep.subr.mxu0 0.0
        %598 = vmatpush1.msra.mxu0 0.0
        %599 = vmatprep.subr.mxu0 0.0
        %600 = vmatpush1.msra.mxu0 0.0
        %601 = vmatprep.subr.mxu0 0.0
        %602 = vmatpush1.msra.mxu0 0.0
        %603 = vmatprep.subr.mxu0 0.0
        %604 = vmatpush1.msra.mxu0 0.0
        %605 = vmatprep.subr.mxu0 0.0
        %606 = vmatpush1.msra.mxu0 0.0
        %607 = vmatprep.subr.mxu0 0.0
        %608 = vmatpush1.msra.mxu0 0.0
        %609 = vmatprep.subr.mxu0 0.0
        %610 = vmatpush1.msra.mxu0 0.0
        %611 = vmatprep.subr.mxu0 0.0
        %612 = vmatpush1.msra.mxu0 0.0
        %613 = vmatprep.subr.mxu0 0.0
        %614 = vmatpush1.msra.mxu0 0.0
        %615 = vmatprep.subr.mxu0 %v491
        %616 = vmatpush1.msra.mxu0 %v490
        %617 = vmatprep.subr.mxu0 0.0
        %618 = vmatpush2.msra.mxu0 0.0
        %619 = vmatprep.subr.mxu0 0.0
        %620 = vmatpush2.msra.mxu0 0.0
        %621 = vmatprep.subr.mxu0 0.0
        %622 = vmatpush2.msra.mxu0 0.0
        %623 = vmatprep.subr.mxu0 0.0
        %624 = vmatpush2.msra.mxu0 0.0
        %625 = vmatprep.subr.mxu0 0.0
        %626 = vmatpush2.msra.mxu0 0.0
        %627 = vmatprep.subr.mxu0 0.0
        %628 = vmatpush2.msra.mxu0 0.0
        %629 = vmatprep.subr.mxu0 0.0
        %630 = vmatpush2.msra.mxu0 0.0
        %631 = vmatprep.subr.mxu0 0.0
        %632 = vmatpush2.msra.mxu0 0.0
        %633 = vmatprep.subr.mxu0 0.0
        %634 = vmatpush2.msra.mxu0 0.0
        %635 = vmatprep.subr.mxu0 0.0
        %636 = vmatpush2.msra.mxu0 0.0
        %637 = vmatprep.subr.mxu0 0.0
        %638 = vmatpush2.msra.mxu0 0.0
        %639 = vmatprep.subr.mxu0 0.0
        %640 = vmatpush2.msra.mxu0 0.0
        %641 = vmatprep.subr.mxu0 0.0
        %642 = vmatpush2.msra.mxu0 0.0
        %643 = vmatprep.subr.mxu0 0.0
        %644 = vmatpush2.msra.mxu0 0.0
        %645 = vmatprep.subr.mxu0 0.0
        %646 = vmatpush2.msra.mxu0 0.0
        %647 = vmatprep.subr.mxu0 0.0
        %648 = vmatpush2.msra.mxu0 0.0
        %649 = vmatprep.mubr.f32.mxu0 0.0
        %650 = vmatmul.mubr.f32.gmra.mxu0 %v583
        %v651 = vpop.f32.mrf.mxu0
        %v652 = vadd.f32 0.0, %v651
        %v653 = vpop.f32.mrf.mxu0
        %v654 = vadd.f32 0.0, %v653
        %655 = vdwg.mxu0
        %v656 = vld [vmem:[%s2] sm:$0xff]
        %658 = vset.pattern.permute.xlu0 4
        %659 = vperm.xlu0 %658, %v656
        %v660 = vpop.permute.xlu0 %659
        %v662 = vmul.f32 %v578, %v660
        %v663 = vmul.f32 %v580, %v660
        %665 = vrot.lane.b32.xlu0 %v580, 17
        %v666 = vpop.permute.xlu0 %665
        %669 = vrot.lane.b32.xlu0 %v578, 17
        %v670 = vpop.permute.xlu0 %669
        %vm671 = vcmask 138240
        %v672 = vsel %vm671, %v670, %v666
        %v675 = vsel %vm671, %v666, %v670
        %vm676 = vcmp.ge.s32.totalorder %v486, 16
        %vm677 = vcmp.ge.s32.totalorder %v487, 16
        %vm678 = vcmp.ge.s32.totalorder %v488, 1
        %v679 = vsel %vm678, 1, 0
        %v680 = vlaneseq
        %v681 = vshrl.u32 %v680, 7
        %v682 = vsub.s32 0, %v681
        %v683 = vrot.slane %v679, %v682
        %v684 = vlaneseq
        %v685 = vshrl.u32 %v684, 7
        %v686 = vsub.s32 1, %v685
        %v687 = vrot.slane %v679, %v686
        %vm688 = vcmp.ne.s32.totalorder %v683, 0
        %vm689 = vcmp.ne.s32.totalorder %v687, 0
        %vm690 = vmand %vm676, %vm688
        %vm691 = vmand %vm677, %vm689
        %v692 = vsel %vm690, 1, 0
        %v693 = vsel %vm691, 1, 0
        %v694 = vlaneseq
        %v695 = vshrl.u32 %v694, 7
        %v696 = vsub.s32 0, %v695
        %v697 = vrot.slane %v692, %v696
        %v698 = vlaneseq
        %v699 = vshrl.u32 %v698, 7
        %v700 = vsub.s32 0, %v699
        %v701 = vrot.slane %v693, %v700
        %vm702 = vcmp.eq.s32.totalorder %v697, 1
        %vm703 = vcmp.eq.s32.totalorder %v701, 1
        %v704 = vsel %vm702, %v675, 0.0
        %v705 = vsel %vm703, %v672, 0.0
        %706 = vset.pattern.permute.xlu0 0
        %707 = vperm.xlu0 %706, %v656
        %v708 = vpop.permute.xlu0 %707
        %v710 = vmul.f32 %v704, %v708
        %v711 = vmul.f32 %v705, %v708
        %v712 = vadd.f32 %v662, %v710
        %v713 = vadd.f32 %v663, %v711
        %714 = vrot.lane.b32.xlu0 %v580, 16
        %v715 = vpop.permute.xlu0 %714
        %717 = vrot.lane.b32.xlu0 %v578, 16
        %v718 = vpop.permute.xlu0 %717
        %vm719 = vcmask 130048
        %v720 = vsel %vm719, %v718, %v715
        %v723 = vsel %vm719, %v715, %v718
        %v724 = vsel %vm676, 1, 0
        %v725 = vsel %vm677, 1, 0
        %vm726 = vcmp.eq.s32.totalorder %v724, 1
        %vm727 = vcmp.eq.s32.totalorder %v725, 1
        %v728 = vsel %vm726, %v723, 0.0
        %v729 = vsel %vm727, %v720, 0.0
        %730 = vset.pattern.permute.xlu0 1
        %731 = vperm.xlu0 %730, %v656
        %v732 = vpop.permute.xlu0 %731
        %v734 = vmul.f32 %v728, %v732
        %v735 = vmul.f32 %v729, %v732
        %v736 = vadd.f32 %v712, %v734
        %v737 = vadd.f32 %v713, %v735
        %738 = vrot.lane.b32.xlu0 %v580, 15
        %v739 = vpop.permute.xlu0 %738
        %741 = vrot.lane.b32.xlu0 %v578, 15
        %v742 = vpop.permute.xlu0 %741
        %vm743 = vcmask 121856
        %v744 = vsel %vm743, %v742, %v739
        %v747 = vsel %vm743, %v739, %v742
        %vm748 = vcmp.le.s32.totalorder %v488, 14
        %v749 = vsel %vm748, 1, 0
        %v750 = vlaneseq
        %v751 = vshrl.u32 %v750, 7
        %v752 = vsub.s32 0, %v751
        %v753 = vrot.slane %v749, %v752
        %v754 = vlaneseq
        %v755 = vshrl.u32 %v754, 7
        %v756 = vsub.s32 1, %v755
        %v757 = vrot.slane %v749, %v756
        %vm758 = vcmp.ne.s32.totalorder %v753, 0
        %vm759 = vcmp.ne.s32.totalorder %v757, 0
        %vm760 = vmand %vm676, %vm758
        %vm761 = vmand %vm677, %vm759
        %v762 = vsel %vm760, 1, 0
        %v763 = vsel %vm761, 1, 0
        %v764 = vlaneseq
        %v765 = vshrl.u32 %v764, 7
        %v766 = vsub.s32 0, %v765
        %v767 = vrot.slane %v762, %v766
        %v768 = vlaneseq
        %v769 = vshrl.u32 %v768, 7
        %v770 = vsub.s32 0, %v769
        %v771 = vrot.slane %v763, %v770
        %vm772 = vcmp.eq.s32.totalorder %v767, 1
        %vm773 = vcmp.eq.s32.totalorder %v771, 1
        %v774 = vsel %vm772, %v747, 0.0
        %v775 = vsel %vm773, %v744, 0.0
        %776 = vset.pattern.permute.xlu0 2
        %777 = vperm.xlu0 %776, %v656
        %v778 = vpop.permute.xlu0 %777
        %v780 = vmul.f32 %v774, %v778
        %v781 = vmul.f32 %v775, %v778
        %v782 = vadd.f32 %v736, %v780
        %v783 = vadd.f32 %v737, %v781
        %784 = vrot.lane.b32.xlu0 %v580, 1
        %v785 = vpop.permute.xlu0 %784
        %787 = vrot.lane.b32.xlu0 %v578, 1
        %v788 = vpop.permute.xlu0 %787
        %vm789 = vcmask 7168
        %v790 = vsel %vm789, %v788, %v785
        %v793 = vsel %vm789, %v785, %v788
        %vm794 = vcmp.eq.s32.totalorder %v683, 1
        %vm795 = vcmp.eq.s32.totalorder %v687, 1
        %v796 = vsel %vm794, %v793, 0.0
        %v797 = vsel %vm795, %v790, 0.0
        %798 = vset.pattern.permute.xlu0 3
        %799 = vperm.xlu0 %798, %v656
        %v800 = vpop.permute.xlu0 %799
        %v802 = vmul.f32 %v796, %v800
        %v803 = vmul.f32 %v797, %v800
        %v804 = vadd.f32 %v782, %v802
        %v805 = vadd.f32 %v783, %v803
        %806 = vrot.lane.b32.xlu0 %v578, 127
        %v807 = vpop.permute.xlu0 %806
        %808 = vrot.lane.b32.xlu0 %v580, 127
        %v809 = vpop.permute.xlu0 %808
        %vm810 = vcmask 1039360
        %v811 = vsel %vm810, %v807, %v809
        %v815 = vsel %vm810, %v809, %v807
        %vm816 = vcmp.eq.s32.totalorder %v753, 1
        %vm817 = vcmp.eq.s32.totalorder %v757, 1
        %v818 = vsel %vm816, %v811, 0.0
        %v819 = vsel %vm817, %v815, 0.0
        %820 = vset.pattern.permute.xlu0 5
        %821 = vperm.xlu0 %820, %v656
        %v822 = vpop.permute.xlu0 %821
        %v824 = vmul.f32 %v818, %v822
        %v825 = vmul.f32 %v819, %v822
        %v826 = vadd.f32 %v804, %v824
        %v827 = vadd.f32 %v805, %v825
        %828 = vrot.lane.b32.xlu0 %v578, 113
        %v829 = vpop.permute.xlu0 %828
        %830 = vrot.lane.b32.xlu0 %v580, 113
        %v831 = vpop.permute.xlu0 %830
        %vm832 = vcmask 924672
        %v833 = vsel %vm832, %v829, %v831
        %v837 = vsel %vm832, %v831, %v829
        %vm838 = vcmp.lt.s32.totalorder %v486, 240
        %vm839 = vcmp.lt.s32.totalorder %v487, 240
        %vm840 = vmand %vm838, %vm688
        %vm841 = vmand %vm839, %vm689
        %v842 = vsel %vm840, 1, 0
        %v843 = vsel %vm841, 1, 0
        %v844 = vlaneseq
        %v845 = vshrl.u32 %v844, 7
        %v846 = vsub.s32 0, %v845
        %v847 = vrot.slane %v842, %v846
        %v848 = vlaneseq
        %v849 = vshrl.u32 %v848, 7
        %v850 = vsub.s32 0, %v849
        %v851 = vrot.slane %v843, %v850
        %vm852 = vcmp.eq.s32.totalorder %v847, 1
        %vm853 = vcmp.eq.s32.totalorder %v851, 1
        %v854 = vsel %vm852, %v833, 0.0
        %v855 = vsel %vm853, %v837, 0.0
        %856 = vset.pattern.permute.xlu0 6
        %857 = vperm.xlu0 %856, %v656
        %v858 = vpop.permute.xlu0 %857
        %v860 = vmul.f32 %v854, %v858
        %v861 = vmul.f32 %v855, %v858
        %v862 = vadd.f32 %v826, %v860
        %v863 = vadd.f32 %v827, %v861
        %864 = vrot.lane.b32.xlu0 %v578, 112
        %v865 = vpop.permute.xlu0 %864
        %866 = vrot.lane.b32.xlu0 %v580, 112
        %v867 = vpop.permute.xlu0 %866
        %vm868 = vcmask 916480
        %v869 = vsel %vm868, %v865, %v867
        %v873 = vsel %vm868, %v867, %v865
        %v874 = vsel %vm838, 1, 0
        %v875 = vsel %vm839, 1, 0
        %vm876 = vcmp.eq.s32.totalorder %v874, 1
        %vm877 = vcmp.eq.s32.totalorder %v875, 1
        %v878 = vsel %vm876, %v869, 0.0
        %v879 = vsel %vm877, %v873, 0.0
        %880 = vset.pattern.permute.xlu0 7
        %881 = vperm.xlu0 %880, %v656
        %v882 = vpop.permute.xlu0 %881
        %v884 = vmul.f32 %v878, %v882
        %v885 = vmul.f32 %v879, %v882
        %v886 = vadd.f32 %v862, %v884
        %v887 = vadd.f32 %v863, %v885
        %888 = vrot.lane.b32.xlu0 %v578, 111
        %v889 = vpop.permute.xlu0 %888
        %890 = vrot.lane.b32.xlu0 %v580, 111
        %v891 = vpop.permute.xlu0 %890
        %vm892 = vcmask 908288
        %v893 = vsel %vm892, %v889, %v891
        %v897 = vsel %vm892, %v891, %v889
        %vm898 = vmand %vm838, %vm758
        %vm899 = vmand %vm839, %vm759
        %v900 = vsel %vm898, 1, 0
        %v901 = vsel %vm899, 1, 0
        %v902 = vlaneseq
        %v903 = vshrl.u32 %v902, 7
        %v904 = vsub.s32 0, %v903
        %v905 = vrot.slane %v900, %v904
        %v906 = vlaneseq
        %v907 = vshrl.u32 %v906, 7
        %v908 = vsub.s32 0, %v907
        %v909 = vrot.slane %v901, %v908
        %vm910 = vcmp.eq.s32.totalorder %v905, 1
        %vm911 = vcmp.eq.s32.totalorder %v909, 1
        %v912 = vsel %vm910, %v893, 0.0
        %v913 = vsel %vm911, %v897, 0.0
        %914 = vset.pattern.permute.xlu0 8
        %915 = vperm.xlu0 %914, %v656
        %v916 = vpop.permute.xlu0 %915
        %v918 = vmul.f32 %v912, %v916
        %v919 = vmul.f32 %v913, %v916
        %v920 = vadd.f32 %v886, %v918
        %v921 = vadd.f32 %v887, %v919
        %922 = vst [vmem:[#allocation2] sm:$0xff] %v920
        %923 = vst [vmem:[#allocation2 + $0x8] sm:$0xff] %v921
        %v924 = vld [vmem:[%s3] sm:$0xff]
        %926 = vset.pattern.permute.xlu0 4
        %927 = vperm.xlu0 %926, %v924
        %v928 = vpop.permute.xlu0 %927
        %v930 = vmul.f32 %v652, %v928
        %v931 = vmul.f32 %v654, %v928
        %933 = vrot.lane.b32.xlu0 %v654, 17
        %v934 = vpop.permute.xlu0 %933
        %937 = vrot.lane.b32.xlu0 %v652, 17
        %v938 = vpop.permute.xlu0 %937
        %v939 = vsel %vm671, %v938, %v934
        %v942 = vsel %vm671, %v934, %v938
        %v943 = vsel %vm702, %v942, 0.0
        %v944 = vsel %vm703, %v939, 0.0
        %945 = vset.pattern.permute.xlu0 0
        %946 = vperm.xlu0 %945, %v924
        %v947 = vpop.permute.xlu0 %946
        %v949 = vmul.f32 %v943, %v947
        %v950 = vmul.f32 %v944, %v947
        %v951 = vadd.f32 %v930, %v949
        %v952 = vadd.f32 %v931, %v950
        %953 = vrot.lane.b32.xlu0 %v654, 16
        %v954 = vpop.permute.xlu0 %953
        %956 = vrot.lane.b32.xlu0 %v652, 16
        %v957 = vpop.permute.xlu0 %956
        %v958 = vsel %vm719, %v957, %v954
        %v961 = vsel %vm719, %v954, %v957
        %v962 = vsel %vm726, %v961, 0.0
        %v963 = vsel %vm727, %v958, 0.0
        %964 = vset.pattern.permute.xlu0 1
        %965 = vperm.xlu0 %964, %v924
        %v966 = vpop.permute.xlu0 %965
        %v968 = vmul.f32 %v962, %v966
        %v969 = vmul.f32 %v963, %v966
        %v970 = vadd.f32 %v951, %v968
        %v971 = vadd.f32 %v952, %v969
        %972 = vrot.lane.b32.xlu0 %v654, 15
        %v973 = vpop.permute.xlu0 %972
        %975 = vrot.lane.b32.xlu0 %v652, 15
        %v976 = vpop.permute.xlu0 %975
        %v977 = vsel %vm743, %v976, %v973
        %v980 = vsel %vm743, %v973, %v976
        %v981 = vsel %vm772, %v980, 0.0
        %v982 = vsel %vm773, %v977, 0.0
        %983 = vset.pattern.permute.xlu0 2
        %984 = vperm.xlu0 %983, %v924
        %v985 = vpop.permute.xlu0 %984
        %v987 = vmul.f32 %v981, %v985
        %v988 = vmul.f32 %v982, %v985
        %v989 = vadd.f32 %v970, %v987
        %v990 = vadd.f32 %v971, %v988
        %991 = vrot.lane.b32.xlu0 %v654, 1
        %v992 = vpop.permute.xlu0 %991
        %994 = vrot.lane.b32.xlu0 %v652, 1
        %v995 = vpop.permute.xlu0 %994
        %v996 = vsel %vm789, %v995, %v992
        %v999 = vsel %vm789, %v992, %v995
        %v1000 = vsel %vm794, %v999, 0.0
        %v1001 = vsel %vm795, %v996, 0.0
        %1002 = vset.pattern.permute.xlu0 3
        %1003 = vperm.xlu0 %1002, %v924
        %v1004 = vpop.permute.xlu0 %1003
        %v1006 = vmul.f32 %v1000, %v1004
        %v1007 = vmul.f32 %v1001, %v1004
        %v1008 = vadd.f32 %v989, %v1006
        %v1009 = vadd.f32 %v990, %v1007
        %1010 = vrot.lane.b32.xlu0 %v652, 127
        %v1011 = vpop.permute.xlu0 %1010
        %1012 = vrot.lane.b32.xlu0 %v654, 127
        %v1013 = vpop.permute.xlu0 %1012
        %v1014 = vsel %vm810, %v1011, %v1013
        %v1018 = vsel %vm810, %v1013, %v1011
        %v1019 = vsel %vm816, %v1014, 0.0
        %v1020 = vsel %vm817, %v1018, 0.0
        %1021 = vset.pattern.permute.xlu0 5
        %1022 = vperm.xlu0 %1021, %v924
        %v1023 = vpop.permute.xlu0 %1022
        %v1025 = vmul.f32 %v1019, %v1023
        %v1026 = vmul.f32 %v1020, %v1023
        %v1027 = vadd.f32 %v1008, %v1025
        %v1028 = vadd.f32 %v1009, %v1026
        %1029 = vrot.lane.b32.xlu0 %v652, 113
        %v1030 = vpop.permute.xlu0 %1029
        %1031 = vrot.lane.b32.xlu0 %v654, 113
        %v1032 = vpop.permute.xlu0 %1031
        %v1033 = vsel %vm832, %v1030, %v1032
        %v1037 = vsel %vm832, %v1032, %v1030
        %v1038 = vsel %vm852, %v1033, 0.0
        %v1039 = vsel %vm853, %v1037, 0.0
        %1040 = vset.pattern.permute.xlu0 6
        %1041 = vperm.xlu0 %1040, %v924
        %v1042 = vpop.permute.xlu0 %1041
        %v1044 = vmul.f32 %v1038, %v1042
        %v1045 = vmul.f32 %v1039, %v1042
        %v1046 = vadd.f32 %v1027, %v1044
        %v1047 = vadd.f32 %v1028, %v1045
        %1048 = vrot.lane.b32.xlu0 %v652, 112
        %v1049 = vpop.permute.xlu0 %1048
        %1050 = vrot.lane.b32.xlu0 %v654, 112
        %v1051 = vpop.permute.xlu0 %1050
        %v1052 = vsel %vm868, %v1049, %v1051
        %v1056 = vsel %vm868, %v1051, %v1049
        %v1057 = vsel %vm876, %v1052, 0.0
        %v1058 = vsel %vm877, %v1056, 0.0
        %1059 = vset.pattern.permute.xlu0 7
        %1060 = vperm.xlu0 %1059, %v924
        %v1061 = vpop.permute.xlu0 %1060
        %v1063 = vmul.f32 %v1057, %v1061
        %v1064 = vmul.f32 %v1058, %v1061
        %v1065 = vadd.f32 %v1046, %v1063
        %v1066 = vadd.f32 %v1047, %v1064
        %1067 = vrot.lane.b32.xlu0 %v652, 111
        %v1068 = vpop.permute.xlu0 %1067
        %1069 = vrot.lane.b32.xlu0 %v654, 111
        %v1070 = vpop.permute.xlu0 %1069
        %v1071 = vsel %vm892, %v1068, %v1070
        %v1075 = vsel %vm892, %v1070, %v1068
        %v1076 = vsel %vm910, %v1071, 0.0
        %v1077 = vsel %vm911, %v1075, 0.0
        %1078 = vset.pattern.permute.xlu0 8
        %1079 = vperm.xlu0 %1078, %v924
        %v1080 = vpop.permute.xlu0 %1079
        %v1082 = vmul.f32 %v1076, %v1080
        %v1083 = vmul.f32 %v1077, %v1080
        %v1084 = vadd.f32 %v1065, %v1082
        %v1085 = vadd.f32 %v1066, %v1083
        %1086 = vst [vmem:[#allocation3] sm:$0xff] %v1084
        %1087 = vst [vmem:[#allocation3 + $0x8] sm:$0xff] %v1085
        %v1088 = vld [vmem:[%s471] sm:$0xf]
        %v1089 = vunpack.c.l.bf16 %v1088
        %v1090 = vld [vmem:[%s5] sm:$0xff]
        %v1091 = vld [vmem:[%s6] sm:$0xff]
        %1093 = vset.pattern.permute.xlu0 0
        %1094 = vperm.xlu0 %1093, %v1091
        %v1095 = vpop.permute.xlu0 %1094
        %v1098 = vsel %vm507, %v1090, 0
        %1100 = vmatprep.subr.mxu0 0.0
        %1101 = vmatpush1.msra.mxu0 0.0
        %1102 = vmatprep.subr.mxu0 0.0
        %1103 = vmatpush1.msra.mxu0 0.0
        %1104 = vmatprep.subr.mxu0 0.0
        %1105 = vmatpush1.msra.mxu0 0.0
        %1106 = vmatprep.subr.mxu0 0.0
        %1107 = vmatpush1.msra.mxu0 0.0
        %1108 = vmatprep.subr.mxu0 0.0
        %1109 = vmatpush1.msra.mxu0 0.0
        %1110 = vmatprep.subr.mxu0 0.0
        %1111 = vmatpush1.msra.mxu0 0.0
        %1112 = vmatprep.subr.mxu0 0.0
        %1113 = vmatpush1.msra.mxu0 0.0
        %1114 = vmatprep.subr.mxu0 0.0
        %1115 = vmatpush1.msra.mxu0 0.0
        %1116 = vmatprep.subr.mxu0 0.0
        %1117 = vmatpush1.msra.mxu0 0.0
        %1118 = vmatprep.subr.mxu0 0.0
        %1119 = vmatpush1.msra.mxu0 0.0
        %1120 = vmatprep.subr.mxu0 0.0
        %1121 = vmatpush1.msra.mxu0 0.0
        %1122 = vmatprep.subr.mxu0 0.0
        %1123 = vmatpush1.msra.mxu0 0.0
        %1124 = vmatprep.subr.mxu0 0.0
        %1125 = vmatpush1.msra.mxu0 0.0
        %1126 = vmatprep.subr.mxu0 0.0
        %1127 = vmatpush1.msra.mxu0 0.0
        %1128 = vmatprep.subr.mxu0 0.0
        %1129 = vmatpush1.msra.mxu0 0.0
        %1130 = vmatprep.subr.mxu0 0.0
        %1131 = vmatpush1.msra.mxu0 %v1089
        %1132 = vmatprep.subr.mxu0 0.0
        %1133 = vmatpush2.msra.mxu0 0.0
        %1134 = vmatprep.subr.mxu0 0.0
        %1135 = vmatpush2.msra.mxu0 0.0
        %1136 = vmatprep.subr.mxu0 0.0
        %1137 = vmatpush2.msra.mxu0 0.0
        %1138 = vmatprep.subr.mxu0 0.0
        %1139 = vmatpush2.msra.mxu0 0.0
        %1140 = vmatprep.subr.mxu0 0.0
        %1141 = vmatpush2.msra.mxu0 0.0
        %1142 = vmatprep.subr.mxu0 0.0
        %1143 = vmatpush2.msra.mxu0 0.0
        %1144 = vmatprep.subr.mxu0 0.0
        %1145 = vmatpush2.msra.mxu0 0.0
        %1146 = vmatprep.subr.mxu0 0.0
        %1147 = vmatpush2.msra.mxu0 0.0
        %1148 = vmatprep.subr.mxu0 0.0
        %1149 = vmatpush2.msra.mxu0 0.0
        %1150 = vmatprep.subr.mxu0 0.0
        %1151 = vmatpush2.msra.mxu0 0.0
        %1152 = vmatprep.subr.mxu0 0.0
        %1153 = vmatpush2.msra.mxu0 0.0
        %1154 = vmatprep.subr.mxu0 0.0
        %1155 = vmatpush2.msra.mxu0 0.0
        %1156 = vmatprep.subr.mxu0 0.0
        %1157 = vmatpush2.msra.mxu0 0.0
        %1158 = vmatprep.subr.mxu0 0.0
        %1159 = vmatpush2.msra.mxu0 0.0
        %1160 = vmatprep.subr.mxu0 0.0
        %1161 = vmatpush2.msra.mxu0 0.0
        %1162 = vmatprep.subr.mxu0 0.0
        %1163 = vmatpush2.msra.mxu0 0.0
        %1164 = vmatprep.mubr.f32.mxu0 0.0
        %1165 = vmatmul.mubr.f32.gmra.mxu0 %v1098
        %v1166 = vpop.f32.mrf.mxu0
        %v1167 = vadd.f32 %v1095, %v1166
        %v1168 = vpop.f32.mrf.mxu0
        %1169 = vdwg.mxu0
        %vm1170 = vcmask 523264
        %1171 = vst.msk [vmem:[#allocation4] sm:$0xff] %vm1170, %v1167
        %v1172 = vld [vmem:[%s7] sm:$0xff]
        %v1173 = vld [vmem:[%s8] sm:$0xff]
        %1175 = vset.pattern.permute.xlu0 0
        %1176 = vperm.xlu0 %1175, %v1173
        %v1177 = vpop.permute.xlu0 %1176
        %v1180 = vsel %vm507, %v1172, 0
        %1182 = vmatprep.subr.mxu0 0.0
        %1183 = vmatpush1.msra.mxu0 0.0
        %1184 = vmatprep.subr.mxu0 0.0
        %1185 = vmatpush1.msra.mxu0 0.0
        %1186 = vmatprep.subr.mxu0 0.0
        %1187 = vmatpush1.msra.mxu0 0.0
        %1188 = vmatprep.subr.mxu0 0.0
        %1189 = vmatpush1.msra.mxu0 0.0
        %1190 = vmatprep.subr.mxu0 0.0
        %1191 = vmatpush1.msra.mxu0 0.0
        %1192 = vmatprep.subr.mxu0 0.0
        %1193 = vmatpush1.msra.mxu0 0.0
        %1194 = vmatprep.subr.mxu0 0.0
        %1195 = vmatpush1.msra.mxu0 0.0
        %1196 = vmatprep.subr.mxu0 0.0
        %1197 = vmatpush1.msra.mxu0 0.0
        %1198 = vmatprep.subr.mxu0 0.0
        %1199 = vmatpush1.msra.mxu0 0.0
        %1200 = vmatprep.subr.mxu0 0.0
        %1201 = vmatpush1.msra.mxu0 0.0
        %1202 = vmatprep.subr.mxu0 0.0
        %1203 = vmatpush1.msra.mxu0 0.0
        %1204 = vmatprep.subr.mxu0 0.0
        %1205 = vmatpush1.msra.mxu0 0.0
        %1206 = vmatprep.subr.mxu0 0.0
        %1207 = vmatpush1.msra.mxu0 0.0
        %1208 = vmatprep.subr.mxu0 0.0
        %1209 = vmatpush1.msra.mxu0 0.0
        %1210 = vmatprep.subr.mxu0 0.0
        %1211 = vmatpush1.msra.mxu0 0.0
        %1212 = vmatprep.subr.mxu0 0.0
        %1213 = vmatpush1.msra.mxu0 %v1089
        %1214 = vmatprep.subr.mxu0 0.0
        %1215 = vmatpush2.msra.mxu0 0.0
        %1216 = vmatprep.subr.mxu0 0.0
        %1217 = vmatpush2.msra.mxu0 0.0
        %1218 = vmatprep.subr.mxu0 0.0
        %1219 = vmatpush2.msra.mxu0 0.0
        %1220 = vmatprep.subr.mxu0 0.0
        %1221 = vmatpush2.msra.mxu0 0.0
        %1222 = vmatprep.subr.mxu0 0.0
        %1223 = vmatpush2.msra.mxu0 0.0
        %1224 = vmatprep.subr.mxu0 0.0
        %1225 = vmatpush2.msra.mxu0 0.0
        %1226 = vmatprep.subr.mxu0 0.0
        %1227 = vmatpush2.msra.mxu0 0.0
        %1228 = vmatprep.subr.mxu0 0.0
        %1229 = vmatpush2.msra.mxu0 0.0
        %1230 = vmatprep.subr.mxu0 0.0
        %1231 = vmatpush2.msra.mxu0 0.0
        %1232 = vmatprep.subr.mxu0 0.0
        %1233 = vmatpush2.msra.mxu0 0.0
        %1234 = vmatprep.subr.mxu0 0.0
        %1235 = vmatpush2.msra.mxu0 0.0
        %1236 = vmatprep.subr.mxu0 0.0
        %1237 = vmatpush2.msra.mxu0 0.0
        %1238 = vmatprep.subr.mxu0 0.0
        %1239 = vmatpush2.msra.mxu0 0.0
        %1240 = vmatprep.subr.mxu0 0.0
        %1241 = vmatpush2.msra.mxu0 0.0
        %1242 = vmatprep.subr.mxu0 0.0
        %1243 = vmatpush2.msra.mxu0 0.0
        %1244 = vmatprep.subr.mxu0 0.0
        %1245 = vmatpush2.msra.mxu0 0.0
        %1246 = vmatprep.mubr.f32.mxu0 0.0
        %1247 = vmatmul.mubr.f32.gmra.mxu0 %v1180
        %v1248 = vpop.f32.mrf.mxu0
        %v1249 = vadd.f32 %v1177, %v1248
        %v1250 = vpop.f32.mrf.mxu0
        %1251 = vdwg.mxu0
        %1252 = vxpose.xlu0.b32.start [1/16] %v1249, 128
        %1253 = vxpose.xlu0.b32.cont [2/16] 0.0, 128
        %1254 = vxpose.xlu0.b32.cont [3/16] 0.0, 128
        %1255 = vxpose.xlu0.b32.cont [4/16] 0.0, 128
        %1256 = vxpose.xlu0.b32.cont [5/16] 0.0, 128
        %1257 = vxpose.xlu0.b32.cont [6/16] 0.0, 128
        %1258 = vxpose.xlu0.b32.cont [7/16] 0.0, 128
        %1259 = vxpose.xlu0.b32.cont [8/16] 0.0, 128
        %1260 = vxpose.xlu0.b32.cont [9/16] 0.0, 128
        %1261 = vxpose.xlu0.b32.cont [10/16] 0.0, 128
        %1262 = vxpose.xlu0.b32.cont [11/16] 0.0, 128
        %1263 = vxpose.xlu0.b32.cont [12/16] 0.0, 128
        %1264 = vxpose.xlu0.b32.cont [13/16] 0.0, 128
        %1265 = vxpose.xlu0.b32.cont [14/16] 0.0, 128
        %1266 = vxpose.xlu0.b32.cont [15/16] 0.0, 128
        %1267 = vxpose.xlu0.b32.end [16/16] 0.0, 128
        %v1268 = vpop.trf.xlu0
        %v1269 = vpop.trf.xlu0
        %v1270 = vpop.trf.xlu0
        %v1271 = vpop.trf.xlu0
        %v1272 = vpop.trf.xlu0
        %v1273 = vpop.trf.xlu0
        %v1274 = vpop.trf.xlu0
        %v1275 = vpop.trf.xlu0
        %v1276 = vpop.trf.xlu0
        %v1277 = vpop.trf.xlu0
        %v1278 = vpop.trf.xlu0
        %v1279 = vpop.trf.xlu0
        %v1280 = vpop.trf.xlu0
        %v1281 = vpop.trf.xlu0
        %v1282 = vpop.trf.xlu0
        %v1283 = vpop.trf.xlu0
        %1284 = vst.msk [vmem:[#allocation5] sm:$0xff] %vm507, %v1268
        %1285 = vst.msk [vmem:[#allocation5 + $0x8] sm:$0xff] %vm507, %v1269
        %1286 = vst.msk [vmem:[#allocation5 + $0x10] sm:$0xff] %vm507, %v1270
        %1287 = vst.msk [vmem:[#allocation5 + $0x18] sm:$0xff] %vm507, %v1271
        %1288 = vst.msk [vmem:[#allocation5 + $0x20] sm:$0xff] %vm507, %v1272
        %1289 = vst.msk [vmem:[#allocation5 + $0x28] sm:$0xff] %vm507, %v1273
        %1290 = vst.msk [vmem:[#allocation5 + $0x30] sm:$0xff] %vm507, %v1274
        %1291 = vst.msk [vmem:[#allocation5 + $0x38] sm:$0xff] %vm507, %v1275
        %1292 = vst.msk [vmem:[#allocation6] sm:$0xff] %vm1170, 0.0
      $region72: #{muti_freq_forward.1} parent=67 // pred_fallthru
        _
      %s1293 = smul.u32 %s30, 128
      %s1294 = sshra.s32 %s1293, 7
      %s1295 = sand.u32 %s1293, 127
      %s1296 = smul.addr %s1294, 8
      %s1297 = scalar_lea.vmem [#allocation2], %s1296
      %v1298 = vld [vmem:[%s1297] sm:$0xff]
      %v1299 = vld [vmem:[#allocation4] sm:$0xff]
      %1300 = vxpose.xlu0.b32.start [1/16] %v1298, 128
      %1301 = vxpose.xlu0.b32.cont [2/16] 0.0, 128
      %1302 = vxpose.xlu0.b32.cont [3/16] 0.0, 128
      %1303 = vxpose.xlu0.b32.cont [4/16] 0.0, 128
      %1304 = vxpose.xlu0.b32.cont [5/16] 0.0, 128
      %1305 = vxpose.xlu0.b32.cont [6/16] 0.0, 128
      %1306 = vxpose.xlu0.b32.cont [7/16] 0.0, 128
      %1307 = vxpose.xlu0.b32.cont [8/16] 0.0, 128
      %1308 = vxpose.xlu0.b32.cont [9/16] 0.0, 128
      %1309 = vxpose.xlu0.b32.cont [10/16] 0.0, 128
      %1310 = vxpose.xlu0.b32.cont [11/16] 0.0, 128
      %1311 = vxpose.xlu0.b32.cont [12/16] 0.0, 128
      %1312 = vxpose.xlu0.b32.cont [13/16] 0.0, 128
      %1313 = vxpose.xlu0.b32.cont [14/16] 0.0, 128
      %1314 = vxpose.xlu0.b32.cont [15/16] 0.0, 128
      %1315 = vxpose.xlu0.b32.end [16/16] 0.0, 128
      %v1316 = vpop.trf.xlu0
      %v1317 = vpop.trf.xlu0
      %v1318 = vpop.trf.xlu0
      %v1319 = vpop.trf.xlu0
      %v1320 = vpop.trf.xlu0
      %v1321 = vpop.trf.xlu0
      %v1322 = vpop.trf.xlu0
      %v1323 = vpop.trf.xlu0
      %v1324 = vpop.trf.xlu0
      %v1325 = vpop.trf.xlu0
      %v1326 = vpop.trf.xlu0
      %v1327 = vpop.trf.xlu0
      %v1328 = vpop.trf.xlu0
      %v1329 = vpop.trf.xlu0
      %v1330 = vpop.trf.xlu0
      %v1331 = vpop.trf.xlu0
      %vm1332 = vcmask 64512
      %v1334 = vsel %vm1332, %v1316, 0
      %v1337 = vsel %vm1332, %v1317, 0
      %v1340 = vsel %vm1332, %v1318, 0
      %v1343 = vsel %vm1332, %v1319, 0
      %v1346 = vsel %vm1332, %v1320, 0
      %v1349 = vsel %vm1332, %v1321, 0
      %v1352 = vsel %vm1332, %v1322, 0
      %v1355 = vsel %vm1332, %v1323, 0
      %v1358 = vsel %vm1332, %v1324, 0
      %v1361 = vsel %vm1332, %v1325, 0
      %v1364 = vsel %vm1332, %v1326, 0
      %v1367 = vsel %vm1332, %v1327, 0
      %v1370 = vsel %vm1332, %v1328, 0
      %v1373 = vsel %vm1332, %v1329, 0
      %v1376 = vsel %vm1332, %v1330, 0
      %v1379 = vsel %vm1332, %v1331, 0
      %1381 = vmatprep.subr.mxu0 0.0
      %1382 = vmatpush1.msra.mxu0 0.0
      %1383 = vmatprep.subr.mxu0 0.0
      %1384 = vmatpush1.msra.mxu0 0.0
      %1385 = vmatprep.subr.mxu0 0.0
      %1386 = vmatpush1.msra.mxu0 0.0
      %1387 = vmatprep.subr.mxu0 0.0
      %1388 = vmatpush1.msra.mxu0 0.0
      %1389 = vmatprep.subr.mxu0 0.0
      %1390 = vmatpush1.msra.mxu0 0.0
      %1391 = vmatprep.subr.mxu0 0.0
      %1392 = vmatpush1.msra.mxu0 0.0
      %1393 = vmatprep.subr.mxu0 0.0
      %1394 = vmatpush1.msra.mxu0 0.0
      %1395 = vmatprep.subr.mxu0 0.0
      %1396 = vmatpush1.msra.mxu0 0.0
      %1397 = vmatprep.subr.mxu0 0.0
      %1398 = vmatpush1.msra.mxu0 0.0
      %1399 = vmatprep.subr.mxu0 0.0
      %1400 = vmatpush1.msra.mxu0 0.0
      %1401 = vmatprep.subr.mxu0 0.0
      %1402 = vmatpush1.msra.mxu0 0.0
      %1403 = vmatprep.subr.mxu0 0.0
      %1404 = vmatpush1.msra.mxu0 0.0
      %1405 = vmatprep.subr.mxu0 0.0
      %1406 = vmatpush1.msra.mxu0 0.0
      %1407 = vmatprep.subr.mxu0 0.0
      %1408 = vmatpush1.msra.mxu0 0.0
      %1409 = vmatprep.subr.mxu0 0.0
      %1410 = vmatpush1.msra.mxu0 0.0
      %1411 = vmatprep.subr.mxu0 0.0
      %1412 = vmatpush1.msra.mxu0 %v1299
      %1413 = vmatprep.subr.mxu0 0.0
      %1414 = vmatpush2.msra.mxu0 0.0
      %1415 = vmatprep.subr.mxu0 0.0
      %1416 = vmatpush2.msra.mxu0 0.0
      %1417 = vmatprep.subr.mxu0 0.0
      %1418 = vmatpush2.msra.mxu0 0.0
      %1419 = vmatprep.subr.mxu0 0.0
      %1420 = vmatpush2.msra.mxu0 0.0
      %1421 = vmatprep.subr.mxu0 0.0
      %1422 = vmatpush2.msra.mxu0 0.0
      %1423 = vmatprep.subr.mxu0 0.0
      %1424 = vmatpush2.msra.mxu0 0.0
      %1425 = vmatprep.subr.mxu0 0.0
      %1426 = vmatpush2.msra.mxu0 0.0
      %1427 = vmatprep.subr.mxu0 0.0
      %1428 = vmatpush2.msra.mxu0 0.0
      %1429 = vmatprep.subr.mxu0 0.0
      %1430 = vmatpush2.msra.mxu0 0.0
      %1431 = vmatprep.subr.mxu0 0.0
      %1432 = vmatpush2.msra.mxu0 0.0
      %1433 = vmatprep.subr.mxu0 0.0
      %1434 = vmatpush2.msra.mxu0 0.0
      %1435 = vmatprep.subr.mxu0 0.0
      %1436 = vmatpush2.msra.mxu0 0.0
      %1437 = vmatprep.subr.mxu0 0.0
      %1438 = vmatpush2.msra.mxu0 0.0
      %1439 = vmatprep.subr.mxu0 0.0
      %1440 = vmatpush2.msra.mxu0 0.0
      %1441 = vmatprep.subr.mxu0 0.0
      %1442 = vmatpush2.msra.mxu0 0.0
      %1443 = vmatprep.subr.mxu0 0.0
      %1444 = vmatpush2.msra.mxu0 0.0
      %1445 = vmatprep.mubr.f32.mxu0 0.0
      %1446 = vmatmul.mubr.f32.gmra.mxu0 %v1334
      %v1447 = vpop.f32.mrf.mxu0
      %v1448 = vadd.f32 0.0, %v1447
      %v1449 = vpop.f32.mrf.mxu0
      %1450 = vmatprep.mubr.f32.mxu0 0.0
      %1451 = vmatmul.mubr.f32.gmra.mxu0 %v1337
      %v1452 = vpop.f32.mrf.mxu0
      %v1453 = vadd.f32 0.0, %v1452
      %v1454 = vpop.f32.mrf.mxu0
      %1455 = vmatprep.mubr.f32.mxu0 0.0
      %1456 = vmatmul.mubr.f32.gmra.mxu0 %v1340
      %v1457 = vpop.f32.mrf.mxu0
      %v1458 = vadd.f32 0.0, %v1457
      %v1459 = vpop.f32.mrf.mxu0
      %1460 = vmatprep.mubr.f32.mxu0 0.0
      %1461 = vmatmul.mubr.f32.gmra.mxu0 %v1343
      %v1462 = vpop.f32.mrf.mxu0
      %v1463 = vadd.f32 0.0, %v1462
      %v1464 = vpop.f32.mrf.mxu0
      %1465 = vmatprep.mubr.f32.mxu0 0.0
      %1466 = vmatmul.mubr.f32.gmra.mxu0 %v1346
      %v1467 = vpop.f32.mrf.mxu0
      %v1468 = vadd.f32 0.0, %v1467
      %v1469 = vpop.f32.mrf.mxu0
      %1470 = vmatprep.mubr.f32.mxu0 0.0
      %1471 = vmatmul.mubr.f32.gmra.mxu0 %v1349
      %v1472 = vpop.f32.mrf.mxu0
      %v1473 = vadd.f32 0.0, %v1472
      %v1474 = vpop.f32.mrf.mxu0
      %1475 = vmatprep.mubr.f32.mxu0 0.0
      %1476 = vmatmul.mubr.f32.gmra.mxu0 %v1352
      %v1477 = vpop.f32.mrf.mxu0
      %v1478 = vadd.f32 0.0, %v1477
      %v1479 = vpop.f32.mrf.mxu0
      %1480 = vmatprep.mubr.f32.mxu0 0.0
      %1481 = vmatmul.mubr.f32.gmra.mxu0 %v1355
      %v1482 = vpop.f32.mrf.mxu0
      %v1483 = vadd.f32 0.0, %v1482
      %v1484 = vpop.f32.mrf.mxu0
      %1485 = vmatprep.mubr.f32.mxu0 0.0
      %1486 = vmatmul.mubr.f32.gmra.mxu0 %v1358
      %v1487 = vpop.f32.mrf.mxu0
      %v1488 = vadd.f32 0.0, %v1487
      %v1489 = vpop.f32.mrf.mxu0
      %1490 = vmatprep.mubr.f32.mxu0 0.0
      %1491 = vmatmul.mubr.f32.gmra.mxu0 %v1361
      %v1492 = vpop.f32.mrf.mxu0
      %v1493 = vadd.f32 0.0, %v1492
      %v1494 = vpop.f32.mrf.mxu0
      %1495 = vmatprep.mubr.f32.mxu0 0.0
      %1496 = vmatmul.mubr.f32.gmra.mxu0 %v1364
      %v1497 = vpop.f32.mrf.mxu0
      %v1498 = vadd.f32 0.0, %v1497
      %v1499 = vpop.f32.mrf.mxu0
      %1500 = vmatprep.mubr.f32.mxu0 0.0
      %1501 = vmatmul.mubr.f32.gmra.mxu0 %v1367
      %v1502 = vpop.f32.mrf.mxu0
      %v1503 = vadd.f32 0.0, %v1502
      %v1504 = vpop.f32.mrf.mxu0
      %1505 = vmatprep.mubr.f32.mxu0 0.0
      %1506 = vmatmul.mubr.f32.gmra.mxu0 %v1370
      %v1507 = vpop.f32.mrf.mxu0
      %v1508 = vadd.f32 0.0, %v1507
      %v1509 = vpop.f32.mrf.mxu0
      %1510 = vmatprep.mubr.f32.mxu0 0.0
      %1511 = vmatmul.mubr.f32.gmra.mxu0 %v1373
      %v1512 = vpop.f32.mrf.mxu0
      %v1513 = vadd.f32 0.0, %v1512
      %v1514 = vpop.f32.mrf.mxu0
      %1515 = vmatprep.mubr.f32.mxu0 0.0
      %1516 = vmatmul.mubr.f32.gmra.mxu0 %v1376
      %v1517 = vpop.f32.mrf.mxu0
      %v1518 = vadd.f32 0.0, %v1517
      %v1519 = vpop.f32.mrf.mxu0
      %1520 = vmatprep.mubr.f32.mxu0 0.0
      %1521 = vmatmul.mubr.f32.gmra.mxu0 %v1379
      %v1522 = vpop.f32.mrf.mxu0
      %v1523 = vadd.f32 0.0, %v1522
      %v1524 = vpop.f32.mrf.mxu0
      %1525 = vdwg.mxu0
      %vm1526 = vcmask 523264
      %v1527 = vsel %vm1526, %v1448, -inf
      %1528 = vmax.xlane.f32.xlu0 %v1527
      %v1529 = vpop.xlane.xlu0 %1528
      %v1530 = vsel %vm1526, %v1453, -inf
      %1531 = vmax.xlane.f32.xlu0 %v1530
      %v1532 = vpop.xlane.xlu0 %1531
      %v1533 = vsel %vm1526, %v1458, -inf
      %1534 = vmax.xlane.f32.xlu0 %v1533
      %v1535 = vpop.xlane.xlu0 %1534
      %v1536 = vsel %vm1526, %v1463, -inf
      %1537 = vmax.xlane.f32.xlu0 %v1536
      %v1538 = vpop.xlane.xlu0 %1537
      %v1539 = vsel %vm1526, %v1468, -inf
      %1540 = vmax.xlane.f32.xlu0 %v1539
      %v1541 = vpop.xlane.xlu0 %1540
      %v1542 = vsel %vm1526, %v1473, -inf
      %1543 = vmax.xlane.f32.xlu0 %v1542
      %v1544 = vpop.xlane.xlu0 %1543
      %v1545 = vsel %vm1526, %v1478, -inf
      %1546 = vmax.xlane.f32.xlu0 %v1545
      %v1547 = vpop.xlane.xlu0 %1546
      %v1548 = vsel %vm1526, %v1483, -inf
      %1549 = vmax.xlane.f32.xlu0 %v1548
      %v1550 = vpop.xlane.xlu0 %1549
      %v1551 = vsel %vm1526, %v1488, -inf
      %1552 = vmax.xlane.f32.xlu0 %v1551
      %v1553 = vpop.xlane.xlu0 %1552
      %v1554 = vsel %vm1526, %v1493, -inf
      %1555 = vmax.xlane.f32.xlu0 %v1554
      %v1556 = vpop.xlane.xlu0 %1555
      %v1557 = vsel %vm1526, %v1498, -inf
      %1558 = vmax.xlane.f32.xlu0 %v1557
      %v1559 = vpop.xlane.xlu0 %1558
      %v1560 = vsel %vm1526, %v1503, -inf
      %1561 = vmax.xlane.f32.xlu0 %v1560
      %v1562 = vpop.xlane.xlu0 %1561
      %v1563 = vsel %vm1526, %v1508, -inf
      %1564 = vmax.xlane.f32.xlu0 %v1563
      %v1565 = vpop.xlane.xlu0 %1564
      %v1566 = vsel %vm1526, %v1513, -inf
      %1567 = vmax.xlane.f32.xlu0 %v1566
      %v1568 = vpop.xlane.xlu0 %1567
      %v1569 = vsel %vm1526, %v1518, -inf
      %1570 = vmax.xlane.f32.xlu0 %v1569
      %v1571 = vpop.xlane.xlu0 %1570
      %v1572 = vsel %vm1526, %v1523, -inf
      %1573 = vmax.xlane.f32.xlu0 %v1572
      %v1574 = vpop.xlane.xlu0 %1573
      %v1575 = vsub.f32 %v1448, %v1529
      %v1576 = vsub.f32 %v1453, %v1532
      %v1577 = vsub.f32 %v1458, %v1535
      %v1578 = vsub.f32 %v1463, %v1538
      %v1579 = vsub.f32 %v1468, %v1541
      %v1580 = vsub.f32 %v1473, %v1544
      %v1581 = vsub.f32 %v1478, %v1547
      %v1582 = vsub.f32 %v1483, %v1550
      %v1583 = vsub.f32 %v1488, %v1553
      %v1584 = vsub.f32 %v1493, %v1556
      %v1585 = vsub.f32 %v1498, %v1559
      %v1586 = vsub.f32 %v1503, %v1562
      %v1587 = vsub.f32 %v1508, %v1565
      %v1588 = vsub.f32 %v1513, %v1568
      %v1589 = vsub.f32 %v1518, %v1571
      %v1590 = vsub.f32 %v1523, %v1574
      %v1591 = vmul.f32 %v1575, 1.442695
      %v1592 = vpow.pop %v1591
      %v1593 = vmul.f32 %v1576, 1.442695
      %v1594 = vpow.pop %v1593
      %v1595 = vmul.f32 %v1577, 1.442695
      %v1596 = vpow.pop %v1595
      %v1597 = vmul.f32 %v1578, 1.442695
      %v1598 = vpow.pop %v1597
      %v1599 = vmul.f32 %v1579, 1.442695
      %v1600 = vpow.pop %v1599
      %v1601 = vmul.f32 %v1580, 1.442695
      %v1602 = vpow.pop %v1601
      %v1603 = vmul.f32 %v1581, 1.442695
      %v1604 = vpow.pop %v1603
      %v1605 = vmul.f32 %v1582, 1.442695
      %v1606 = vpow.pop %v1605
      %v1607 = vmul.f32 %v1583, 1.442695
      %v1608 = vpow.pop %v1607
      %v1609 = vmul.f32 %v1584, 1.442695
      %v1610 = vpow.pop %v1609
      %v1611 = vmul.f32 %v1585, 1.442695
      %v1612 = vpow.pop %v1611
      %v1613 = vmul.f32 %v1586, 1.442695
      %v1614 = vpow.pop %v1613
      %v1615 = vmul.f32 %v1587, 1.442695
      %v1616 = vpow.pop %v1615
      %v1617 = vmul.f32 %v1588, 1.442695
      %v1618 = vpow.pop %v1617
      %v1619 = vmul.f32 %v1589, 1.442695
      %v1620 = vpow.pop %v1619
      %v1621 = vmul.f32 %v1590, 1.442695
      %v1622 = vpow.pop %v1621
      %v1623 = vsel %vm1526, %v1592, 0.0
      %1624 = vadd.xlane.f32.xlu0 %v1623
      %v1625 = vpop.xlane.xlu0 %1624
      %v1626 = vsel %vm1526, %v1594, 0.0
      %1627 = vadd.xlane.f32.xlu0 %v1626
      %v1628 = vpop.xlane.xlu0 %1627
      %v1629 = vsel %vm1526, %v1596, 0.0
      %1630 = vadd.xlane.f32.xlu0 %v1629
      %v1631 = vpop.xlane.xlu0 %1630
      %v1632 = vsel %vm1526, %v1598, 0.0
      %1633 = vadd.xlane.f32.xlu0 %v1632
      %v1634 = vpop.xlane.xlu0 %1633
      %v1635 = vsel %vm1526, %v1600, 0.0
      %1636 = vadd.xlane.f32.xlu0 %v1635
      %v1637 = vpop.xlane.xlu0 %1636
      %v1638 = vsel %vm1526, %v1602, 0.0
      %1639 = vadd.xlane.f32.xlu0 %v1638
      %v1640 = vpop.xlane.xlu0 %1639
      %v1641 = vsel %vm1526, %v1604, 0.0
      %1642 = vadd.xlane.f32.xlu0 %v1641
      %v1643 = vpop.xlane.xlu0 %1642
      %v1644 = vsel %vm1526, %v1606, 0.0
      %1645 = vadd.xlane.f32.xlu0 %v1644
      %v1646 = vpop.xlane.xlu0 %1645
      %v1647 = vsel %vm1526, %v1608, 0.0
      %1648 = vadd.xlane.f32.xlu0 %v1647
      %v1649 = vpop.xlane.xlu0 %1648
      %v1650 = vsel %vm1526, %v1610, 0.0
      %1651 = vadd.xlane.f32.xlu0 %v1650
      %v1652 = vpop.xlane.xlu0 %1651
      %v1653 = vsel %vm1526, %v1612, 0.0
      %1654 = vadd.xlane.f32.xlu0 %v1653
      %v1655 = vpop.xlane.xlu0 %1654
      %v1656 = vsel %vm1526, %v1614, 0.0
      %1657 = vadd.xlane.f32.xlu0 %v1656
      %v1658 = vpop.xlane.xlu0 %1657
      %v1659 = vsel %vm1526, %v1616, 0.0
      %1660 = vadd.xlane.f32.xlu0 %v1659
      %v1661 = vpop.xlane.xlu0 %1660
      %v1662 = vsel %vm1526, %v1618, 0.0
      %1663 = vadd.xlane.f32.xlu0 %v1662
      %v1664 = vpop.xlane.xlu0 %1663
      %v1665 = vsel %vm1526, %v1620, 0.0
      %1666 = vadd.xlane.f32.xlu0 %v1665
      %v1667 = vpop.xlane.xlu0 %1666
      %v1668 = vsel %vm1526, %v1622, 0.0
      %1669 = vadd.xlane.f32.xlu0 %v1668
      %v1670 = vpop.xlane.xlu0 %1669
      %v1671 = vrcp.pop %v1625
      %v1672 = vrcp.pop %v1628
      %v1673 = vrcp.pop %v1631
      %v1674 = vrcp.pop %v1634
      %v1675 = vrcp.pop %v1637
      %v1676 = vrcp.pop %v1640
      %v1677 = vrcp.pop %v1643
      %v1678 = vrcp.pop %v1646
      %v1679 = vrcp.pop %v1649
      %v1680 = vrcp.pop %v1652
      %v1681 = vrcp.pop %v1655
      %v1682 = vrcp.pop %v1658
      %v1683 = vrcp.pop %v1661
      %v1684 = vrcp.pop %v1664
      %v1685 = vrcp.pop %v1667
      %v1686 = vrcp.pop %v1670
      %v1687 = vmul.f32 %v1671, 0.35355338
      %v1688 = vmul.f32 %v1672, 0.35355338
      %v1689 = vmul.f32 %v1673, 0.35355338
      %v1690 = vmul.f32 %v1674, 0.35355338
      %v1691 = vmul.f32 %v1675, 0.35355338
      %v1692 = vmul.f32 %v1676, 0.35355338
      %v1693 = vmul.f32 %v1677, 0.35355338
      %v1694 = vmul.f32 %v1678, 0.35355338
      %v1695 = vmul.f32 %v1679, 0.35355338
      %v1696 = vmul.f32 %v1680, 0.35355338
      %v1697 = vmul.f32 %v1681, 0.35355338
      %v1698 = vmul.f32 %v1682, 0.35355338
      %v1699 = vmul.f32 %v1683, 0.35355338
      %v1700 = vmul.f32 %v1684, 0.35355338
      %v1701 = vmul.f32 %v1685, 0.35355338
      %v1702 = vmul.f32 %v1686, 0.35355338
      %s1703 = smul.addr %s1294, 8
      %s1704 = scalar_lea.vmem [#allocation3], %s1703
      %v1705 = vld [vmem:[%s1704] sm:$0xff]
      %1706 = vxpose.xlu0.b32.start [1/16] %v1687, 128
      %1707 = vxpose.xlu0.b32.cont [2/16] %v1688, 128
      %1708 = vxpose.xlu0.b32.cont [3/16] %v1689, 128
      %1709 = vxpose.xlu0.b32.cont [4/16] %v1690, 128
      %1710 = vxpose.xlu0.b32.cont [5/16] %v1691, 128
      %1711 = vxpose.xlu0.b32.cont [6/16] %v1692, 128
      %1712 = vxpose.xlu0.b32.cont [7/16] %v1693, 128
      %1713 = vxpose.xlu0.b32.cont [8/16] %v1694, 128
      %1714 = vxpose.xlu0.b32.cont [9/16] %v1695, 128
      %1715 = vxpose.xlu0.b32.cont [10/16] %v1696, 128
      %1716 = vxpose.xlu0.b32.cont [11/16] %v1697, 128
      %1717 = vxpose.xlu0.b32.cont [12/16] %v1698, 128
      %1718 = vxpose.xlu0.b32.cont [13/16] %v1699, 128
      %1719 = vxpose.xlu0.b32.cont [14/16] %v1700, 128
      %1720 = vxpose.xlu0.b32.cont [15/16] %v1701, 128
      %1721 = vxpose.xlu0.b32.end [16/16] %v1702, 128
      %v1722 = vpop.trf.xlu0
      %v1723 = vpop.trf.xlu0
      %v1724 = vpop.trf.xlu0
      %v1725 = vpop.trf.xlu0
      %v1726 = vpop.trf.xlu0
      %v1727 = vpop.trf.xlu0
      %v1728 = vpop.trf.xlu0
      %v1729 = vpop.trf.xlu0
      %v1730 = vpop.trf.xlu0
      %v1731 = vpop.trf.xlu0
      %v1732 = vpop.trf.xlu0
      %v1733 = vpop.trf.xlu0
      %v1734 = vpop.trf.xlu0
      %v1735 = vpop.trf.xlu0
      %v1736 = vpop.trf.xlu0
      %v1737 = vpop.trf.xlu0
      %v1738 = vlaneseq
      %v1739 = vshrl.u32 %v1738, 7
      %v1740 = vsub.s32 0, %v1739
      %v1741 = vrot.slane %v1722, %v1740
      %v1742 = vmul.f32 %v1705, %v1741
      %v1743 = vld [vmem:[#allocation6] sm:$0xff]
      %1744 = vmatprep.subr.mxu0 0.0
      %1745 = vmatpush1.msra.mxu0 %v1622
      %1746 = vmatprep.subr.mxu0 0.0
      %1747 = vmatpush1.msra.mxu0 %v1620
      %1748 = vmatprep.subr.mxu0 0.0
      %1749 = vmatpush1.msra.mxu0 %v1618
      %1750 = vmatprep.subr.mxu0 0.0
      %1751 = vmatpush1.msra.mxu0 %v1616
      %1752 = vmatprep.subr.mxu0 0.0
      %1753 = vmatpush1.msra.mxu0 %v1614
      %1754 = vmatprep.subr.mxu0 0.0
      %1755 = vmatpush1.msra.mxu0 %v1612
      %1756 = vmatprep.subr.mxu0 0.0
      %1757 = vmatpush1.msra.mxu0 %v1610
      %1758 = vmatprep.subr.mxu0 0.0
      %1759 = vmatpush1.msra.mxu0 %v1608
      %1760 = vmatprep.subr.mxu0 0.0
      %1761 = vmatpush1.msra.mxu0 %v1606
      %1762 = vmatprep.subr.mxu0 0.0
      %1763 = vmatpush1.msra.mxu0 %v1604
      %1764 = vmatprep.subr.mxu0 0.0
      %1765 = vmatpush1.msra.mxu0 %v1602
      %1766 = vmatprep.subr.mxu0 0.0
      %1767 = vmatpush1.msra.mxu0 %v1600
      %1768 = vmatprep.subr.mxu0 0.0
      %1769 = vmatpush1.msra.mxu0 %v1598
      %1770 = vmatprep.subr.mxu0 0.0
      %1771 = vmatpush1.msra.mxu0 %v1596
      %1772 = vmatprep.subr.mxu0 0.0
      %1773 = vmatpush1.msra.mxu0 %v1594
      %1774 = vmatprep.subr.mxu0 0.0
      %1775 = vmatpush1.msra.mxu0 %v1592
      %1776 = vmatprep.subr.mxu0 0.0
      %1777 = vmatpush2.msra.mxu0 0.0
      %1778 = vmatprep.subr.mxu0 0.0
      %1779 = vmatpush2.msra.mxu0 0.0
      %1780 = vmatprep.subr.mxu0 0.0
      %1781 = vmatpush2.msra.mxu0 0.0
      %1782 = vmatprep.subr.mxu0 0.0
      %1783 = vmatpush2.msra.mxu0 0.0
      %1784 = vmatprep.subr.mxu0 0.0
      %1785 = vmatpush2.msra.mxu0 0.0
      %1786 = vmatprep.subr.mxu0 0.0
      %1787 = vmatpush2.msra.mxu0 0.0
      %1788 = vmatprep.subr.mxu0 0.0
      %1789 = vmatpush2.msra.mxu0 0.0
      %1790 = vmatprep.subr.mxu0 0.0
      %1791 = vmatpush2.msra.mxu0 0.0
      %1792 = vmatprep.subr.mxu0 0.0
      %1793 = vmatpush2.msra.mxu0 0.0
      %1794 = vmatprep.subr.mxu0 0.0
      %1795 = vmatpush2.msra.mxu0 0.0
      %1796 = vmatprep.subr.mxu0 0.0
      %1797 = vmatpush2.msra.mxu0 0.0
      %1798 = vmatprep.subr.mxu0 0.0
      %1799 = vmatpush2.msra.mxu0 0.0
      %1800 = vmatprep.subr.mxu0 0.0
      %1801 = vmatpush2.msra.mxu0 0.0
      %1802 = vmatprep.subr.mxu0 0.0
      %1803 = vmatpush2.msra.mxu0 0.0
      %1804 = vmatprep.subr.mxu0 0.0
      %1805 = vmatpush2.msra.mxu0 0.0
      %1806 = vmatprep.subr.mxu0 0.0
      %1807 = vmatpush2.msra.mxu0 0.0
      %1808 = vmatprep.mubr.f32.mxu0 0.0
      %1809 = vmatmul.mubr.f32.gmra.mxu0 %v1742
      %v1810 = vpop.f32.mrf.mxu0
      %v1811 = vadd.f32 0.0, %v1810
      %v1812 = vpop.f32.mrf.mxu0
      %1813 = vdwg.mxu0
      %v1814 = vadd.f32 %v1743, %v1811
      %1815 = vst.msk [vmem:[#allocation6] sm:$0xff] %vm1526, %v1814
      %v1816 = vld [vmem:[#allocation5] sm:$0xff]
      %v1817 = vld [vmem:[#allocation5 + $0x8] sm:$0xff]
      %v1818 = vld [vmem:[#allocation5 + $0x10] sm:$0xff]
      %v1819 = vld [vmem:[#allocation5 + $0x18] sm:$0xff]
      %v1820 = vld [vmem:[#allocation5 + $0x20] sm:$0xff]
      %v1821 = vld [vmem:[#allocation5 + $0x28] sm:$0xff]
      %v1822 = vld [vmem:[#allocation5 + $0x30] sm:$0xff]
      %v1823 = vld [vmem:[#allocation5 + $0x38] sm:$0xff]
      %v1825 = vsel %vm1526, %v1592, 0
      %v1828 = vsel %vm1526, %v1594, 0
      %v1831 = vsel %vm1526, %v1596, 0
      %v1834 = vsel %vm1526, %v1598, 0
      %v1837 = vsel %vm1526, %v1600, 0
      %v1840 = vsel %vm1526, %v1602, 0
      %v1843 = vsel %vm1526, %v1604, 0
      %v1846 = vsel %vm1526, %v1606, 0
      %v1849 = vsel %vm1526, %v1608, 0
      %v1852 = vsel %vm1526, %v1610, 0
      %v1855 = vsel %vm1526, %v1612, 0
      %v1858 = vsel %vm1526, %v1614, 0
      %v1861 = vsel %vm1526, %v1616, 0
      %v1864 = vsel %vm1526, %v1618, 0
      %v1867 = vsel %vm1526, %v1620, 0
      %v1870 = vsel %vm1526, %v1622, 0
      %1872 = vmatprep.subr.mxu0 0.0
      %1873 = vmatpush1.msra.mxu0 0.0
      %1874 = vmatprep.subr.mxu0 0.0
      %1875 = vmatpush1.msra.mxu0 0.0
      %1876 = vmatprep.subr.mxu0 0.0
      %1877 = vmatpush1.msra.mxu0 0.0
      %1878 = vmatprep.subr.mxu0 0.0
      %1879 = vmatpush1.msra.mxu0 0.0
      %1880 = vmatprep.subr.mxu0 0.0
      %1881 = vmatpush1.msra.mxu0 0.0
      %1882 = vmatprep.subr.mxu0 0.0
      %1883 = vmatpush1.msra.mxu0 0.0
      %1884 = vmatprep.subr.mxu0 0.0
      %1885 = vmatpush1.msra.mxu0 0.0
      %1886 = vmatprep.subr.mxu0 0.0
      %1887 = vmatpush1.msra.mxu0 0.0
      %1888 = vmatprep.subr.mxu0 0.0
      %1889 = vmatpush1.msra.mxu0 %v1823
      %1890 = vmatprep.subr.mxu0 0.0
      %1891 = vmatpush1.msra.mxu0 %v1822
      %1892 = vmatprep.subr.mxu0 0.0
      %1893 = vmatpush1.msra.mxu0 %v1821
      %1894 = vmatprep.subr.mxu0 0.0
      %1895 = vmatpush1.msra.mxu0 %v1820
      %1896 = vmatprep.subr.mxu0 0.0
      %1897 = vmatpush1.msra.mxu0 %v1819
      %1898 = vmatprep.subr.mxu0 0.0
      %1899 = vmatpush1.msra.mxu0 %v1818
      %1900 = vmatprep.subr.mxu0 0.0
      %1901 = vmatpush1.msra.mxu0 %v1817
      %1902 = vmatprep.subr.mxu0 0.0
      %1903 = vmatpush1.msra.mxu0 %v1816
      %1904 = vmatprep.subr.mxu0 0.0
      %1905 = vmatpush2.msra.mxu0 0.0
      %1906 = vmatprep.subr.mxu0 0.0
      %1907 = vmatpush2.msra.mxu0 0.0
      %1908 = vmatprep.subr.mxu0 0.0
      %1909 = vmatpush2.msra.mxu0 0.0
      %1910 = vmatprep.subr.mxu0 0.0
      %1911 = vmatpush2.msra.mxu0 0.0
      %1912 = vmatprep.subr.mxu0 0.0
      %1913 = vmatpush2.msra.mxu0 0.0
      %1914 = vmatprep.subr.mxu0 0.0
      %1915 = vmatpush2.msra.mxu0 0.0
      %1916 = vmatprep.subr.mxu0 0.0
      %1917 = vmatpush2.msra.mxu0 0.0
      %1918 = vmatprep.subr.mxu0 0.0
      %1919 = vmatpush2.msra.mxu0 0.0
      %1920 = vmatprep.subr.mxu0 0.0
      %1921 = vmatpush2.msra.mxu0 0.0
      %1922 = vmatprep.subr.mxu0 0.0
      %1923 = vmatpush2.msra.mxu0 0.0
      %1924 = vmatprep.subr.mxu0 0.0
      %1925 = vmatpush2.msra.mxu0 0.0
      %1926 = vmatprep.subr.mxu0 0.0
      %1927 = vmatpush2.msra.mxu0 0.0
      %1928 = vmatprep.subr.mxu0 0.0
      %1929 = vmatpush2.msra.mxu0 0.0
      %1930 = vmatprep.subr.mxu0 0.0
      %1931 = vmatpush2.msra.mxu0 0.0
      %1932 = vmatprep.subr.mxu0 0.0
      %1933 = vmatpush2.msra.mxu0 0.0
      %1934 = vmatprep.subr.mxu0 0.0
      %1935 = vmatpush2.msra.mxu0 0.0
      %1936 = vmatprep.mubr.f32.mxu0 0.0
      %1937 = vmatmul.mubr.f32.gmra.mxu0 %v1825
      %v1938 = vpop.f32.mrf.mxu0
      %v1939 = vadd.f32 0.0, %v1938
      %v1940 = vpop.f32.mrf.mxu0
      %1941 = vmatprep.mubr.f32.mxu0 0.0
      %1942 = vmatmul.mubr.f32.gmra.mxu0 %v1828
      %v1943 = vpop.f32.mrf.mxu0
      %v1944 = vadd.f32 0.0, %v1943
      %v1945 = vpop.f32.mrf.mxu0
      %1946 = vmatprep.mubr.f32.mxu0 0.0
      %1947 = vmatmul.mubr.f32.gmra.mxu0 %v1831
      %v1948 = vpop.f32.mrf.mxu0
      %v1949 = vadd.f32 0.0, %v1948
      %v1950 = vpop.f32.mrf.mxu0
      %1951 = vmatprep.mubr.f32.mxu0 0.0
      %1952 = vmatmul.mubr.f32.gmra.mxu0 %v1834
      %v1953 = vpop.f32.mrf.mxu0
      %v1954 = vadd.f32 0.0, %v1953
      %v1955 = vpop.f32.mrf.mxu0
      %1956 = vmatprep.mubr.f32.mxu0 0.0
      %1957 = vmatmul.mubr.f32.gmra.mxu0 %v1837
      %v1958 = vpop.f32.mrf.mxu0
      %v1959 = vadd.f32 0.0, %v1958
      %v1960 = vpop.f32.mrf.mxu0
      %1961 = vmatprep.mubr.f32.mxu0 0.0
      %1962 = vmatmul.mubr.f32.gmra.mxu0 %v1840
      %v1963 = vpop.f32.mrf.mxu0
      %v1964 = vadd.f32 0.0, %v1963
      %v1965 = vpop.f32.mrf.mxu0
      %1966 = vmatprep.mubr.f32.mxu0 0.0
      %1967 = vmatmul.mubr.f32.gmra.mxu0 %v1843
      %v1968 = vpop.f32.mrf.mxu0
      %v1969 = vadd.f32 0.0, %v1968
      %v1970 = vpop.f32.mrf.mxu0
      %1971 = vmatprep.mubr.f32.mxu0 0.0
      %1972 = vmatmul.mubr.f32.gmra.mxu0 %v1846
      %v1973 = vpop.f32.mrf.mxu0
      %v1974 = vadd.f32 0.0, %v1973
      %v1975 = vpop.f32.mrf.mxu0
      %1976 = vmatprep.mubr.f32.mxu0 0.0
      %1977 = vmatmul.mubr.f32.gmra.mxu0 %v1849
      %v1978 = vpop.f32.mrf.mxu0
      %v1979 = vadd.f32 0.0, %v1978
      %v1980 = vpop.f32.mrf.mxu0
      %1981 = vmatprep.mubr.f32.mxu0 0.0
      %1982 = vmatmul.mubr.f32.gmra.mxu0 %v1852
      %v1983 = vpop.f32.mrf.mxu0
      %v1984 = vadd.f32 0.0, %v1983
      %v1985 = vpop.f32.mrf.mxu0
      %1986 = vmatprep.mubr.f32.mxu0 0.0
      %1987 = vmatmul.mubr.f32.gmra.mxu0 %v1855
      %v1988 = vpop.f32.mrf.mxu0
      %v1989 = vadd.f32 0.0, %v1988
      %v1990 = vpop.f32.mrf.mxu0
      %1991 = vmatprep.mubr.f32.mxu0 0.0
      %1992 = vmatmul.mubr.f32.gmra.mxu0 %v1858
      %v1993 = vpop.f32.mrf.mxu0
      %v1994 = vadd.f32 0.0, %v1993
      %v1995 = vpop.f32.mrf.mxu0
      %1996 = vmatprep.mubr.f32.mxu0 0.0
      %1997 = vmatmul.mubr.f32.gmra.mxu0 %v1861
      %v1998 = vpop.f32.mrf.mxu0
      %v1999 = vadd.f32 0.0, %v1998
      %v2000 = vpop.f32.mrf.mxu0
      %2001 = vmatprep.mubr.f32.mxu0 0.0
      %2002 = vmatmul.mubr.f32.gmra.mxu0 %v1864
      %v2003 = vpop.f32.mrf.mxu0
      %v2004 = vadd.f32 0.0, %v2003
      %v2005 = vpop.f32.mrf.mxu0
      %2006 = vmatprep.mubr.f32.mxu0 0.0
      %2007 = vmatmul.mubr.f32.gmra.mxu0 %v1867
      %v2008 = vpop.f32.mrf.mxu0
      %v2009 = vadd.f32 0.0, %v2008
      %v2010 = vpop.f32.mrf.mxu0
      %2011 = vmatprep.mubr.f32.mxu0 0.0
      %2012 = vmatmul.mubr.f32.gmra.mxu0 %v1870
      %v2013 = vpop.f32.mrf.mxu0
      %v2014 = vadd.f32 0.0, %v2013
      %v2015 = vpop.f32.mrf.mxu0
      %2016 = vdwg.mxu0
      %v2017 = vmul.f32 %v1939, %v1687
      %v2018 = vmul.f32 %v1944, %v1688
      %v2019 = vmul.f32 %v1949, %v1689
      %v2020 = vmul.f32 %v1954, %v1690
      %v2021 = vmul.f32 %v1959, %v1691
      %v2022 = vmul.f32 %v1964, %v1692
      %v2023 = vmul.f32 %v1969, %v1693
      %v2024 = vmul.f32 %v1974, %v1694
      %v2025 = vmul.f32 %v1979, %v1695
      %v2026 = vmul.f32 %v1984, %v1696
      %v2027 = vmul.f32 %v1989, %v1697
      %v2028 = vmul.f32 %v1994, %v1698
      %v2029 = vmul.f32 %v1999, %v1699
      %v2030 = vmul.f32 %v2004, %v1700
      %v2031 = vmul.f32 %v2009, %v1701
      %v2032 = vmul.f32 %v2014, %v1702
      %2033 = vxpose.xlu0.b32.start [1/16] %v2017, 128
      %2034 = vxpose.xlu0.b32.cont [2/16] %v2018, 128
      %2035 = vxpose.xlu0.b32.cont [3/16] %v2019, 128
      %2036 = vxpose.xlu0.b32.cont [4/16] %v2020, 128
      %2037 = vxpose.xlu0.b32.cont [5/16] %v2021, 128
      %2038 = vxpose.xlu0.b32.cont [6/16] %v2022, 128
      %2039 = vxpose.xlu0.b32.cont [7/16] %v2023, 128
      %2040 = vxpose.xlu0.b32.cont [8/16] %v2024, 128
      %2041 = vxpose.xlu0.b32.cont [9/16] %v2025, 128
      %2042 = vxpose.xlu0.b32.cont [10/16] %v2026, 128
      %2043 = vxpose.xlu0.b32.cont [11/16] %v2027, 128
      %2044 = vxpose.xlu0.b32.cont [12/16] %v2028, 128
      %2045 = vxpose.xlu0.b32.cont [13/16] %v2029, 128
      %2046 = vxpose.xlu0.b32.cont [14/16] %v2030, 128
      %2047 = vxpose.xlu0.b32.cont [15/16] %v2031, 128
      %2048 = vxpose.xlu0.b32.end [16/16] %v2032, 128
      %v2049 = vpop.trf.xlu0
      %v2050 = vpop.trf.xlu0
      %v2051 = vpop.trf.xlu0
      %v2052 = vpop.trf.xlu0
      %v2053 = vpop.trf.xlu0
      %v2054 = vpop.trf.xlu0
      %v2055 = vpop.trf.xlu0
      %v2056 = vpop.trf.xlu0
      %v2057 = vpop.trf.xlu0
      %v2058 = vpop.trf.xlu0
      %v2059 = vpop.trf.xlu0
      %v2060 = vpop.trf.xlu0
      %v2061 = vpop.trf.xlu0
      %v2062 = vpop.trf.xlu0
      %v2063 = vpop.trf.xlu0
      %v2064 = vpop.trf.xlu0
      %v2065 = vpack.c.bf16 %v2049, %v2049
      %s2066 = smul.addr %s1294, 4
      %s2067 = scalar_lea.vmem %s476, %s2066
      %2068 = vst [vmem:[%s2067] sm:$0xf] %v2065
      %p2069 = scmp.eq.s32.totalorder %s30, 1
      // Predicated region
      $region73: #{muti_freq_forward.1} parent=67 // pred_check
        %p2070 = pneg %p2069
      $region74: #{muti_freq_forward.1} parent=67 // pred_check_branch
        %2072 = sbr.rel (%p2070) target = $region76
      $region75: #{muti_freq_forward.1} parent=67 // pred_region
        %v2073 = vlaneseq
        %v2074 = vand.u32 %v2073, 127
        %v2075 = vadd.s32 %v2074, 128
        %v2076 = vld [vmem:[%s11] sm:$0x3]
        %v2077 = vld [vmem:[%s9] sm:$0xff]
        %v2078 = vld [vmem:[#allocation6] sm:$0xff]
        %v2079 = vld [vmem:[%s10] sm:$0xff]
        %2081 = vset.pattern.permute.xlu0 0
        %2082 = vperm.xlu0 %2081, %v2079
        %v2083 = vpop.permute.xlu0 %2082
        %v2086 = vsel %vm1332, %v2077, 0
        %2088 = vmatprep.subr.mxu0 0.0
        %2089 = vmatpush1.msra.mxu0 0.0
        %2090 = vmatprep.subr.mxu0 0.0
        %2091 = vmatpush1.msra.mxu0 0.0
        %2092 = vmatprep.subr.mxu0 0.0
        %2093 = vmatpush1.msra.mxu0 0.0
        %2094 = vmatprep.subr.mxu0 0.0
        %2095 = vmatpush1.msra.mxu0 0.0
        %2096 = vmatprep.subr.mxu0 0.0
        %2097 = vmatpush1.msra.mxu0 0.0
        %2098 = vmatprep.subr.mxu0 0.0
        %2099 = vmatpush1.msra.mxu0 0.0
        %2100 = vmatprep.subr.mxu0 0.0
        %2101 = vmatpush1.msra.mxu0 0.0
        %2102 = vmatprep.subr.mxu0 0.0
        %2103 = vmatpush1.msra.mxu0 0.0
        %2104 = vmatprep.subr.mxu0 0.0
        %2105 = vmatpush1.msra.mxu0 0.0
        %2106 = vmatprep.subr.mxu0 0.0
        %2107 = vmatpush1.msra.mxu0 0.0
        %2108 = vmatprep.subr.mxu0 0.0
        %2109 = vmatpush1.msra.mxu0 0.0
        %2110 = vmatprep.subr.mxu0 0.0
        %2111 = vmatpush1.msra.mxu0 0.0
        %2112 = vmatprep.subr.mxu0 0.0
        %2113 = vmatpush1.msra.mxu0 0.0
        %2114 = vmatprep.subr.mxu0 0.0
        %2115 = vmatpush1.msra.mxu0 0.0
        %2116 = vmatprep.subr.mxu0 0.0
        %2117 = vmatpush1.msra.mxu0 0.0
        %2118 = vmatprep.subr.mxu0 0.0
        %2119 = vmatpush1.msra.mxu0 %v2078
        %2120 = vmatprep.subr.mxu0 0.0
        %2121 = vmatpush2.msra.mxu0 0.0
        %2122 = vmatprep.subr.mxu0 0.0
        %2123 = vmatpush2.msra.mxu0 0.0
        %2124 = vmatprep.subr.mxu0 0.0
        %2125 = vmatpush2.msra.mxu0 0.0
        %2126 = vmatprep.subr.mxu0 0.0
        %2127 = vmatpush2.msra.mxu0 0.0
        %2128 = vmatprep.subr.mxu0 0.0
        %2129 = vmatpush2.msra.mxu0 0.0
        %2130 = vmatprep.subr.mxu0 0.0
        %2131 = vmatpush2.msra.mxu0 0.0
        %2132 = vmatprep.subr.mxu0 0.0
        %2133 = vmatpush2.msra.mxu0 0.0
        %2134 = vmatprep.subr.mxu0 0.0
        %2135 = vmatpush2.msra.mxu0 0.0
        %2136 = vmatprep.subr.mxu0 0.0
        %2137 = vmatpush2.msra.mxu0 0.0
        %2138 = vmatprep.subr.mxu0 0.0
        %2139 = vmatpush2.msra.mxu0 0.0
        %2140 = vmatprep.subr.mxu0 0.0
        %2141 = vmatpush2.msra.mxu0 0.0
        %2142 = vmatprep.subr.mxu0 0.0
        %2143 = vmatpush2.msra.mxu0 0.0
        %2144 = vmatprep.subr.mxu0 0.0
        %2145 = vmatpush2.msra.mxu0 0.0
        %2146 = vmatprep.subr.mxu0 0.0
        %2147 = vmatpush2.msra.mxu0 0.0
        %2148 = vmatprep.subr.mxu0 0.0
        %2149 = vmatpush2.msra.mxu0 0.0
        %2150 = vmatprep.subr.mxu0 0.0
        %2151 = vmatpush2.msra.mxu0 0.0
        %2152 = vmatprep.mubr.f32.mxu0 0.0
        %2153 = vmatmul.mubr.f32.gmra.mxu0 %v2086
        %v2154 = vpop.f32.mrf.mxu0
        %v2155 = vadd.f32 %v2083, %v2154
        %v2156 = vpop.f32.mrf.mxu0
        %2157 = vdwg.mxu0
        %v2158 = vpack.c.bf16 %v2155, %v2155
        %vm2159 = vcmask 519168
        %2160 = vst.msk [vmem:[%s480] sm:$0xf] %vm2159, %v2158
        %v2161 = vld [vmem:[%s476] sm:$0xff]
        %v2162 = vunpack.c.l.bf16 %v2161
        %v2163 = vunpack.c.h.bf16 %v2161
        %v2164 = vld [vmem:[%s4] sm:$0xff]
        %2166 = vset.pattern.permute.xlu0 4
        %2167 = vperm.xlu0 %2166, %v2164
        %v2168 = vpop.permute.xlu0 %2167
        %v2170 = vmul.f32 %v2162, %v2168
        %v2171 = vmul.f32 %v2163, %v2168
        %2173 = vrot.lane.b32.xlu0 %v2163, 17
        %v2174 = vpop.permute.xlu0 %2173
        %2177 = vrot.lane.b32.xlu0 %v2162, 17
        %v2178 = vpop.permute.xlu0 %2177
        %vm2179 = vcmask 138240
        %v2180 = vsel %vm2179, %v2178, %v2174
        %v2183 = vsel %vm2179, %v2174, %v2178
        %vm2184 = vcmp.ge.s32.totalorder %v2074, 16
        %vm2185 = vcmp.ge.s32.totalorder %v2075, 16
        %vm2186 = vcmp.ge.s32.totalorder %v2076, 1
        %v2187 = vsel %vm2186, 1, 0
        %v2188 = vlaneseq
        %v2189 = vshrl.u32 %v2188, 7
        %v2190 = vsub.s32 0, %v2189
        %v2191 = vrot.slane %v2187, %v2190
        %v2192 = vlaneseq
        %v2193 = vshrl.u32 %v2192, 7
        %v2194 = vsub.s32 1, %v2193
        %v2195 = vrot.slane %v2187, %v2194
        %vm2196 = vcmp.ne.s32.totalorder %v2191, 0
        %vm2197 = vcmp.ne.s32.totalorder %v2195, 0
        %vm2198 = vmand %vm2184, %vm2196
        %vm2199 = vmand %vm2185, %vm2197
        %v2200 = vsel %vm2198, 1, 0
        %v2201 = vsel %vm2199, 1, 0
        %v2202 = vlaneseq
        %v2203 = vshrl.u32 %v2202, 7
        %v2204 = vsub.s32 0, %v2203
        %v2205 = vrot.slane %v2200, %v2204
        %v2206 = vlaneseq
        %v2207 = vshrl.u32 %v2206, 7
        %v2208 = vsub.s32 0, %v2207
        %v2209 = vrot.slane %v2201, %v2208
        %vm2210 = vcmp.eq.s32.totalorder %v2205, 1
        %vm2211 = vcmp.eq.s32.totalorder %v2209, 1
        %v2212 = vsel %vm2210, %v2183, 0.0
        %v2213 = vsel %vm2211, %v2180, 0.0
        %2214 = vset.pattern.permute.xlu0 0
        %2215 = vperm.xlu0 %2214, %v2164
        %v2216 = vpop.permute.xlu0 %2215
        %v2218 = vmul.f32 %v2212, %v2216
        %v2219 = vmul.f32 %v2213, %v2216
        %v2220 = vadd.f32 %v2170, %v2218
        %v2221 = vadd.f32 %v2171, %v2219
        %2222 = vrot.lane.b32.xlu0 %v2163, 16
        %v2223 = vpop.permute.xlu0 %2222
        %2225 = vrot.lane.b32.xlu0 %v2162, 16
        %v2226 = vpop.permute.xlu0 %2225
        %vm2227 = vcmask 130048
        %v2228 = vsel %vm2227, %v2226, %v2223
        %v2231 = vsel %vm2227, %v2223, %v2226
        %v2232 = vsel %vm2184, 1, 0
        %v2233 = vsel %vm2185, 1, 0
        %vm2234 = vcmp.eq.s32.totalorder %v2232, 1
        %vm2235 = vcmp.eq.s32.totalorder %v2233, 1
        %v2236 = vsel %vm2234, %v2231, 0.0
        %v2237 = vsel %vm2235, %v2228, 0.0
        %2238 = vset.pattern.permute.xlu0 1
        %2239 = vperm.xlu0 %2238, %v2164
        %v2240 = vpop.permute.xlu0 %2239
        %v2242 = vmul.f32 %v2236, %v2240
        %v2243 = vmul.f32 %v2237, %v2240
        %v2244 = vadd.f32 %v2220, %v2242
        %v2245 = vadd.f32 %v2221, %v2243
        %2246 = vrot.lane.b32.xlu0 %v2163, 15
        %v2247 = vpop.permute.xlu0 %2246
        %2249 = vrot.lane.b32.xlu0 %v2162, 15
        %v2250 = vpop.permute.xlu0 %2249
        %vm2251 = vcmask 121856
        %v2252 = vsel %vm2251, %v2250, %v2247
        %v2255 = vsel %vm2251, %v2247, %v2250
        %vm2256 = vcmp.le.s32.totalorder %v2076, 14
        %v2257 = vsel %vm2256, 1, 0
        %v2258 = vlaneseq
        %v2259 = vshrl.u32 %v2258, 7
        %v2260 = vsub.s32 0, %v2259
        %v2261 = vrot.slane %v2257, %v2260
        %v2262 = vlaneseq
        %v2263 = vshrl.u32 %v2262, 7
        %v2264 = vsub.s32 1, %v2263
        %v2265 = vrot.slane %v2257, %v2264
        %vm2266 = vcmp.ne.s32.totalorder %v2261, 0
        %vm2267 = vcmp.ne.s32.totalorder %v2265, 0
        %vm2268 = vmand %vm2184, %vm2266
        %vm2269 = vmand %vm2185, %vm2267
        %v2270 = vsel %vm2268, 1, 0
        %v2271 = vsel %vm2269, 1, 0
        %v2272 = vlaneseq
        %v2273 = vshrl.u32 %v2272, 7
        %v2274 = vsub.s32 0, %v2273
        %v2275 = vrot.slane %v2270, %v2274
        %v2276 = vlaneseq
        %v2277 = vshrl.u32 %v2276, 7
        %v2278 = vsub.s32 0, %v2277
        %v2279 = vrot.slane %v2271, %v2278
        %vm2280 = vcmp.eq.s32.totalorder %v2275, 1
        %vm2281 = vcmp.eq.s32.totalorder %v2279, 1
        %v2282 = vsel %vm2280, %v2255, 0.0
        %v2283 = vsel %vm2281, %v2252, 0.0
        %2284 = vset.pattern.permute.xlu0 2
        %2285 = vperm.xlu0 %2284, %v2164
        %v2286 = vpop.permute.xlu0 %2285
        %v2288 = vmul.f32 %v2282, %v2286
        %v2289 = vmul.f32 %v2283, %v2286
        %v2290 = vadd.f32 %v2244, %v2288
        %v2291 = vadd.f32 %v2245, %v2289
        %2292 = vrot.lane.b32.xlu0 %v2163, 1
        %v2293 = vpop.permute.xlu0 %2292
        %2295 = vrot.lane.b32.xlu0 %v2162, 1
        %v2296 = vpop.permute.xlu0 %2295
        %vm2297 = vcmask 7168
        %v2298 = vsel %vm2297, %v2296, %v2293
        %v2301 = vsel %vm2297, %v2293, %v2296
        %vm2302 = vcmp.eq.s32.totalorder %v2191, 1
        %vm2303 = vcmp.eq.s32.totalorder %v2195, 1
        %v2304 = vsel %vm2302, %v2301, 0.0
        %v2305 = vsel %vm2303, %v2298, 0.0
        %2306 = vset.pattern.permute.xlu0 3
        %2307 = vperm.xlu0 %2306, %v2164
        %v2308 = vpop.permute.xlu0 %2307
        %v2310 = vmul.f32 %v2304, %v2308
        %v2311 = vmul.f32 %v2305, %v2308
        %v2312 = vadd.f32 %v2290, %v2310
        %v2313 = vadd.f32 %v2291, %v2311
        %2314 = vrot.lane.b32.xlu0 %v2162, 127
        %v2315 = vpop.permute.xlu0 %2314
        %2316 = vrot.lane.b32.xlu0 %v2163, 127
        %v2317 = vpop.permute.xlu0 %2316
        %vm2318 = vcmask 1039360
        %v2319 = vsel %vm2318, %v2315, %v2317
        %v2323 = vsel %vm2318, %v2317, %v2315
        %vm2324 = vcmp.eq.s32.totalorder %v2261, 1
        %vm2325 = vcmp.eq.s32.totalorder %v2265, 1
        %v2326 = vsel %vm2324, %v2319, 0.0
        %v2327 = vsel %vm2325, %v2323, 0.0
        %2328 = vset.pattern.permute.xlu0 5
        %2329 = vperm.xlu0 %2328, %v2164
        %v2330 = vpop.permute.xlu0 %2329
        %v2332 = vmul.f32 %v2326, %v2330
        %v2333 = vmul.f32 %v2327, %v2330
        %v2334 = vadd.f32 %v2312, %v2332
        %v2335 = vadd.f32 %v2313, %v2333
        %2336 = vrot.lane.b32.xlu0 %v2162, 113
        %v2337 = vpop.permute.xlu0 %2336
        %2338 = vrot.lane.b32.xlu0 %v2163, 113
        %v2339 = vpop.permute.xlu0 %2338
        %vm2340 = vcmask 924672
        %v2341 = vsel %vm2340, %v2337, %v2339
        %v2345 = vsel %vm2340, %v2339, %v2337
        %vm2346 = vcmp.lt.s32.totalorder %v2074, 240
        %vm2347 = vcmp.lt.s32.totalorder %v2075, 240
        %vm2348 = vmand %vm2346, %vm2196
        %vm2349 = vmand %vm2347, %vm2197
        %v2350 = vsel %vm2348, 1, 0
        %v2351 = vsel %vm2349, 1, 0
        %v2352 = vlaneseq
        %v2353 = vshrl.u32 %v2352, 7
        %v2354 = vsub.s32 0, %v2353
        %v2355 = vrot.slane %v2350, %v2354
        %v2356 = vlaneseq
        %v2357 = vshrl.u32 %v2356, 7
        %v2358 = vsub.s32 0, %v2357
        %v2359 = vrot.slane %v2351, %v2358
        %vm2360 = vcmp.eq.s32.totalorder %v2355, 1
        %vm2361 = vcmp.eq.s32.totalorder %v2359, 1
        %v2362 = vsel %vm2360, %v2341, 0.0
        %v2363 = vsel %vm2361, %v2345, 0.0
        %2364 = vset.pattern.permute.xlu0 6
        %2365 = vperm.xlu0 %2364, %v2164
        %v2366 = vpop.permute.xlu0 %2365
        %v2368 = vmul.f32 %v2362, %v2366
        %v2369 = vmul.f32 %v2363, %v2366
        %v2370 = vadd.f32 %v2334, %v2368
        %v2371 = vadd.f32 %v2335, %v2369
        %2372 = vrot.lane.b32.xlu0 %v2162, 112
        %v2373 = vpop.permute.xlu0 %2372
        %2374 = vrot.lane.b32.xlu0 %v2163, 112
        %v2375 = vpop.permute.xlu0 %2374
        %vm2376 = vcmask 916480
        %v2377 = vsel %vm2376, %v2373, %v2375
        %v2381 = vsel %vm2376, %v2375, %v2373
        %v2382 = vsel %vm2346, 1, 0
        %v2383 = vsel %vm2347, 1, 0
        %vm2384 = vcmp.eq.s32.totalorder %v2382, 1
        %vm2385 = vcmp.eq.s32.totalorder %v2383, 1
        %v2386 = vsel %vm2384, %v2377, 0.0
        %v2387 = vsel %vm2385, %v2381, 0.0
        %2388 = vset.pattern.permute.xlu0 7
        %2389 = vperm.xlu0 %2388, %v2164
        %v2390 = vpop.permute.xlu0 %2389
        %v2392 = vmul.f32 %v2386, %v2390
        %v2393 = vmul.f32 %v2387, %v2390
        %v2394 = vadd.f32 %v2370, %v2392
        %v2395 = vadd.f32 %v2371, %v2393
        %2396 = vrot.lane.b32.xlu0 %v2162, 111
        %v2397 = vpop.permute.xlu0 %2396
        %2398 = vrot.lane.b32.xlu0 %v2163, 111
        %v2399 = vpop.permute.xlu0 %2398
        %vm2400 = vcmask 908288
        %v2401 = vsel %vm2400, %v2397, %v2399
        %v2405 = vsel %vm2400, %v2399, %v2397
        %vm2406 = vmand %vm2346, %vm2266
        %vm2407 = vmand %vm2347, %vm2267
        %v2408 = vsel %vm2406, 1, 0
        %v2409 = vsel %vm2407, 1, 0
        %v2410 = vlaneseq
        %v2411 = vshrl.u32 %v2410, 7
        %v2412 = vsub.s32 0, %v2411
        %v2413 = vrot.slane %v2408, %v2412
        %v2414 = vlaneseq
        %v2415 = vshrl.u32 %v2414, 7
        %v2416 = vsub.s32 0, %v2415
        %v2417 = vrot.slane %v2409, %v2416
        %vm2418 = vcmp.eq.s32.totalorder %v2413, 1
        %vm2419 = vcmp.eq.s32.totalorder %v2417, 1
        %v2420 = vsel %vm2418, %v2401, 0.0
        %v2421 = vsel %vm2419, %v2405, 0.0
        %2422 = vset.pattern.permute.xlu0 8
        %2423 = vperm.xlu0 %2422, %v2164
        %v2424 = vpop.permute.xlu0 %2423
        %v2426 = vmul.f32 %v2420, %v2424
        %v2427 = vmul.f32 %v2421, %v2424
        %v2428 = vadd.f32 %v2394, %v2426
        %v2429 = vadd.f32 %v2395, %v2427
        %v2430 = vpack.c.bf16 %v2428, %v2428
        %v2431 = vpack.c.bf16 %v2429, %v2429
        %v2434 = vunpack.c.l.b16 %v2430
        %v2435 = vunpack.c.l.b16 %v2431
        %v2436 = vpack.c.b16 %v2435, %v2434
        %2438 = vst [vmem:[%s476] sm:$0xff] %v2436
      $region76: #{muti_freq_forward.1} parent=67 // pred_fallthru
        _
      %p2439 = scmp.lt.s32.totalorder %s29, 1
      %s2440 = scalar_select %p2439, %s29, 1
      %s2441 = smul.addr %s2440, 2
      %s2442 = smul.addr %s2441, 4
      %s2443 = scalar_lea.vmem %s12, %s2442
      %p2444 = scmp.lt.s32.totalorder %s29, 1
      %s2445 = scalar_select %p2444, %s29, 1
      %s2446 = smul.addr %s2445, 4
      %s2447 = scalar_lea.vmem %s13, %s2446
      // Predicated region
      $region77: #{muti_freq_forward.1} parent=67 // pred_check
        %p2448 = pneg %p317
      $region78: #{muti_freq_forward.1} parent=67 // pred_check_branch
        %2450 = sbr.rel (%p2448) target = $region80
      $region79: #{muti_freq_forward.1} parent=67 // pred_region
        _
      $region80: #{muti_freq_forward.1} parent=67 // pred_fallthru
        _
      // Predicated region
      $region81: #{muti_freq_forward.1} parent=67 // pred_check
        %p2451 = pneg %p343
      $region82: #{muti_freq_forward.1} parent=67 // pred_check_branch
        %2453 = sbr.rel (%p2451) target = $region84
      $region83: #{muti_freq_forward.1} parent=67 // pred_region
        _
      $region84: #{muti_freq_forward.1} parent=67 // pred_fallthru
        _
    $region68: #{muti_freq_forward.1} parent=5 // pred_fallthru
      _
    %p2454 = scmp.le.s32.totalorder 2, %s20
    // Predicated region
    $region85: #{muti_freq_forward.1} parent=5 // pred_check
      %p2455 = pneg %p2454
    $region86: #{muti_freq_forward.1} parent=5 // pred_check_branch
      %2457 = sbr.rel (%p2455) target = $region88
    $region87: #{muti_freq_forward.1} parent=5 // pred_region
      %s2458 = ssub.s32 %s20, 2
      // Predicated region
      $region89: #{muti_freq_forward.1} parent=87 // pred_check
        %p2459 = pneg %p323
      $region90: #{muti_freq_forward.1} parent=87 // pred_check_branch
        %2461 = sbr.rel (%p2459) target = $region92
      $region91: #{muti_freq_forward.1} parent=87 // pred_region
        %p2462 = scmp.lt.s32.totalorder %s31, 1
        %s2463 = scalar_select %p2462, %s31, 1
        %s2464 = smul.addr %s2463, 2
        %s2465 = smul.addr %s2464, 4
        %s2466 = scalar_lea.vmem %s12, %s2465
      $region92: #{muti_freq_forward.1} parent=87 // pred_fallthru
        _
      // Predicated region
      $region93: #{muti_freq_forward.1} parent=87 // pred_check
        %p2467 = pneg %p349
      $region94: #{muti_freq_forward.1} parent=87 // pred_check_branch
        %2469 = sbr.rel (%p2467) target = $region96
      $region95: #{muti_freq_forward.1} parent=87 // pred_region
        %p2470 = scmp.lt.s32.totalorder %s31, 1
        %s2471 = scalar_select %p2470, %s31, 1
        %s2472 = smul.addr %s2471, 4
        %s2473 = scalar_lea.vmem %s13, %s2472
      $region96: #{muti_freq_forward.1} parent=87 // pred_fallthru
        _
    $region88: #{muti_freq_forward.1} parent=5 // pred_fallthru
      _
  $region6: #{muti_freq_forward.1} parent=0 // loop_footer
    %s24 = sadd.s32 1, %s20
  $region7: #{muti_freq_forward.1} parent=0 // loop_footer_branch
    %19 = sbr.rel target = $region3
  $region8: #{muti_freq_forward.1} parent=0 // loop_exit
    _

</llo_original>
